<compile_context>
chip_gen: v7x
topology: tpu7x:2x2x1
jax: 0.10.0
libtpu: 0.0.40
codegen_flags: <defaults>
</compile_context>

<pallas_src>
import jax
import jax.numpy as jnp
from jax.experimental import pallas as pl
from jax.experimental.pallas import tpu as pltpu

# ----------------------- small synthetic config ------------------------------
B = 2            # batch
C = 3            # image channels (RGB)
IMG = 16         # image H = W
PATCH = 8        # patch size
NP = (IMG // PATCH) ** 2       # 4 patches
SEQ = NP + 1                   # 5 tokens (CLS + patches)
D = 32           # hidden width       (1280 in imagebind_huge)
NH = 4           # attention heads    (16 in imagebind_huge)
HD = D // NH     # head dim
MLP = 4 * D      # MLP hidden
DEPTH = 2        # transformer blocks (32 in imagebind_huge)
EMB = 128        # output embedding   (1024 in imagebind_huge); multiple of 128
                 # so the head output store is lane-dense (unmasked vst).
PD = C * PATCH * PATCH
EPS = 1e-6


def _ln(x, g, b):
    mu = jnp.mean(x, axis=-1, keepdims=True)
    var = jnp.mean(jnp.square(x - mu), axis=-1, keepdims=True)
    return (x - mu) * jax.lax.rsqrt(var + EPS) * g + b


def _erf(x):
    # Abramowitz & Stegun 7.1.26 rational approximation, |err| <= 1.5e-7.
    # Gives PyTorch-exact nn.GELU numerics (vs. the tanh approximation) while
    # only using ops guaranteed to lower in Mosaic (exp/abs/where/mul/add).
    a1, a2, a3, a4, a5 = 0.254829592, -0.284496736, 1.421413741, -1.453152027, 1.061405429
    pp = 0.3275911
    sgn = jnp.where(x < 0.0, -1.0, 1.0)
    ax = jnp.abs(x)
    t = 1.0 / (1.0 + pp * ax)
    poly = ((((a5 * t + a4) * t + a3) * t + a2) * t + a1) * t
    return sgn * (1.0 - poly * jnp.exp(-ax * ax))


def _gelu_exact(x):
    return 0.5 * x * (1.0 + _erf(x * 0.7071067811865476))


# ------------------------------- fused kernel ---------------------------------
def imagebind_kernel(
        patches_ref, w_patch_ref, b_patch_ref, cls_ref, pos_ref,
        ln1g_ref, ln1b_ref,
        wq_ref, wk_ref, wv_ref, bq_ref, bk_ref, bv_ref,
        wo_ref, bo_ref,
        ln2g_ref, ln2b_ref,
        w1_ref, b1_ref, w2_ref, b2_ref,
        lnfg_ref, lnfb_ref, wproj_ref,
        out_ref, xbuf):
    layer = pl.program_id(0)

    # ---- patch embed + CLS + pos-embed: first grid step only ----
    @pl.when(layer == 0)
    def _():
        emb = jnp.dot(patches_ref[...].astype(jnp.bfloat16), w_patch_ref[...],
                      preferred_element_type=jnp.float32) + b_patch_ref[...]   # (B*NP, D)
        for b in range(B):
            xbuf[b * SEQ:b * SEQ + 1, :] = cls_ref[...] + pos_ref[0:1, :]
            xbuf[b * SEQ + 1:(b + 1) * SEQ, :] = (
                emb[b * NP:(b + 1) * NP, :] + pos_ref[1:, :])

    x = xbuf[...]                                         # (B*SEQ, D) f32 residual stream

    # ---- multi-head self-attention (pre-LN), heads batched on the MXU ----
    h = _ln(x, ln1g_ref[0], ln1b_ref[0]).astype(jnp.bfloat16)          # (B*SEQ, D)
    wq, wk, wv, wo = wq_ref[0], wk_ref[0], wv_ref[0], wo_ref[0]        # (NH, HD, D) bf16
    bq, bk, bv = bq_ref[0], bk_ref[0], bv_ref[0]                       # (NH, 1, HD) f32
    attn_rows = []
    for b in range(B):          # static batch loop; weights streamed once per layer
        hb = jnp.broadcast_to(h[b * SEQ:(b + 1) * SEQ, :][None], (NH, SEQ, D))
        q = jnp.einsum('hsd,hed->hse', hb, wq, preferred_element_type=jnp.float32) + bq
        k = jnp.einsum('hsd,hed->hse', hb, wk, preferred_element_type=jnp.float32) + bk
        v = jnp.einsum('hsd,hed->hse', hb, wv, preferred_element_type=jnp.float32) + bv
        # 1/sqrt(HD) is folded into w_q / b_q at init time.
        s = jnp.einsum('hqe,hke->hqk', q.astype(jnp.bfloat16), k.astype(jnp.bfloat16),
                       preferred_element_type=jnp.float32)             # (NH, SEQ, SEQ)
        s = s - jnp.max(s, axis=-1, keepdims=True)
        p = jnp.exp(s)
        p = p * pl.reciprocal(jnp.sum(p, axis=-1, keepdims=True), approx=True)
        o = jnp.einsum('hqk,hke->hqe', p.astype(jnp.bfloat16), v.astype(jnp.bfloat16),
                       preferred_element_type=jnp.float32)             # (NH, SEQ, HD)
        pr = jnp.einsum('hse,hed->hsd', o.astype(jnp.bfloat16), wo,
                        preferred_element_type=jnp.float32)            # (NH, SEQ, D)
        attn_rows.append(jnp.sum(pr, axis=0))                          # (SEQ, D)
    attn = jnp.concatenate(attn_rows, axis=0) + bo_ref[0]              # (B*SEQ, D)
    x = x + attn

    # ---- MLP (pre-LN), exact erf-GELU ----
    h2 = _ln(x, ln2g_ref[0], ln2b_ref[0]).astype(jnp.bfloat16)
    m = jnp.dot(h2, w1_ref[0], preferred_element_type=jnp.float32) + b1_ref[0]
    m = _gelu_exact(m)
    y = jnp.dot(m.astype(jnp.bfloat16), w2_ref[0],
                preferred_element_type=jnp.float32) + b2_ref[0]
    x = x + y

    xbuf[...] = x

    # ---- head: final LN -> CLS -> linear proj (no bias) -> L2 normalize ----
    @pl.when(layer == DEPTH - 1)
    def _():
        cls_tok = jnp.concatenate([x[b * SEQ:b * SEQ + 1, :] for b in range(B)], axis=0)
        hf = _ln(cls_tok, lnfg_ref[...], lnfb_ref[...])                 # (B, D)
        e = jnp.dot(hf.astype(jnp.bfloat16), wproj_ref[...],
                    preferred_element_type=jnp.float32)                 # (B, EMB)
        inv = jax.lax.rsqrt(jnp.maximum(jnp.sum(e * e, axis=-1, keepdims=True), 1e-24))
        out_ref[...] = (e * inv).astype(out_ref.dtype)                  # lane-dense store


# ------------------------------ wrapper ---------------------------------------
@jax.jit
def imagebind_vision(x, params):
    assert x.shape == (B, C, IMG, IMG)
    # Conv2d patchify == gather of non-overlapping (C, p, p)-flattened patches
    # (pure layout plumbing in plain JAX); the matmul with the flattened conv
    # weight runs inside the kernel.
    patches = x.reshape(B, C, IMG // PATCH, PATCH, IMG // PATCH, PATCH)
    patches = patches.transpose(0, 2, 4, 1, 3, 5).reshape(B * NP, PD)

    const2 = lambda l: (0, 0)
    per_layer3 = lambda l: (l, 0, 0)
    per_layer4 = lambda l: (l, 0, 0, 0)

    in_specs = [
        pl.BlockSpec((B * NP, PD), const2),        # patches
        pl.BlockSpec((PD, D), const2),             # w_patch (bf16)
        pl.BlockSpec((1, D), const2),              # b_patch
        pl.BlockSpec((1, D), const2),              # cls
        pl.BlockSpec((SEQ, D), const2),            # pos
        pl.BlockSpec((1, 1, D), per_layer3),       # ln1_g
        pl.BlockSpec((1, 1, D), per_layer3),       # ln1_b
        pl.BlockSpec((1, NH, HD, D), per_layer4),  # w_q (bf16, scale folded)
        pl.BlockSpec((1, NH, HD, D), per_layer4),  # w_k (bf16)
        pl.BlockSpec((1, NH, HD, D), per_layer4),  # w_v (bf16)
        pl.BlockSpec((1, NH, 1, HD), per_layer4),  # b_q
        pl.BlockSpec((1, NH, 1, HD), per_layer4),  # b_k
        pl.BlockSpec((1, NH, 1, HD), per_layer4),  # b_v
        pl.BlockSpec((1, NH, HD, D), per_layer4),  # w_o (bf16)
        pl.BlockSpec((1, 1, D), per_layer3),       # b_o
        pl.BlockSpec((1, 1, D), per_layer3),       # ln2_g
        pl.BlockSpec((1, 1, D), per_layer3),       # ln2_b
        pl.BlockSpec((1, D, MLP), per_layer3),     # w_mlp1 (bf16)
        pl.BlockSpec((1, 1, MLP), per_layer3),     # b_mlp1
        pl.BlockSpec((1, MLP, D), per_layer3),     # w_mlp2 (bf16)
        pl.BlockSpec((1, 1, D), per_layer3),       # b_mlp2
        pl.BlockSpec((1, D), const2),              # lnf_g
        pl.BlockSpec((1, D), const2),              # lnf_b
        pl.BlockSpec((D, EMB), const2),            # w_proj (bf16)
    ]

    out = pl.pallas_call(
        imagebind_kernel,
        out_shape=jax.ShapeDtypeStruct((B, EMB), jnp.float32),
        grid=(DEPTH,),
        in_specs=in_specs,
        out_specs=pl.BlockSpec((B, EMB), lambda l: (0, 0)),
        scratch_shapes=[pltpu.VMEM((B * SEQ, D), jnp.float32)],   # residual carry
        compiler_params=pltpu.CompilerParams(
            dimension_semantics=("arbitrary",)),    # layer axis carries state
    )(patches,
      params["w_patch"], params["b_patch"], params["cls"], params["pos"],
      params["ln1_g"], params["ln1_b"],
      params["w_q"], params["w_k"], params["w_v"],
      params["b_q"], params["b_k"], params["b_v"],
      params["w_o"], params["b_o"],
      params["ln2_g"], params["ln2_b"],
      params["w_mlp1"], params["b_mlp1"], params["w_mlp2"], params["b_mlp2"],
      params["lnf_g"], params["lnf_b"], params["w_proj"])
    return out


# --------------------------- deterministic params -----------------------------
def init_params(key):
    keys = jax.random.split(key, 12)
    std = 0.02
    scale = 1.0 / (HD ** 0.5)          # attention scale folded into w_q / b_q
    bf16 = jnp.bfloat16
    # Conv2d weight (D, C, p, p) -> flattened matmul weight (C*p*p, D),
    # matching PyTorch's (c, ph, pw) row-major flattening of each patch.
    w_conv = jax.random.normal(keys[0], (D, C, PATCH, PATCH), jnp.float32) * std
    w_q = jax.random.normal(keys[4], (DEPTH, NH, HD, D), jnp.float32) * std
    return dict(
        w_patch=w_conv.reshape(D, PD).T.astype(bf16),
        b_patch=jax.random.normal(keys[1], (1, D), jnp.float32) * std,
        cls=jax.random.normal(keys[2], (1, D), jnp.float32) * std,
        pos=jax.random.normal(keys[3], (SEQ, D), jnp.float32) * std,
        ln1_g=jnp.ones((DEPTH, 1, D), jnp.float32),
        ln1_b=jnp.zeros((DEPTH, 1, D), jnp.float32),
        # per-head projection weights, layout (layer, head, head_dim, D)
        w_q=(w_q * scale).astype(bf16),
        w_k=(jax.random.normal(keys[5], (DEPTH, NH, HD, D), jnp.float32) * std).astype(bf16),
        w_v=(jax.random.normal(keys[6], (DEPTH, NH, HD, D), jnp.float32) * std).astype(bf16),
        b_q=jnp.zeros((DEPTH, NH, 1, HD), jnp.float32),   # folded scale * 0 = 0
        b_k=jnp.zeros((DEPTH, NH, 1, HD), jnp.float32),
        b_v=jnp.zeros((DEPTH, NH, 1, HD), jnp.float32),
        w_o=(jax.random.normal(keys[7], (DEPTH, NH, HD, D), jnp.float32) * std).astype(bf16),
        b_o=jnp.zeros((DEPTH, 1, D), jnp.float32),
        ln2_g=jnp.ones((DEPTH, 1, D), jnp.float32),
        ln2_b=jnp.zeros((DEPTH, 1, D), jnp.float32),
        w_mlp1=(jax.random.normal(keys[8], (DEPTH, D, MLP), jnp.float32) * std).astype(bf16),
        b_mlp1=jnp.zeros((DEPTH, 1, MLP), jnp.float32),
        w_mlp2=(jax.random.normal(keys[9], (DEPTH, MLP, D), jnp.float32) * std).astype(bf16),
        b_mlp2=jnp.zeros((DEPTH, 1, D), jnp.float32),
        lnf_g=jnp.ones((1, D), jnp.float32),
        lnf_b=jnp.zeros((1, D), jnp.float32),
        w_proj=(jax.random.normal(keys[10], (D, EMB), jnp.float32) * std).astype(bf16),
    )


if __name__ == "__main__":
    key = jax.random.PRNGKey(0)
    kx, kp = jax.random.split(key)
    x = jax.random.normal(kx, (B, C, IMG, IMG), jnp.float32)   # NCHW like PyTorch
    params = init_params(kp)

    out = imagebind_vision(x, params)
    jax.block_until_ready(out)

    assert out.shape == (B, EMB), out.shape
    assert bool(jnp.all(jnp.isfinite(out)))
    print("KERNEL_OK")
</pallas_src>

<mosaic_0001>
module attributes {stable_mosaic.version = 11 : i64} {
  func.func @imagebind_kernel(%arg0: i32, %arg1: memref<8x192xf32, #tpu.memory_space<vmem>>, %arg2: memref<192x32xbf16, #tpu.memory_space<vmem>>, %arg3: memref<1x32xf32, #tpu.memory_space<vmem>>, %arg4: memref<1x32xf32, #tpu.memory_space<vmem>>, %arg5: memref<5x32xf32, #tpu.memory_space<vmem>>, %arg6: memref<1x1x32xf32, #tpu.memory_space<vmem>>, %arg7: memref<1x1x32xf32, #tpu.memory_space<vmem>>, %arg8: memref<1x4x8x32xbf16, #tpu.memory_space<vmem>>, %arg9: memref<1x4x8x32xbf16, #tpu.memory_space<vmem>>, %arg10: memref<1x4x8x32xbf16, #tpu.memory_space<vmem>>, %arg11: memref<1x4x1x8xf32, #tpu.memory_space<vmem>>, %arg12: memref<1x4x1x8xf32, #tpu.memory_space<vmem>>, %arg13: memref<1x4x1x8xf32, #tpu.memory_space<vmem>>, %arg14: memref<1x4x8x32xbf16, #tpu.memory_space<vmem>>, %arg15: memref<1x1x32xf32, #tpu.memory_space<vmem>>, %arg16: memref<1x1x32xf32, #tpu.memory_space<vmem>>, %arg17: memref<1x1x32xf32, #tpu.memory_space<vmem>>, %arg18: memref<1x32x128xbf16, #tpu.memory_space<vmem>>, %arg19: memref<1x1x128xf32, #tpu.memory_space<vmem>>, %arg20: memref<1x128x32xbf16, #tpu.memory_space<vmem>>, %arg21: memref<1x1x32xf32, #tpu.memory_space<vmem>>, %arg22: memref<1x32xf32, #tpu.memory_space<vmem>>, %arg23: memref<1x32xf32, #tpu.memory_space<vmem>>, %arg24: memref<32x128xbf16, #tpu.memory_space<vmem>>, %arg25: memref<2x128xf32, #tpu.memory_space<vmem>>, %arg26: memref<10x32xf32, #tpu.memory_space<vmem>>) attributes {dimension_semantics = [#tpu.dimension_semantics<arbitrary>], iteration_bounds = array<i64: 2>, scalar_prefetch = 0 : i64, scratch_operands = 1 : i64, tpu.core_type = #tpu.core_type<tc>, window_params = [{pipeline_mode = #tpu.pipeline_mode<synchronous>, transform_indices = @transform_0, window_bounds = array<i64: 8, 192>}, {pipeline_mode = #tpu.pipeline_mode<synchronous>, transform_indices = @transform_1, window_bounds = array<i64: 192, 32>}, {pipeline_mode = #tpu.pipeline_mode<synchronous>, transform_indices = @transform_2, window_bounds = array<i64: 1, 32>}, {pipeline_mode = #tpu.pipeline_mode<synchronous>, transform_indices = @transform_3, window_bounds = array<i64: 1, 32>}, {pipeline_mode = #tpu.pipeline_mode<synchronous>, transform_indices = @transform_4, window_bounds = array<i64: 5, 32>}, {transform_indices = @transform_5, window_bounds = array<i64: 1, 1, 32>}, {transform_indices = @transform_6, window_bounds = array<i64: 1, 1, 32>}, {transform_indices = @transform_7, window_bounds = array<i64: 1, 4, 8, 32>}, {transform_indices = @transform_8, window_bounds = array<i64: 1, 4, 8, 32>}, {transform_indices = @transform_9, window_bounds = array<i64: 1, 4, 8, 32>}, {transform_indices = @transform_10, window_bounds = array<i64: 1, 4, 1, 8>}, {transform_indices = @transform_11, window_bounds = array<i64: 1, 4, 1, 8>}, {transform_indices = @transform_12, window_bounds = array<i64: 1, 4, 1, 8>}, {transform_indices = @transform_13, window_bounds = array<i64: 1, 4, 8, 32>}, {transform_indices = @transform_14, window_bounds = array<i64: 1, 1, 32>}, {transform_indices = @transform_15, window_bounds = array<i64: 1, 1, 32>}, {transform_indices = @transform_16, window_bounds = array<i64: 1, 1, 32>}, {transform_indices = @transform_17, window_bounds = array<i64: 1, 32, 128>}, {transform_indices = @transform_18, window_bounds = array<i64: 1, 1, 128>}, {transform_indices = @transform_19, window_bounds = array<i64: 1, 128, 32>}, {transform_indices = @transform_20, window_bounds = array<i64: 1, 1, 32>}, {pipeline_mode = #tpu.pipeline_mode<synchronous>, transform_indices = @transform_21, window_bounds = array<i64: 1, 32>}, {pipeline_mode = #tpu.pipeline_mode<synchronous>, transform_indices = @transform_22, window_bounds = array<i64: 1, 32>}, {pipeline_mode = #tpu.pipeline_mode<synchronous>, transform_indices = @transform_23, window_bounds = array<i64: 32, 128>}, {pipeline_mode = #tpu.pipeline_mode<synchronous>, transform_indices = @transform_24, window_bounds = array<i64: 2, 128>}]} {
    %c0_i32 = arith.constant 0 : i32
    %0 = arith.cmpi eq, %arg0, %c0_i32 : i32
    %1 = arith.extui %0 : i1 to i32
    %c0_i32_0 = arith.constant 0 : i32
    %2 = arith.cmpi ne, %1, %c0_i32_0 : i32
    scf.if %2 {
      %c0_105 = arith.constant 0 : index
      %c0_106 = arith.constant 0 : index
      %203 = vector.load %arg1[%c0_105, %c0_106] : memref<8x192xf32, #tpu.memory_space<vmem>>, vector<8x192xf32>
      %204 = arith.truncf %203 : vector<8x192xf32> to vector<8x192xbf16>
      %c0_107 = arith.constant 0 : index
      %c0_108 = arith.constant 0 : index
      %205 = vector.load %arg2[%c0_107, %c0_108] : memref<192x32xbf16, #tpu.memory_space<vmem>>, vector<192x32xbf16>
      %cst_109 = arith.constant dense<0.000000e+00> : vector<8x32xf32>
      %206 = tpu.matmul %204, %205, %cst_109 {dimension_numbers = #tpu.dot_dimension_numbers<[1], [0], [0], [1], [0, 0, 1, 1], [], []>} : vector<8x192xbf16>, vector<192x32xbf16>, vector<8x32xf32> -> vector<8x32xf32>
      %c0_110 = arith.constant 0 : index
      %c0_111 = arith.constant 0 : index
      %207 = vector.load %arg3[%c0_110, %c0_111] : memref<1x32xf32, #tpu.memory_space<vmem>>, vector<1x32xf32>
      %208 = vector.broadcast %207 : vector<1x32xf32> to vector<8x32xf32>
      %209 = arith.addf %206, %208 : vector<8x32xf32>
      %c0_112 = arith.constant 0 : index
      %c0_113 = arith.constant 0 : index
      %210 = vector.load %arg4[%c0_112, %c0_113] : memref<1x32xf32, #tpu.memory_space<vmem>>, vector<1x32xf32>
      %c0_114 = arith.constant 0 : index
      %c0_115 = arith.constant 0 : index
      %211 = vector.load %arg5[%c0_114, %c0_115] : memref<5x32xf32, #tpu.memory_space<vmem>>, vector<1x32xf32>
      %212 = arith.addf %210, %211 : vector<1x32xf32>
      %c0_116 = arith.constant 0 : index
      %c0_117 = arith.constant 0 : index
      %213 = vector.load %arg26[%c0_116, %c0_117] : memref<10x32xf32, #tpu.memory_space<vmem>>, vector<1x32xf32>
      tpu.vector_store %arg26[%c0_116, %c0_117], %212 {strides = array<i32>} : memref<10x32xf32, #tpu.memory_space<vmem>>, vector<1x32xf32>,
      %214 = vector.extract_strided_slice %209 {offsets = [0, 0], sizes = [4, 32], strides = [1, 1]} : vector<8x32xf32> to vector<4x32xf32>
      %c1 = arith.constant 1 : index
      %c0_118 = arith.constant 0 : index
      %215 = vector.load %arg5[%c1, %c0_118] : memref<5x32xf32, #tpu.memory_space<vmem>>, vector<4x32xf32>
      %216 = arith.addf %214, %215 : vector<4x32xf32>
      %c1_119 = arith.constant 1 : index
      %c0_120 = arith.constant 0 : index
      %217 = vector.load %arg26[%c1_119, %c0_120] : memref<10x32xf32, #tpu.memory_space<vmem>>, vector<4x32xf32>
      tpu.vector_store %arg26[%c1_119, %c0_120], %216 {strides = array<i32>} : memref<10x32xf32, #tpu.memory_space<vmem>>, vector<4x32xf32>,
      %c0_121 = arith.constant 0 : index
      %c0_122 = arith.constant 0 : index
      %218 = vector.load %arg4[%c0_121, %c0_122] : memref<1x32xf32, #tpu.memory_space<vmem>>, vector<1x32xf32>
      %c0_123 = arith.constant 0 : index
      %c0_124 = arith.constant 0 : index
      %219 = vector.load %arg5[%c0_123, %c0_124] : memref<5x32xf32, #tpu.memory_space<vmem>>, vector<1x32xf32>
      %220 = arith.addf %218, %219 : vector<1x32xf32>
      %c5 = arith.constant 5 : index
      %c0_125 = arith.constant 0 : index
      %221 = vector.load %arg26[%c5, %c0_125] : memref<10x32xf32, #tpu.memory_space<vmem>>, vector<1x32xf32>
      tpu.vector_store %arg26[%c5, %c0_125], %220 {strides = array<i32>} : memref<10x32xf32, #tpu.memory_space<vmem>>, vector<1x32xf32>,
      %222 = vector.extract_strided_slice %209 {offsets = [4, 0], sizes = [4, 32], strides = [1, 1]} : vector<8x32xf32> to vector<4x32xf32>
      %c1_126 = arith.constant 1 : index
      %c0_127 = arith.constant 0 : index
      %223 = vector.load %arg5[%c1_126, %c0_127] : memref<5x32xf32, #tpu.memory_space<vmem>>, vector<4x32xf32>
      %224 = arith.addf %222, %223 : vector<4x32xf32>
      %c6 = arith.constant 6 : index
      %c0_128 = arith.constant 0 : index
      %225 = vector.load %arg26[%c6, %c0_128] : memref<10x32xf32, #tpu.memory_space<vmem>>, vector<4x32xf32>
      tpu.vector_store %arg26[%c6, %c0_128], %224 {strides = array<i32>} : memref<10x32xf32, #tpu.memory_space<vmem>>, vector<4x32xf32>,
    } else {
    }
    %c0 = arith.constant 0 : index
    %c0_1 = arith.constant 0 : index
    %3 = vector.load %arg26[%c0, %c0_1] : memref<10x32xf32, #tpu.memory_space<vmem>>, vector<10x32xf32>
    %c0_2 = arith.constant 0 : index
    %c0_3 = arith.constant 0 : index
    %c0_4 = arith.constant 0 : index
    %4 = vector.load %arg6[%c0_2, %c0_3, %c0_4] : memref<1x1x32xf32, #tpu.memory_space<vmem>>, vector<1x1x32xf32>
    %5 = vector.shape_cast %4 : vector<1x1x32xf32> to vector<1x32xf32>
    %c0_5 = arith.constant 0 : index
    %c0_6 = arith.constant 0 : index
    %c0_7 = arith.constant 0 : index
    %6 = vector.load %arg7[%c0_5, %c0_6, %c0_7] : memref<1x1x32xf32, #tpu.memory_space<vmem>>, vector<1x1x32xf32>
    %7 = vector.shape_cast %6 : vector<1x1x32xf32> to vector<1x32xf32>
    %cst = arith.constant dense<0.000000e+00> : vector<10xf32>
    %8 = vector.multi_reduction <add>, %3, %cst [1] : vector<10x32xf32> to vector<10xf32>
    %9 = vector.shape_cast %8 : vector<10xf32> to vector<10x1xf32>
    %cst_8 = arith.constant 3.200000e+01 : f32
    %10 = vector.broadcast %cst_8 : f32 to vector<10x1xf32>
    %11 = arith.divf %9, %10 : vector<10x1xf32>
    %12 = vector.broadcast %11 : vector<10x1xf32> to vector<10x32xf32>
    %13 = arith.subf %3, %12 : vector<10x32xf32>
    %14 = arith.mulf %13, %13 : vector<10x32xf32>
    %cst_9 = arith.constant dense<0.000000e+00> : vector<10xf32>
    %15 = vector.multi_reduction <add>, %14, %cst_9 [1] : vector<10x32xf32> to vector<10xf32>
    %16 = vector.shape_cast %15 : vector<10xf32> to vector<10x1xf32>
    %cst_10 = arith.constant 3.200000e+01 : f32
    %17 = vector.broadcast %cst_10 : f32 to vector<10x1xf32>
    %18 = arith.divf %16, %17 : vector<10x1xf32>
    %19 = vector.broadcast %11 : vector<10x1xf32> to vector<10x32xf32>
    %20 = arith.subf %3, %19 : vector<10x32xf32>
    %cst_11 = arith.constant 9.99999997E-7 : f32
    %21 = vector.broadcast %cst_11 : f32 to vector<10x1xf32>
    %22 = arith.addf %18, %21 : vector<10x1xf32>
    %23 = math.rsqrt %22 : vector<10x1xf32>
    %24 = vector.broadcast %23 : vector<10x1xf32> to vector<10x32xf32>
    %25 = arith.mulf %20, %24 : vector<10x32xf32>
    %26 = vector.broadcast %5 : vector<1x32xf32> to vector<10x32xf32>
    %27 = arith.mulf %25, %26 : vector<10x32xf32>
    %28 = vector.broadcast %7 : vector<1x32xf32> to vector<10x32xf32>
    %29 = arith.addf %27, %28 : vector<10x32xf32>
    %30 = arith.truncf %29 : vector<10x32xf32> to vector<10x32xbf16>
    %c0_12 = arith.constant 0 : index
    %c0_13 = arith.constant 0 : index
    %c0_14 = arith.constant 0 : index
    %c0_15 = arith.constant 0 : index
    %31 = vector.load %arg8[%c0_12, %c0_13, %c0_14, %c0_15] : memref<1x4x8x32xbf16, #tpu.memory_space<vmem>>, vector<1x4x8x32xbf16>
    %32 = vector.shape_cast %31 : vector<1x4x8x32xbf16> to vector<4x8x32xbf16>
    %c0_16 = arith.constant 0 : index
    %c0_17 = arith.constant 0 : index
    %c0_18 = arith.constant 0 : index
    %c0_19 = arith.constant 0 : index
    %33 = vector.load %arg9[%c0_16, %c0_17, %c0_18, %c0_19] : memref<1x4x8x32xbf16, #tpu.memory_space<vmem>>, vector<1x4x8x32xbf16>
    %34 = vector.shape_cast %33 : vector<1x4x8x32xbf16> to vector<4x8x32xbf16>
    %c0_20 = arith.constant 0 : index
    %c0_21 = arith.constant 0 : index
    %c0_22 = arith.constant 0 : index
    %c0_23 = arith.constant 0 : index
    %35 = vector.load %arg10[%c0_20, %c0_21, %c0_22, %c0_23] : memref<1x4x8x32xbf16, #tpu.memory_space<vmem>>, vector<1x4x8x32xbf16>
    %36 = vector.shape_cast %35 : vector<1x4x8x32xbf16> to vector<4x8x32xbf16>
    %c0_24 = arith.constant 0 : index
    %c0_25 = arith.constant 0 : index
    %c0_26 = arith.constant 0 : index
    %c0_27 = arith.constant 0 : index
    %37 = vector.load %arg14[%c0_24, %c0_25, %c0_26, %c0_27] : memref<1x4x8x32xbf16, #tpu.memory_space<vmem>>, vector<1x4x8x32xbf16>
    %38 = vector.shape_cast %37 : vector<1x4x8x32xbf16> to vector<4x8x32xbf16>
    %c0_28 = arith.constant 0 : index
    %c0_29 = arith.constant 0 : index
    %c0_30 = arith.constant 0 : index
    %c0_31 = arith.constant 0 : index
    %39 = vector.load %arg11[%c0_28, %c0_29, %c0_30, %c0_31] : memref<1x4x1x8xf32, #tpu.memory_space<vmem>>, vector<1x4x1x8xf32>
    %40 = vector.shape_cast %39 : vector<1x4x1x8xf32> to vector<4x1x8xf32>
    %c0_32 = arith.constant 0 : index
    %c0_33 = arith.constant 0 : index
    %c0_34 = arith.constant 0 : index
    %c0_35 = arith.constant 0 : index
    %41 = vector.load %arg12[%c0_32, %c0_33, %c0_34, %c0_35] : memref<1x4x1x8xf32, #tpu.memory_space<vmem>>, vector<1x4x1x8xf32>
    %42 = vector.shape_cast %41 : vector<1x4x1x8xf32> to vector<4x1x8xf32>
    %c0_36 = arith.constant 0 : index
    %c0_37 = arith.constant 0 : index
    %c0_38 = arith.constant 0 : index
    %c0_39 = arith.constant 0 : index
    %43 = vector.load %arg13[%c0_36, %c0_37, %c0_38, %c0_39] : memref<1x4x1x8xf32, #tpu.memory_space<vmem>>, vector<1x4x1x8xf32>
    %44 = vector.shape_cast %43 : vector<1x4x1x8xf32> to vector<4x1x8xf32>
    %45 = vector.extract_strided_slice %30 {offsets = [0, 0], sizes = [5, 32], strides = [1, 1]} : vector<10x32xbf16> to vector<5x32xbf16>
    %46 = vector.shape_cast %45 : vector<5x32xbf16> to vector<1x5x32xbf16>
    %47 = vector.shape_cast %46 : vector<1x5x32xbf16> to vector<1x5x32xbf16>
    %48 = vector.broadcast %47 : vector<1x5x32xbf16> to vector<4x5x32xbf16>
    "tpu.trace_start"() <{level = 10 : i32, message = "hsd,hed->hse"}> : () -> ()
    %cst_40 = arith.constant dense<0.000000e+00> : vector<4x5x8xf32>
    %49 = tpu.matmul %48, %32, %cst_40 {dimension_numbers = #tpu.dot_dimension_numbers<[2], [2], [1], [1], [0, 0, 0, 1, 1, 1], [0], [0]>} : vector<4x5x32xbf16>, vector<4x8x32xbf16>, vector<4x5x8xf32> -> vector<4x5x8xf32>
    "tpu.trace_stop"() : () -> ()
    %50 = vector.broadcast %40 : vector<4x1x8xf32> to vector<4x5x8xf32>
    %51 = arith.addf %49, %50 : vector<4x5x8xf32>
    "tpu.trace_start"() <{level = 10 : i32, message = "hsd,hed->hse"}> : () -> ()
    %cst_41 = arith.constant dense<0.000000e+00> : vector<4x5x8xf32>
    %52 = tpu.matmul %48, %34, %cst_41 {dimension_numbers = #tpu.dot_dimension_numbers<[2], [2], [1], [1], [0, 0, 0, 1, 1, 1], [0], [0]>} : vector<4x5x32xbf16>, vector<4x8x32xbf16>, vector<4x5x8xf32> -> vector<4x5x8xf32>
    "tpu.trace_stop"() : () -> ()
    %53 = vector.broadcast %42 : vector<4x1x8xf32> to vector<4x5x8xf32>
    %54 = arith.addf %52, %53 : vector<4x5x8xf32>
    "tpu.trace_start"() <{level = 10 : i32, message = "hsd,hed->hse"}> : () -> ()
    %cst_42 = arith.constant dense<0.000000e+00> : vector<4x5x8xf32>
    %55 = tpu.matmul %48, %36, %cst_42 {dimension_numbers = #tpu.dot_dimension_numbers<[2], [2], [1], [1], [0, 0, 0, 1, 1, 1], [0], [0]>} : vector<4x5x32xbf16>, vector<4x8x32xbf16>, vector<4x5x8xf32> -> vector<4x5x8xf32>
    "tpu.trace_stop"() : () -> ()
    %56 = vector.broadcast %44 : vector<4x1x8xf32> to vector<4x5x8xf32>
    %57 = arith.addf %55, %56 : vector<4x5x8xf32>
    %58 = arith.truncf %51 : vector<4x5x8xf32> to vector<4x5x8xbf16>
    %59 = arith.truncf %54 : vector<4x5x8xf32> to vector<4x5x8xbf16>
    "tpu.trace_start"() <{level = 10 : i32, message = "hqe,hke->hqk"}> : () -> ()
    %cst_43 = arith.constant dense<0.000000e+00> : vector<4x5x5xf32>
    %60 = tpu.matmul %58, %59, %cst_43 {dimension_numbers = #tpu.dot_dimension_numbers<[2], [2], [1], [1], [0, 0, 0, 1, 1, 1], [0], [0]>} : vector<4x5x8xbf16>, vector<4x5x8xbf16>, vector<4x5x5xf32> -> vector<4x5x5xf32>
    "tpu.trace_stop"() : () -> ()
    %cst_44 = arith.constant dense<0xFF800000> : vector<4x5xf32>
    %61 = vector.multi_reduction <maximumf>, %60, %cst_44 [2] : vector<4x5x5xf32> to vector<4x5xf32>
    %62 = vector.shape_cast %61 : vector<4x5xf32> to vector<4x5x1xf32>
    %63 = vector.broadcast %62 : vector<4x5x1xf32> to vector<4x5x5xf32>
    %64 = arith.subf %60, %63 : vector<4x5x5xf32>
    %65 = math.exp %64 : vector<4x5x5xf32>
    %cst_45 = arith.constant dense<0.000000e+00> : vector<4x5xf32>
    %66 = vector.multi_reduction <add>, %65, %cst_45 [2] : vector<4x5x5xf32> to vector<4x5xf32>
    %67 = vector.shape_cast %66 : vector<4x5xf32> to vector<4x5x1xf32>
    %68 = tpu.reciprocal %67 {approx = true} : vector<4x5x1xf32> -> vector<4x5x1xf32>
    %69 = vector.broadcast %68 : vector<4x5x1xf32> to vector<4x5x5xf32>
    %70 = arith.mulf %65, %69 : vector<4x5x5xf32>
    %71 = arith.truncf %70 : vector<4x5x5xf32> to vector<4x5x5xbf16>
    %72 = arith.truncf %57 : vector<4x5x8xf32> to vector<4x5x8xbf16>
    "tpu.trace_start"() <{level = 10 : i32, message = "hqk,hke->hqe"}> : () -> ()
    %cst_46 = arith.constant dense<0.000000e+00> : vector<4x5x8xf32>
    %73 = tpu.matmul %71, %72, %cst_46 {dimension_numbers = #tpu.dot_dimension_numbers<[2], [1], [1], [2], [0, 0, 0, 1, 1, 2], [0], [0]>} : vector<4x5x5xbf16>, vector<4x5x8xbf16>, vector<4x5x8xf32> -> vector<4x5x8xf32>
    "tpu.trace_stop"() : () -> ()
    %74 = arith.truncf %73 : vector<4x5x8xf32> to vector<4x5x8xbf16>
    "tpu.trace_start"() <{level = 10 : i32, message = "hse,hed->hsd"}> : () -> ()
    %cst_47 = arith.constant dense<0.000000e+00> : vector<4x5x32xf32>
    %75 = tpu.matmul %74, %38, %cst_47 {dimension_numbers = #tpu.dot_dimension_numbers<[2], [1], [1], [2], [0, 0, 0, 1, 1, 2], [0], [0]>} : vector<4x5x8xbf16>, vector<4x8x32xbf16>, vector<4x5x32xf32> -> vector<4x5x32xf32>
    "tpu.trace_stop"() : () -> ()
    %cst_48 = arith.constant dense<0.000000e+00> : vector<5x32xf32>
    %76 = vector.multi_reduction <add>, %75, %cst_48 [0] : vector<4x5x32xf32> to vector<5x32xf32>
    %77 = vector.extract_strided_slice %30 {offsets = [5, 0], sizes = [5, 32], strides = [1, 1]} : vector<10x32xbf16> to vector<5x32xbf16>
    %78 = vector.shape_cast %77 : vector<5x32xbf16> to vector<1x5x32xbf16>
    %79 = vector.shape_cast %78 : vector<1x5x32xbf16> to vector<1x5x32xbf16>
    %80 = vector.broadcast %79 : vector<1x5x32xbf16> to vector<4x5x32xbf16>
    "tpu.trace_start"() <{level = 10 : i32, message = "hsd,hed->hse"}> : () -> ()
    %cst_49 = arith.constant dense<0.000000e+00> : vector<4x5x8xf32>
    %81 = tpu.matmul %80, %32, %cst_49 {dimension_numbers = #tpu.dot_dimension_numbers<[2], [2], [1], [1], [0, 0, 0, 1, 1, 1], [0], [0]>} : vector<4x5x32xbf16>, vector<4x8x32xbf16>, vector<4x5x8xf32> -> vector<4x5x8xf32>
    "tpu.trace_stop"() : () -> ()
    %82 = vector.broadcast %40 : vector<4x1x8xf32> to vector<4x5x8xf32>
    %83 = arith.addf %81, %82 : vector<4x5x8xf32>
    "tpu.trace_start"() <{level = 10 : i32, message = "hsd,hed->hse"}> : () -> ()
    %cst_50 = arith.constant dense<0.000000e+00> : vector<4x5x8xf32>
    %84 = tpu.matmul %80, %34, %cst_50 {dimension_numbers = #tpu.dot_dimension_numbers<[2], [2], [1], [1], [0, 0, 0, 1, 1, 1], [0], [0]>} : vector<4x5x32xbf16>, vector<4x8x32xbf16>, vector<4x5x8xf32> -> vector<4x5x8xf32>
    "tpu.trace_stop"() : () -> ()
    %85 = vector.broadcast %42 : vector<4x1x8xf32> to vector<4x5x8xf32>
    %86 = arith.addf %84, %85 : vector<4x5x8xf32>
    "tpu.trace_start"() <{level = 10 : i32, message = "hsd,hed->hse"}> : () -> ()
    %cst_51 = arith.constant dense<0.000000e+00> : vector<4x5x8xf32>
    %87 = tpu.matmul %80, %36, %cst_51 {dimension_numbers = #tpu.dot_dimension_numbers<[2], [2], [1], [1], [0, 0, 0, 1, 1, 1], [0], [0]>} : vector<4x5x32xbf16>, vector<4x8x32xbf16>, vector<4x5x8xf32> -> vector<4x5x8xf32>
    "tpu.trace_stop"() : () -> ()
    %88 = vector.broadcast %44 : vector<4x1x8xf32> to vector<4x5x8xf32>
    %89 = arith.addf %87, %88 : vector<4x5x8xf32>
    %90 = arith.truncf %83 : vector<4x5x8xf32> to vector<4x5x8xbf16>
    %91 = arith.truncf %86 : vector<4x5x8xf32> to vector<4x5x8xbf16>
    "tpu.trace_start"() <{level = 10 : i32, message = "hqe,hke->hqk"}> : () -> ()
    %cst_52 = arith.constant dense<0.000000e+00> : vector<4x5x5xf32>
    %92 = tpu.matmul %90, %91, %cst_52 {dimension_numbers = #tpu.dot_dimension_numbers<[2], [2], [1], [1], [0, 0, 0, 1, 1, 1], [0], [0]>} : vector<4x5x8xbf16>, vector<4x5x8xbf16>, vector<4x5x5xf32> -> vector<4x5x5xf32>
    "tpu.trace_stop"() : () -> ()
    %cst_53 = arith.constant dense<0xFF800000> : vector<4x5xf32>
    %93 = vector.multi_reduction <maximumf>, %92, %cst_53 [2] : vector<4x5x5xf32> to vector<4x5xf32>
    %94 = vector.shape_cast %93 : vector<4x5xf32> to vector<4x5x1xf32>
    %95 = vector.broadcast %94 : vector<4x5x1xf32> to vector<4x5x5xf32>
    %96 = arith.subf %92, %95 : vector<4x5x5xf32>
    %97 = math.exp %96 : vector<4x5x5xf32>
    %cst_54 = arith.constant dense<0.000000e+00> : vector<4x5xf32>
    %98 = vector.multi_reduction <add>, %97, %cst_54 [2] : vector<4x5x5xf32> to vector<4x5xf32>
    %99 = vector.shape_cast %98 : vector<4x5xf32> to vector<4x5x1xf32>
    %100 = tpu.reciprocal %99 {approx = true} : vector<4x5x1xf32> -> vector<4x5x1xf32>
    %101 = vector.broadcast %100 : vector<4x5x1xf32> to vector<4x5x5xf32>
    %102 = arith.mulf %97, %101 : vector<4x5x5xf32>
    %103 = arith.truncf %102 : vector<4x5x5xf32> to vector<4x5x5xbf16>
    %104 = arith.truncf %89 : vector<4x5x8xf32> to vector<4x5x8xbf16>
    "tpu.trace_start"() <{level = 10 : i32, message = "hqk,hke->hqe"}> : () -> ()
    %cst_55 = arith.constant dense<0.000000e+00> : vector<4x5x8xf32>
    %105 = tpu.matmul %103, %104, %cst_55 {dimension_numbers = #tpu.dot_dimension_numbers<[2], [1], [1], [2], [0, 0, 0, 1, 1, 2], [0], [0]>} : vector<4x5x5xbf16>, vector<4x5x8xbf16>, vector<4x5x8xf32> -> vector<4x5x8xf32>
    "tpu.trace_stop"() : () -> ()
    %106 = arith.truncf %105 : vector<4x5x8xf32> to vector<4x5x8xbf16>
    "tpu.trace_start"() <{level = 10 : i32, message = "hse,hed->hsd"}> : () -> ()
    %cst_56 = arith.constant dense<0.000000e+00> : vector<4x5x32xf32>
    %107 = tpu.matmul %106, %38, %cst_56 {dimension_numbers = #tpu.dot_dimension_numbers<[2], [1], [1], [2], [0, 0, 0, 1, 1, 2], [0], [0]>} : vector<4x5x8xbf16>, vector<4x8x32xbf16>, vector<4x5x32xf32> -> vector<4x5x32xf32>
    "tpu.trace_stop"() : () -> ()
    %cst_57 = arith.constant dense<0.000000e+00> : vector<5x32xf32>
    %108 = vector.multi_reduction <add>, %107, %cst_57 [0] : vector<4x5x32xf32> to vector<5x32xf32>
    %109 = tpu.concatenate %76, %108 in 0 : vector<5x32xf32>, vector<5x32xf32> -> vector<10x32xf32>
    %c0_58 = arith.constant 0 : index
    %c0_59 = arith.constant 0 : index
    %c0_60 = arith.constant 0 : index
    %110 = vector.load %arg15[%c0_58, %c0_59, %c0_60] : memref<1x1x32xf32, #tpu.memory_space<vmem>>, vector<1x1x32xf32>
    %111 = vector.shape_cast %110 : vector<1x1x32xf32> to vector<1x32xf32>
    %112 = vector.broadcast %111 : vector<1x32xf32> to vector<10x32xf32>
    %113 = arith.addf %109, %112 : vector<10x32xf32>
    %114 = arith.addf %3, %113 : vector<10x32xf32>
    %c0_61 = arith.constant 0 : index
    %c0_62 = arith.constant 0 : index
    %c0_63 = arith.constant 0 : index
    %115 = vector.load %arg16[%c0_61, %c0_62, %c0_63] : memref<1x1x32xf32, #tpu.memory_space<vmem>>, vector<1x1x32xf32>
    %116 = vector.shape_cast %115 : vector<1x1x32xf32> to vector<1x32xf32>
    %c0_64 = arith.constant 0 : index
    %c0_65 = arith.constant 0 : index
    %c0_66 = arith.constant 0 : index
    %117 = vector.load %arg17[%c0_64, %c0_65, %c0_66] : memref<1x1x32xf32, #tpu.memory_space<vmem>>, vector<1x1x32xf32>
    %118 = vector.shape_cast %117 : vector<1x1x32xf32> to vector<1x32xf32>
    %cst_67 = arith.constant dense<0.000000e+00> : vector<10xf32>
    %119 = vector.multi_reduction <add>, %114, %cst_67 [1] : vector<10x32xf32> to vector<10xf32>
    %120 = vector.shape_cast %119 : vector<10xf32> to vector<10x1xf32>
    %cst_68 = arith.constant 3.200000e+01 : f32
    %121 = vector.broadcast %cst_68 : f32 to vector<10x1xf32>
    %122 = arith.divf %120, %121 : vector<10x1xf32>
    %123 = vector.broadcast %122 : vector<10x1xf32> to vector<10x32xf32>
    %124 = arith.subf %114, %123 : vector<10x32xf32>
    %125 = arith.mulf %124, %124 : vector<10x32xf32>
    %cst_69 = arith.constant dense<0.000000e+00> : vector<10xf32>
    %126 = vector.multi_reduction <add>, %125, %cst_69 [1] : vector<10x32xf32> to vector<10xf32>
    %127 = vector.shape_cast %126 : vector<10xf32> to vector<10x1xf32>
    %cst_70 = arith.constant 3.200000e+01 : f32
    %128 = vector.broadcast %cst_70 : f32 to vector<10x1xf32>
    %129 = arith.divf %127, %128 : vector<10x1xf32>
    %130 = vector.broadcast %122 : vector<10x1xf32> to vector<10x32xf32>
    %131 = arith.subf %114, %130 : vector<10x32xf32>
    %cst_71 = arith.constant 9.99999997E-7 : f32
    %132 = vector.broadcast %cst_71 : f32 to vector<10x1xf32>
    %133 = arith.addf %129, %132 : vector<10x1xf32>
    %134 = math.rsqrt %133 : vector<10x1xf32>
    %135 = vector.broadcast %134 : vector<10x1xf32> to vector<10x32xf32>
    %136 = arith.mulf %131, %135 : vector<10x32xf32>
    %137 = vector.broadcast %116 : vector<1x32xf32> to vector<10x32xf32>
    %138 = arith.mulf %136, %137 : vector<10x32xf32>
    %139 = vector.broadcast %118 : vector<1x32xf32> to vector<10x32xf32>
    %140 = arith.addf %138, %139 : vector<10x32xf32>
    %141 = arith.truncf %140 : vector<10x32xf32> to vector<10x32xbf16>
    %c0_72 = arith.constant 0 : index
    %c0_73 = arith.constant 0 : index
    %c0_74 = arith.constant 0 : index
    %142 = vector.load %arg18[%c0_72, %c0_73, %c0_74] : memref<1x32x128xbf16, #tpu.memory_space<vmem>>, vector<1x32x128xbf16>
    %143 = vector.shape_cast %142 : vector<1x32x128xbf16> to vector<32x128xbf16>
    %cst_75 = arith.constant dense<0.000000e+00> : vector<10x128xf32>
    %144 = tpu.matmul %141, %143, %cst_75 {dimension_numbers = #tpu.dot_dimension_numbers<[1], [0], [0], [1], [0, 0, 1, 1], [], []>} : vector<10x32xbf16>, vector<32x128xbf16>, vector<10x128xf32> -> vector<10x128xf32>
    %c0_76 = arith.constant 0 : index
    %c0_77 = arith.constant 0 : index
    %c0_78 = arith.constant 0 : index
    %145 = vector.load %arg19[%c0_76, %c0_77, %c0_78] : memref<1x1x128xf32, #tpu.memory_space<vmem>>, vector<1x1x128xf32>
    %146 = vector.shape_cast %145 : vector<1x1x128xf32> to vector<1x128xf32>
    %147 = vector.broadcast %146 : vector<1x128xf32> to vector<10x128xf32>
    %148 = arith.addf %144, %147 : vector<10x128xf32>
    %cst_79 = arith.constant 5.000000e-01 : f32
    %149 = vector.broadcast %cst_79 : f32 to vector<10x128xf32>
    %150 = arith.mulf %149, %148 : vector<10x128xf32>
    %cst_80 = arith.constant 0.707106769 : f32
    %151 = vector.broadcast %cst_80 : f32 to vector<10x128xf32>
    %152 = arith.mulf %148, %151 : vector<10x128xf32>
    %cst_81 = arith.constant 0.000000e+00 : f32
    %153 = vector.broadcast %cst_81 : f32 to vector<10x128xf32>
    %154 = arith.cmpf olt, %152, %153 : vector<10x128xf32>
    %cst_82 = arith.constant -1.000000e+00 : f32
    %cst_83 = arith.constant 1.000000e+00 : f32
    %155 = vector.broadcast %cst_82 : f32 to vector<10x128xf32>
    %156 = vector.broadcast %cst_83 : f32 to vector<10x128xf32>
    %157 = arith.select %154, %155, %156 : vector<10x128xi1>, vector<10x128xf32>
    %158 = math.absf %152 : vector<10x128xf32>
    %cst_84 = arith.constant 0.327591091 : f32
    %159 = vector.broadcast %cst_84 : f32 to vector<10x128xf32>
    %160 = arith.mulf %159, %158 : vector<10x128xf32>
    %cst_85 = arith.constant 1.000000e+00 : f32
    %161 = vector.broadcast %cst_85 : f32 to vector<10x128xf32>
    %162 = arith.addf %161, %160 : vector<10x128xf32>
    %cst_86 = arith.constant 1.000000e+00 : f32
    %163 = vector.broadcast %cst_86 : f32 to vector<10x128xf32>
    %164 = arith.divf %163, %162 : vector<10x128xf32>
    %cst_87 = arith.constant 1.06140542 : f32
    %165 = vector.broadcast %cst_87 : f32 to vector<10x128xf32>
    %166 = arith.mulf %165, %164 : vector<10x128xf32>
    %cst_88 = arith.constant -1.45315206 : f32
    %167 = vector.broadcast %cst_88 : f32 to vector<10x128xf32>
    %168 = arith.addf %166, %167 : vector<10x128xf32>
    %169 = arith.mulf %168, %164 : vector<10x128xf32>
    %cst_89 = arith.constant 1.42141378 : f32
    %170 = vector.broadcast %cst_89 : f32 to vector<10x128xf32>
    %171 = arith.addf %169, %170 : vector<10x128xf32>
    %172 = arith.mulf %171, %164 : vector<10x128xf32>
    %cst_90 = arith.constant -0.284496725 : f32
    %173 = vector.broadcast %cst_90 : f32 to vector<10x128xf32>
    %174 = arith.addf %172, %173 : vector<10x128xf32>
    %175 = arith.mulf %174, %164 : vector<10x128xf32>
    %cst_91 = arith.constant 0.254829586 : f32
    %176 = vector.broadcast %cst_91 : f32 to vector<10x128xf32>
    %177 = arith.addf %175, %176 : vector<10x128xf32>
    %178 = arith.mulf %177, %164 : vector<10x128xf32>
    %cst_92 = arith.constant 0.000000e+00 : f32
    %179 = vector.broadcast %cst_92 : f32 to vector<10x128xf32>
    %180 = arith.subf %179, %158 : vector<10x128xf32>
    %181 = arith.mulf %180, %158 : vector<10x128xf32>
    %182 = math.exp %181 : vector<10x128xf32>
    %183 = arith.mulf %178, %182 : vector<10x128xf32>
    %cst_93 = arith.constant 1.000000e+00 : f32
    %184 = vector.broadcast %cst_93 : f32 to vector<10x128xf32>
    %185 = arith.subf %184, %183 : vector<10x128xf32>
    %186 = arith.mulf %157, %185 : vector<10x128xf32>
    %cst_94 = arith.constant 1.000000e+00 : f32
    %187 = vector.broadcast %cst_94 : f32 to vector<10x128xf32>
    %188 = arith.addf %187, %186 : vector<10x128xf32>
    %189 = arith.mulf %150, %188 : vector<10x128xf32>
    %190 = arith.truncf %189 : vector<10x128xf32> to vector<10x128xbf16>
    %c0_95 = arith.constant 0 : index
    %c0_96 = arith.constant 0 : index
    %c0_97 = arith.constant 0 : index
    %191 = vector.load %arg20[%c0_95, %c0_96, %c0_97] : memref<1x128x32xbf16, #tpu.memory_space<vmem>>, vector<1x128x32xbf16>
    %192 = vector.shape_cast %191 : vector<1x128x32xbf16> to vector<128x32xbf16>
    %cst_98 = arith.constant dense<0.000000e+00> : vector<10x32xf32>
    %193 = tpu.matmul %190, %192, %cst_98 {dimension_numbers = #tpu.dot_dimension_numbers<[1], [0], [0], [1], [0, 0, 1, 1], [], []>} : vector<10x128xbf16>, vector<128x32xbf16>, vector<10x32xf32> -> vector<10x32xf32>
    %c0_99 = arith.constant 0 : index
    %c0_100 = arith.constant 0 : index
    %c0_101 = arith.constant 0 : index
    %194 = vector.load %arg21[%c0_99, %c0_100, %c0_101] : memref<1x1x32xf32, #tpu.memory_space<vmem>>, vector<1x1x32xf32>
    %195 = vector.shape_cast %194 : vector<1x1x32xf32> to vector<1x32xf32>
    %196 = vector.broadcast %195 : vector<1x32xf32> to vector<10x32xf32>
    %197 = arith.addf %193, %196 : vector<10x32xf32>
    %198 = arith.addf %114, %197 : vector<10x32xf32>
    %c0_102 = arith.constant 0 : index
    %c0_103 = arith.constant 0 : index
    %199 = vector.load %arg26[%c0_102, %c0_103] : memref<10x32xf32, #tpu.memory_space<vmem>>, vector<10x32xf32>
    tpu.vector_store %arg26[%c0_102, %c0_103], %198 {strides = array<i32>} : memref<10x32xf32, #tpu.memory_space<vmem>>, vector<10x32xf32>,
    %c1_i32 = arith.constant 1 : i32
    %200 = arith.cmpi eq, %arg0, %c1_i32 : i32
    %201 = arith.extui %200 : i1 to i32
    %c0_i32_104 = arith.constant 0 : i32
    %202 = arith.cmpi ne, %201, %c0_i32_104 : i32
    scf.if %202 {
      %203 = vector.extract_strided_slice %198 {offsets = [0, 0], sizes = [1, 32], strides = [1, 1]} : vector<10x32xf32> to vector<1x32xf32>
      %204 = vector.extract_strided_slice %198 {offsets = [5, 0], sizes = [1, 32], strides = [1, 1]} : vector<10x32xf32> to vector<1x32xf32>
      %205 = tpu.concatenate %203, %204 in 0 : vector<1x32xf32>, vector<1x32xf32> -> vector<2x32xf32>
      %c0_105 = arith.constant 0 : index
      %c0_106 = arith.constant 0 : index
      %206 = vector.load %arg22[%c0_105, %c0_106] : memref<1x32xf32, #tpu.memory_space<vmem>>, vector<1x32xf32>
      %c0_107 = arith.constant 0 : index
      %c0_108 = arith.constant 0 : index
      %207 = vector.load %arg23[%c0_107, %c0_108] : memref<1x32xf32, #tpu.memory_space<vmem>>, vector<1x32xf32>
      %cst_109 = arith.constant dense<0.000000e+00> : vector<2xf32>
      %208 = vector.multi_reduction <add>, %205, %cst_109 [1] : vector<2x32xf32> to vector<2xf32>
      %209 = vector.shape_cast %208 : vector<2xf32> to vector<2x1xf32>
      %cst_110 = arith.constant 3.200000e+01 : f32
      %210 = vector.broadcast %cst_110 : f32 to vector<2x1xf32>
      %211 = arith.divf %209, %210 : vector<2x1xf32>
      %212 = vector.broadcast %211 : vector<2x1xf32> to vector<2x32xf32>
      %213 = arith.subf %205, %212 : vector<2x32xf32>
      %214 = arith.mulf %213, %213 : vector<2x32xf32>
      %cst_111 = arith.constant dense<0.000000e+00> : vector<2xf32>
      %215 = vector.multi_reduction <add>, %214, %cst_111 [1] : vector<2x32xf32> to vector<2xf32>
      %216 = vector.shape_cast %215 : vector<2xf32> to vector<2x1xf32>
      %cst_112 = arith.constant 3.200000e+01 : f32
      %217 = vector.broadcast %cst_112 : f32 to vector<2x1xf32>
      %218 = arith.divf %216, %217 : vector<2x1xf32>
      %219 = vector.broadcast %211 : vector<2x1xf32> to vector<2x32xf32>
      %220 = arith.subf %205, %219 : vector<2x32xf32>
      %cst_113 = arith.constant 9.99999997E-7 : f32
      %221 = vector.broadcast %cst_113 : f32 to vector<2x1xf32>
      %222 = arith.addf %218, %221 : vector<2x1xf32>
      %223 = math.rsqrt %222 : vector<2x1xf32>
      %224 = vector.broadcast %223 : vector<2x1xf32> to vector<2x32xf32>
      %225 = arith.mulf %220, %224 : vector<2x32xf32>
      %226 = vector.broadcast %206 : vector<1x32xf32> to vector<2x32xf32>
      %227 = arith.mulf %225, %226 : vector<2x32xf32>
      %228 = vector.broadcast %207 : vector<1x32xf32> to vector<2x32xf32>
      %229 = arith.addf %227, %228 : vector<2x32xf32>
      %230 = arith.truncf %229 : vector<2x32xf32> to vector<2x32xbf16>
      %c0_114 = arith.constant 0 : index
      %c0_115 = arith.constant 0 : index
      %231 = vector.load %arg24[%c0_114, %c0_115] : memref<32x128xbf16, #tpu.memory_space<vmem>>, vector<32x128xbf16>
      %cst_116 = arith.constant dense<0.000000e+00> : vector<2x128xf32>
      %232 = tpu.matmul %230, %231, %cst_116 {dimension_numbers = #tpu.dot_dimension_numbers<[1], [0], [0], [1], [0, 0, 1, 1], [], []>} : vector<2x32xbf16>, vector<32x128xbf16>, vector<2x128xf32> -> vector<2x128xf32>
      %233 = arith.mulf %232, %232 : vector<2x128xf32>
      %cst_117 = arith.constant dense<0.000000e+00> : vector<2xf32>
      %234 = vector.multi_reduction <add>, %233, %cst_117 [1] : vector<2x128xf32> to vector<2xf32>
      %235 = vector.shape_cast %234 : vector<2xf32> to vector<2x1xf32>
      %cst_118 = arith.constant 1.000000e-24 : f32
      %236 = vector.broadcast %cst_118 : f32 to vector<2x1xf32>
      %237 = arith.maximumf %235, %236 : vector<2x1xf32>
      %238 = math.rsqrt %237 : vector<2x1xf32>
      %239 = vector.broadcast %238 : vector<2x1xf32> to vector<2x128xf32>
      %240 = arith.mulf %232, %239 : vector<2x128xf32>
      %c0_119 = arith.constant 0 : index
      %c0_120 = arith.constant 0 : index
      %241 = vector.load %arg25[%c0_119, %c0_120] : memref<2x128xf32, #tpu.memory_space<vmem>>, vector<2x128xf32>
      tpu.vector_store %arg25[%c0_119, %c0_120], %240 {strides = array<i32>} : memref<2x128xf32, #tpu.memory_space<vmem>>, vector<2x128xf32>,
    } else {
    }
    return
  }
  func.func @transform_0(%arg0: i32) -> (i32, i32) {
    %c0_i32 = arith.constant 0 : i32
    %c0_i32_0 = arith.constant 0 : i32
    %c0_i32_1 = arith.constant 0 : i32
    return %c0_i32, %c0_i32_0 : i32, i32
  }
  func.func @transform_1(%arg0: i32) -> (i32, i32) {
    %c0_i32 = arith.constant 0 : i32
    %c0_i32_0 = arith.constant 0 : i32
    %c0_i32_1 = arith.constant 0 : i32
    return %c0_i32, %c0_i32_0 : i32, i32
  }
  func.func @transform_2(%arg0: i32) -> (i32, i32) {
    %c0_i32 = arith.constant 0 : i32
    %c0_i32_0 = arith.constant 0 : i32
    %c0_i32_1 = arith.constant 0 : i32
    return %c0_i32, %c0_i32_0 : i32, i32
  }
  func.func @transform_3(%arg0: i32) -> (i32, i32) {
    %c0_i32 = arith.constant 0 : i32
    %c0_i32_0 = arith.constant 0 : i32
    %c0_i32_1 = arith.constant 0 : i32
    return %c0_i32, %c0_i32_0 : i32, i32
  }
  func.func @transform_4(%arg0: i32) -> (i32, i32) {
    %c0_i32 = arith.constant 0 : i32
    %c0_i32_0 = arith.constant 0 : i32
    %c0_i32_1 = arith.constant 0 : i32
    return %c0_i32, %c0_i32_0 : i32, i32
  }
  func.func @transform_5(%arg0: i32) -> (i32, i32, i32) {
    %c0_i32 = arith.constant 0 : i32
    %c0_i32_0 = arith.constant 0 : i32
    %c0_i32_1 = arith.constant 0 : i32
    return %arg0, %c0_i32, %c0_i32_0 : i32, i32, i32
  }
  func.func @transform_6(%arg0: i32) -> (i32, i32, i32) {
    %c0_i32 = arith.constant 0 : i32
    %c0_i32_0 = arith.constant 0 : i32
    %c0_i32_1 = arith.constant 0 : i32
    return %arg0, %c0_i32, %c0_i32_0 : i32, i32, i32
  }
  func.func @transform_7(%arg0: i32) -> (i32, i32, i32, i32) {
    %c0_i32 = arith.constant 0 : i32
    %c0_i32_0 = arith.constant 0 : i32
    %c0_i32_1 = arith.constant 0 : i32
    %c0_i32_2 = arith.constant 0 : i32
    return %arg0, %c0_i32, %c0_i32_0, %c0_i32_1 : i32, i32, i32, i32
  }
  func.func @transform_8(%arg0: i32) -> (i32, i32, i32, i32) {
    %c0_i32 = arith.constant 0 : i32
    %c0_i32_0 = arith.constant 0 : i32
    %c0_i32_1 = arith.constant 0 : i32
    %c0_i32_2 = arith.constant 0 : i32
    return %arg0, %c0_i32, %c0_i32_0, %c0_i32_1 : i32, i32, i32, i32
  }
  func.func @transform_9(%arg0: i32) -> (i32, i32, i32, i32) {
    %c0_i32 = arith.constant 0 : i32
    %c0_i32_0 = arith.constant 0 : i32
    %c0_i32_1 = arith.constant 0 : i32
    %c0_i32_2 = arith.constant 0 : i32
    return %arg0, %c0_i32, %c0_i32_0, %c0_i32_1 : i32, i32, i32, i32
  }
  func.func @transform_10(%arg0: i32) -> (i32, i32, i32, i32) {
    %c0_i32 = arith.constant 0 : i32
    %c0_i32_0 = arith.constant 0 : i32
    %c0_i32_1 = arith.constant 0 : i32
    %c0_i32_2 = arith.constant 0 : i32
    return %arg0, %c0_i32, %c0_i32_0, %c0_i32_1 : i32, i32, i32, i32
  }
  func.func @transform_11(%arg0: i32) -> (i32, i32, i32, i32) {
    %c0_i32 = arith.constant 0 : i32
    %c0_i32_0 = arith.constant 0 : i32
    %c0_i32_1 = arith.constant 0 : i32
    %c0_i32_2 = arith.constant 0 : i32
    return %arg0, %c0_i32, %c0_i32_0, %c0_i32_1 : i32, i32, i32, i32
  }
  func.func @transform_12(%arg0: i32) -> (i32, i32, i32, i32) {
    %c0_i32 = arith.constant 0 : i32
    %c0_i32_0 = arith.constant 0 : i32
    %c0_i32_1 = arith.constant 0 : i32
    %c0_i32_2 = arith.constant 0 : i32
    return %arg0, %c0_i32, %c0_i32_0, %c0_i32_1 : i32, i32, i32, i32
  }
  func.func @transform_13(%arg0: i32) -> (i32, i32, i32, i32) {
    %c0_i32 = arith.constant 0 : i32
    %c0_i32_0 = arith.constant 0 : i32
    %c0_i32_1 = arith.constant 0 : i32
    %c0_i32_2 = arith.constant 0 : i32
    return %arg0, %c0_i32, %c0_i32_0, %c0_i32_1 : i32, i32, i32, i32
  }
  func.func @transform_14(%arg0: i32) -> (i32, i32, i32) {
    %c0_i32 = arith.constant 0 : i32
    %c0_i32_0 = arith.constant 0 : i32
    %c0_i32_1 = arith.constant 0 : i32
    return %arg0, %c0_i32, %c0_i32_0 : i32, i32, i32
  }
  func.func @transform_15(%arg0: i32) -> (i32, i32, i32) {
    %c0_i32 = arith.constant 0 : i32
    %c0_i32_0 = arith.constant 0 : i32
    %c0_i32_1 = arith.constant 0 : i32
    return %arg0, %c0_i32, %c0_i32_0 : i32, i32, i32
  }
  func.func @transform_16(%arg0: i32) -> (i32, i32, i32) {
    %c0_i32 = arith.constant 0 : i32
    %c0_i32_0 = arith.constant 0 : i32
    %c0_i32_1 = arith.constant 0 : i32
    return %arg0, %c0_i32, %c0_i32_0 : i32, i32, i32
  }
  func.func @transform_17(%arg0: i32) -> (i32, i32, i32) {
    %c0_i32 = arith.constant 0 : i32
    %c0_i32_0 = arith.constant 0 : i32
    %c0_i32_1 = arith.constant 0 : i32
    return %arg0, %c0_i32, %c0_i32_0 : i32, i32, i32
  }
  func.func @transform_18(%arg0: i32) -> (i32, i32, i32) {
    %c0_i32 = arith.constant 0 : i32
    %c0_i32_0 = arith.constant 0 : i32
    %c0_i32_1 = arith.constant 0 : i32
    return %arg0, %c0_i32, %c0_i32_0 : i32, i32, i32
  }
  func.func @transform_19(%arg0: i32) -> (i32, i32, i32) {
    %c0_i32 = arith.constant 0 : i32
    %c0_i32_0 = arith.constant 0 : i32
    %c0_i32_1 = arith.constant 0 : i32
    return %arg0, %c0_i32, %c0_i32_0 : i32, i32, i32
  }
  func.func @transform_20(%arg0: i32) -> (i32, i32, i32) {
    %c0_i32 = arith.constant 0 : i32
    %c0_i32_0 = arith.constant 0 : i32
    %c0_i32_1 = arith.constant 0 : i32
    return %arg0, %c0_i32, %c0_i32_0 : i32, i32, i32
  }
  func.func @transform_21(%arg0: i32) -> (i32, i32) {
    %c0_i32 = arith.constant 0 : i32
    %c0_i32_0 = arith.constant 0 : i32
    %c0_i32_1 = arith.constant 0 : i32
    return %c0_i32, %c0_i32_0 : i32, i32
  }
  func.func @transform_22(%arg0: i32) -> (i32, i32) {
    %c0_i32 = arith.constant 0 : i32
    %c0_i32_0 = arith.constant 0 : i32
    %c0_i32_1 = arith.constant 0 : i32
    return %c0_i32, %c0_i32_0 : i32, i32
  }
  func.func @transform_23(%arg0: i32) -> (i32, i32) {
    %c0_i32 = arith.constant 0 : i32
    %c0_i32_0 = arith.constant 0 : i32
    %c0_i32_1 = arith.constant 0 : i32
    return %c0_i32, %c0_i32_0 : i32, i32
  }
  func.func @transform_24(%arg0: i32) -> (i32, i32) {
    %c0_i32 = arith.constant 0 : i32
    %c0_i32_0 = arith.constant 0 : i32
    %c0_i32_1 = arith.constant 0 : i32
    return %c0_i32, %c0_i32_0 : i32, i32
  }
}

</mosaic_0001>

<llo_original>
// kernel: imagebind_vision.1
$region0: #{imagebind_vision.1}
  #allocation0 [shape = 'u32[]', space=smem, size = 0x4, offset = 0x4, fixed_abs, tag = 'smem constant byte address 0x4 - core index']
  #allocation1 [shape = 'u32[144,128]{1,0:T(1,128)}', space=vmem, size = 0x12000, scoped, tag = 'internal scratch']
  #allocation2 [shape = 'f32[10,32]{1,0:T(8,128)}', space=vmem, size = 0x2000, scoped, tag = 'scratch operand']
  %s0 = inlined_call_operand.vmem [shape: f32[8,192], index: 0, kind: input, shape index: {}]
  %s1 = inlined_call_operand.vmem [shape: bf16[192,32], index: 1, kind: input, shape index: {}]
  %s2 = inlined_call_operand.vmem [shape: f32[1,32], index: 2, kind: input, shape index: {}]
  %s3 = inlined_call_operand.vmem [shape: f32[1,32], index: 3, kind: input, shape index: {}]
  %s4 = inlined_call_operand.vmem [shape: f32[5,32], index: 4, kind: input, shape index: {}]
  %s5 = inlined_call_operand.vmem [shape: f32[2,1,32], index: 5, kind: input, shape index: {}]
  %s6 = inlined_call_operand.vmem [shape: f32[2,1,32], index: 6, kind: input, shape index: {}]
  %s7 = inlined_call_operand.vmem [shape: bf16[2,4,8,32], index: 7, kind: input, shape index: {}]
  %s8 = inlined_call_operand.vmem [shape: bf16[2,4,8,32], index: 8, kind: input, shape index: {}]
  %s9 = inlined_call_operand.vmem [shape: bf16[2,4,8,32], index: 9, kind: input, shape index: {}]
  %s10 = inlined_call_operand.vmem [shape: f32[2,4,1,8], index: 10, kind: input, shape index: {}]
  %s11 = inlined_call_operand.vmem [shape: f32[2,4,1,8], index: 11, kind: input, shape index: {}]
  %s12 = inlined_call_operand.vmem [shape: f32[2,4,1,8], index: 12, kind: input, shape index: {}]
  %s13 = inlined_call_operand.vmem [shape: bf16[2,4,8,32], index: 13, kind: input, shape index: {}]
  %s14 = inlined_call_operand.vmem [shape: f32[2,1,32], index: 14, kind: input, shape index: {}]
  %s15 = inlined_call_operand.vmem [shape: f32[2,1,32], index: 15, kind: input, shape index: {}]
  %s16 = inlined_call_operand.vmem [shape: f32[2,1,32], index: 16, kind: input, shape index: {}]
  %s17 = inlined_call_operand.vmem [shape: bf16[2,32,128], index: 17, kind: input, shape index: {}]
  %s18 = inlined_call_operand.vmem [shape: f32[2,1,128], index: 18, kind: input, shape index: {}]
  %s19 = inlined_call_operand.vmem [shape: bf16[2,128,32], index: 19, kind: input, shape index: {}]
  %s20 = inlined_call_operand.vmem [shape: f32[2,1,32], index: 20, kind: input, shape index: {}]
  %s21 = inlined_call_operand.vmem [shape: f32[1,32], index: 21, kind: input, shape index: {}]
  %s22 = inlined_call_operand.vmem [shape: f32[1,32], index: 22, kind: input, shape index: {}]
  %s23 = inlined_call_operand.vmem [shape: bf16[32,128], index: 23, kind: input, shape index: {}]
  %s24 = inlined_call_operand.hbm [shape: f32[2,128], index: 24, kind: output, shape index: {}]
  %s25 = sld [smem:[#allocation0]]
  $region137: #{imagebind_vision.1} parent=0
    _
  %s27 = ssub.s32 1, %s25
  %s28 = scalar_select 0, %s27, %s25
  $region1: #{imagebind_vision.1} parent=0
    #allocation3 [shape = 'u8[1024]{0}', space=vmem, size = 0x400, scoped, tag = 'output window, operand 0, single buffered']
    #allocation4 [shape = 's32[2]{0}', space=sflag, size = 0x8, scoped, tag = 'scoped memory for imagebind_vision.1']
    %29 = vsyncpa [#allocation4], 0
    loop: start=0, step=1, limit=4
    $region2: #{imagebind_vision.1} parent=1 // loop_pre_header
      _
    $region3: #{imagebind_vision.1} parent=1 // loop_header
      %s31 = sphi 0, %s35
      %p32 = scmp.ge.s32.totalorder %s31, 4
      %s39 = sphi 0, %s39
      %s41 = sphi 0, %s39
      %s42 = sphi 0, %s41
      %s56 = sphi 0, %s42
      %s60 = sphi 0, %s60
      %s62 = sphi 0, %s60
      %s63 = sphi 0, %s62
      %s77 = sphi 0, %s63
      %s81 = sphi 0, %s81
      %s83 = sphi 0, %s81
      %s84 = sphi 0, %s83
      %s98 = sphi 0, %s84
      %s102 = sphi 0, %s102
      %s104 = sphi 0, %s102
      %s105 = sphi 0, %s104
      %s119 = sphi 0, %s105
      %s123 = sphi 0, %s123
      %s125 = sphi 0, %s123
      %s126 = sphi 0, %s125
      %s140 = sphi 0, %s126
      %s146 = sphi 0, %s148
      %s149 = sphi 0, %s146
      %s150 = sphi 0, %s149
      %s166 = sphi 0, %s150
      %s172 = sphi 0, %s174
      %s175 = sphi 0, %s172
      %s176 = sphi 0, %s175
      %s192 = sphi 0, %s176
      %s198 = sphi 0, %s200
      %s201 = sphi 0, %s198
      %s202 = sphi 0, %s201
      %s218 = sphi 0, %s202
      %s224 = sphi 0, %s226
      %s227 = sphi 0, %s224
      %s228 = sphi 0, %s227
      %s244 = sphi 0, %s228
      %s250 = sphi 0, %s252
      %s253 = sphi 0, %s250
      %s254 = sphi 0, %s253
      %s270 = sphi 0, %s254
      %s276 = sphi 0, %s278
      %s279 = sphi 0, %s276
      %s280 = sphi 0, %s279
      %s296 = sphi 0, %s280
      %s302 = sphi 0, %s304
      %s305 = sphi 0, %s302
      %s306 = sphi 0, %s305
      %s322 = sphi 0, %s306
      %s328 = sphi 0, %s330
      %s331 = sphi 0, %s328
      %s332 = sphi 0, %s331
      %s348 = sphi 0, %s332
      %s354 = sphi 0, %s356
      %s357 = sphi 0, %s354
      %s358 = sphi 0, %s357
      %s374 = sphi 0, %s358
      %s380 = sphi 0, %s382
      %s383 = sphi 0, %s380
      %s384 = sphi 0, %s383
      %s400 = sphi 0, %s384
      %s406 = sphi 0, %s408
      %s409 = sphi 0, %s406
      %s410 = sphi 0, %s409
      %s426 = sphi 0, %s410
      %s432 = sphi 0, %s434
      %s435 = sphi 0, %s432
      %s436 = sphi 0, %s435
      %s452 = sphi 0, %s436
      %s458 = sphi 0, %s460
      %s461 = sphi 0, %s458
      %s462 = sphi 0, %s461
      %s478 = sphi 0, %s462
      %s484 = sphi 0, %s486
      %s487 = sphi 0, %s484
      %s488 = sphi 0, %s487
      %s504 = sphi 0, %s488
      %s510 = sphi 0, %s512
      %s513 = sphi 0, %s510
      %s514 = sphi 0, %s513
      %s530 = sphi 0, %s514
      %s536 = sphi 0, %s538
      %s539 = sphi 0, %s536
      %s540 = sphi 0, %s539
      %s556 = sphi 0, %s540
      %s560 = sphi 0, %s560
      %s562 = sphi 0, %s560
      %s563 = sphi 0, %s562
      %s577 = sphi 0, %s563
      %s581 = sphi 0, %s581
      %s583 = sphi 0, %s581
      %s584 = sphi 0, %s583
      %s598 = sphi 0, %s584
      %s602 = sphi 0, %s602
      %s604 = sphi 0, %s602
      %s605 = sphi 0, %s604
      %s619 = sphi 0, %s605
      %s623 = sphi 0, %s623
      %s625 = sphi 0, %s623
      %s626 = sphi 0, %s625
      %s640 = sphi 0, %s626
    $region4: #{imagebind_vision.1} parent=1 // loop_header_branch
      %34 = sbr.rel (%p32) target = $region8
    $region5: #{imagebind_vision.1} parent=1 // loop_body
      %s36 = ssub.s32 %s31, 1
      %s37 = ssub.s32 %s31, 2
      %s38 = sadd.s32 %s31, 1
      %s40 = sadd.s32 %s39, 1
      %p43 = scmp.eq.s32.totalorder %s31, 1
      %p44 = scmp.ne.s32.totalorder %s39, %s41
      %p45 = scmp.eq.s32.totalorder %s31, 0
      %p46 = por %p44, %p45
      %p47 = scmp.ne.s32.totalorder %s39, %s41
      %p48 = scmp.eq.s32.totalorder %s36, 1
      %p49 = por %p47, %p48
      %p50 = scmp.ne.s32.totalorder %s41, %s42
      %p51 = scmp.eq.s32.totalorder %s36, 0
      %p52 = por %p50, %p51
      %p53 = scmp.ne.s32.totalorder %s41, %s42
      %p54 = scmp.eq.s32.totalorder %s37, 1
      %p55 = por %p53, %p54
      %p57 = scmp.ne.s32.totalorder %s42, %s56
      %p58 = scmp.eq.s32.totalorder %s37, 0
      %p59 = por %p57, %p58
      %s61 = sadd.s32 %s60, 1
      %p64 = scmp.eq.s32.totalorder %s31, 1
      %p65 = scmp.ne.s32.totalorder %s60, %s62
      %p66 = scmp.eq.s32.totalorder %s31, 0
      %p67 = por %p65, %p66
      %p68 = scmp.ne.s32.totalorder %s60, %s62
      %p69 = scmp.eq.s32.totalorder %s36, 1
      %p70 = por %p68, %p69
      %p71 = scmp.ne.s32.totalorder %s62, %s63
      %p72 = scmp.eq.s32.totalorder %s36, 0
      %p73 = por %p71, %p72
      %p74 = scmp.ne.s32.totalorder %s62, %s63
      %p75 = scmp.eq.s32.totalorder %s37, 1
      %p76 = por %p74, %p75
      %p78 = scmp.ne.s32.totalorder %s63, %s77
      %p79 = scmp.eq.s32.totalorder %s37, 0
      %p80 = por %p78, %p79
      %s82 = sadd.s32 %s81, 1
      %p85 = scmp.eq.s32.totalorder %s31, 1
      %p86 = scmp.ne.s32.totalorder %s81, %s83
      %p87 = scmp.eq.s32.totalorder %s31, 0
      %p88 = por %p86, %p87
      %p89 = scmp.ne.s32.totalorder %s81, %s83
      %p90 = scmp.eq.s32.totalorder %s36, 1
      %p91 = por %p89, %p90
      %p92 = scmp.ne.s32.totalorder %s83, %s84
      %p93 = scmp.eq.s32.totalorder %s36, 0
      %p94 = por %p92, %p93
      %p95 = scmp.ne.s32.totalorder %s83, %s84
      %p96 = scmp.eq.s32.totalorder %s37, 1
      %p97 = por %p95, %p96
      %p99 = scmp.ne.s32.totalorder %s84, %s98
      %p100 = scmp.eq.s32.totalorder %s37, 0
      %p101 = por %p99, %p100
      %s103 = sadd.s32 %s102, 1
      %p106 = scmp.eq.s32.totalorder %s31, 1
      %p107 = scmp.ne.s32.totalorder %s102, %s104
      %p108 = scmp.eq.s32.totalorder %s31, 0
      %p109 = por %p107, %p108
      %p110 = scmp.ne.s32.totalorder %s102, %s104
      %p111 = scmp.eq.s32.totalorder %s36, 1
      %p112 = por %p110, %p111
      %p113 = scmp.ne.s32.totalorder %s104, %s105
      %p114 = scmp.eq.s32.totalorder %s36, 0
      %p115 = por %p113, %p114
      %p116 = scmp.ne.s32.totalorder %s104, %s105
      %p117 = scmp.eq.s32.totalorder %s37, 1
      %p118 = por %p116, %p117
      %p120 = scmp.ne.s32.totalorder %s105, %s119
      %p121 = scmp.eq.s32.totalorder %s37, 0
      %p122 = por %p120, %p121
      %s124 = sadd.s32 %s123, 1
      %p127 = scmp.eq.s32.totalorder %s31, 1
      %p128 = scmp.ne.s32.totalorder %s123, %s125
      %p129 = scmp.eq.s32.totalorder %s31, 0
      %p130 = por %p128, %p129
      %p131 = scmp.ne.s32.totalorder %s123, %s125
      %p132 = scmp.eq.s32.totalorder %s36, 1
      %p133 = por %p131, %p132
      %p134 = scmp.ne.s32.totalorder %s125, %s126
      %p135 = scmp.eq.s32.totalorder %s36, 0
      %p136 = por %p134, %p135
      %p137 = scmp.ne.s32.totalorder %s125, %s126
      %p138 = scmp.eq.s32.totalorder %s37, 1
      %p139 = por %p137, %p138
      %p141 = scmp.ne.s32.totalorder %s126, %s140
      %p142 = scmp.eq.s32.totalorder %s37, 0
      %p143 = por %p141, %p142
      %s144 = ssub.s32 %s31, %s38
      %p145 = scmp.eq.s32.totalorder %s144, 0
      %s147 = sadd.s32 %s146, 1
      %s148 = scalar_select %p145, %s146, %s147
      %p151 = pneg %p145
      %p152 = scmp.eq.s32.totalorder %s31, 1
      %p153 = por %p151, %p152
      %p154 = scmp.ne.s32.totalorder %s146, %s149
      %p155 = scmp.eq.s32.totalorder %s31, 0
      %p156 = por %p154, %p155
      %p157 = scmp.ne.s32.totalorder %s146, %s149
      %p158 = scmp.eq.s32.totalorder %s36, 1
      %p159 = por %p157, %p158
      %p160 = scmp.ne.s32.totalorder %s149, %s150
      %p161 = scmp.eq.s32.totalorder %s36, 0
      %p162 = por %p160, %p161
      %p163 = scmp.ne.s32.totalorder %s149, %s150
      %p164 = scmp.eq.s32.totalorder %s37, 1
      %p165 = por %p163, %p164
      %p167 = scmp.ne.s32.totalorder %s150, %s166
      %p168 = scmp.eq.s32.totalorder %s37, 0
      %p169 = por %p167, %p168
      %s170 = ssub.s32 %s31, %s38
      %p171 = scmp.eq.s32.totalorder %s170, 0
      %s173 = sadd.s32 %s172, 1
      %s174 = scalar_select %p171, %s172, %s173
      %p177 = pneg %p171
      %p178 = scmp.eq.s32.totalorder %s31, 1
      %p179 = por %p177, %p178
      %p180 = scmp.ne.s32.totalorder %s172, %s175
      %p181 = scmp.eq.s32.totalorder %s31, 0
      %p182 = por %p180, %p181
      %p183 = scmp.ne.s32.totalorder %s172, %s175
      %p184 = scmp.eq.s32.totalorder %s36, 1
      %p185 = por %p183, %p184
      %p186 = scmp.ne.s32.totalorder %s175, %s176
      %p187 = scmp.eq.s32.totalorder %s36, 0
      %p188 = por %p186, %p187
      %p189 = scmp.ne.s32.totalorder %s175, %s176
      %p190 = scmp.eq.s32.totalorder %s37, 1
      %p191 = por %p189, %p190
      %p193 = scmp.ne.s32.totalorder %s176, %s192
      %p194 = scmp.eq.s32.totalorder %s37, 0
      %p195 = por %p193, %p194
      %s196 = ssub.s32 %s31, %s38
      %p197 = scmp.eq.s32.totalorder %s196, 0
      %s199 = sadd.s32 %s198, 1
      %s200 = scalar_select %p197, %s198, %s199
      %p203 = pneg %p197
      %p204 = scmp.eq.s32.totalorder %s31, 1
      %p205 = por %p203, %p204
      %p206 = scmp.ne.s32.totalorder %s198, %s201
      %p207 = scmp.eq.s32.totalorder %s31, 0
      %p208 = por %p206, %p207
      %p209 = scmp.ne.s32.totalorder %s198, %s201
      %p210 = scmp.eq.s32.totalorder %s36, 1
      %p211 = por %p209, %p210
      %p212 = scmp.ne.s32.totalorder %s201, %s202
      %p213 = scmp.eq.s32.totalorder %s36, 0
      %p214 = por %p212, %p213
      %p215 = scmp.ne.s32.totalorder %s201, %s202
      %p216 = scmp.eq.s32.totalorder %s37, 1
      %p217 = por %p215, %p216
      %p219 = scmp.ne.s32.totalorder %s202, %s218
      %p220 = scmp.eq.s32.totalorder %s37, 0
      %p221 = por %p219, %p220
      %s222 = ssub.s32 %s31, %s38
      %p223 = scmp.eq.s32.totalorder %s222, 0
      %s225 = sadd.s32 %s224, 1
      %s226 = scalar_select %p223, %s224, %s225
      %p229 = pneg %p223
      %p230 = scmp.eq.s32.totalorder %s31, 1
      %p231 = por %p229, %p230
      %p232 = scmp.ne.s32.totalorder %s224, %s227
      %p233 = scmp.eq.s32.totalorder %s31, 0
      %p234 = por %p232, %p233
      %p235 = scmp.ne.s32.totalorder %s224, %s227
      %p236 = scmp.eq.s32.totalorder %s36, 1
      %p237 = por %p235, %p236
      %p238 = scmp.ne.s32.totalorder %s227, %s228
      %p239 = scmp.eq.s32.totalorder %s36, 0
      %p240 = por %p238, %p239
      %p241 = scmp.ne.s32.totalorder %s227, %s228
      %p242 = scmp.eq.s32.totalorder %s37, 1
      %p243 = por %p241, %p242
      %p245 = scmp.ne.s32.totalorder %s228, %s244
      %p246 = scmp.eq.s32.totalorder %s37, 0
      %p247 = por %p245, %p246
      %s248 = ssub.s32 %s31, %s38
      %p249 = scmp.eq.s32.totalorder %s248, 0
      %s251 = sadd.s32 %s250, 1
      %s252 = scalar_select %p249, %s250, %s251
      %p255 = pneg %p249
      %p256 = scmp.eq.s32.totalorder %s31, 1
      %p257 = por %p255, %p256
      %p258 = scmp.ne.s32.totalorder %s250, %s253
      %p259 = scmp.eq.s32.totalorder %s31, 0
      %p260 = por %p258, %p259
      %p261 = scmp.ne.s32.totalorder %s250, %s253
      %p262 = scmp.eq.s32.totalorder %s36, 1
      %p263 = por %p261, %p262
      %p264 = scmp.ne.s32.totalorder %s253, %s254
      %p265 = scmp.eq.s32.totalorder %s36, 0
      %p266 = por %p264, %p265
      %p267 = scmp.ne.s32.totalorder %s253, %s254
      %p268 = scmp.eq.s32.totalorder %s37, 1
      %p269 = por %p267, %p268
      %p271 = scmp.ne.s32.totalorder %s254, %s270
      %p272 = scmp.eq.s32.totalorder %s37, 0
      %p273 = por %p271, %p272
      %s274 = ssub.s32 %s31, %s38
      %p275 = scmp.eq.s32.totalorder %s274, 0
      %s277 = sadd.s32 %s276, 1
      %s278 = scalar_select %p275, %s276, %s277
      %p281 = pneg %p275
      %p282 = scmp.eq.s32.totalorder %s31, 1
      %p283 = por %p281, %p282
      %p284 = scmp.ne.s32.totalorder %s276, %s279
      %p285 = scmp.eq.s32.totalorder %s31, 0
      %p286 = por %p284, %p285
      %p287 = scmp.ne.s32.totalorder %s276, %s279
      %p288 = scmp.eq.s32.totalorder %s36, 1
      %p289 = por %p287, %p288
      %p290 = scmp.ne.s32.totalorder %s279, %s280
      %p291 = scmp.eq.s32.totalorder %s36, 0
      %p292 = por %p290, %p291
      %p293 = scmp.ne.s32.totalorder %s279, %s280
      %p294 = scmp.eq.s32.totalorder %s37, 1
      %p295 = por %p293, %p294
      %p297 = scmp.ne.s32.totalorder %s280, %s296
      %p298 = scmp.eq.s32.totalorder %s37, 0
      %p299 = por %p297, %p298
      %s300 = ssub.s32 %s31, %s38
      %p301 = scmp.eq.s32.totalorder %s300, 0
      %s303 = sadd.s32 %s302, 1
      %s304 = scalar_select %p301, %s302, %s303
      %p307 = pneg %p301
      %p308 = scmp.eq.s32.totalorder %s31, 1
      %p309 = por %p307, %p308
      %p310 = scmp.ne.s32.totalorder %s302, %s305
      %p311 = scmp.eq.s32.totalorder %s31, 0
      %p312 = por %p310, %p311
      %p313 = scmp.ne.s32.totalorder %s302, %s305
      %p314 = scmp.eq.s32.totalorder %s36, 1
      %p315 = por %p313, %p314
      %p316 = scmp.ne.s32.totalorder %s305, %s306
      %p317 = scmp.eq.s32.totalorder %s36, 0
      %p318 = por %p316, %p317
      %p319 = scmp.ne.s32.totalorder %s305, %s306
      %p320 = scmp.eq.s32.totalorder %s37, 1
      %p321 = por %p319, %p320
      %p323 = scmp.ne.s32.totalorder %s306, %s322
      %p324 = scmp.eq.s32.totalorder %s37, 0
      %p325 = por %p323, %p324
      %s326 = ssub.s32 %s31, %s38
      %p327 = scmp.eq.s32.totalorder %s326, 0
      %s329 = sadd.s32 %s328, 1
      %s330 = scalar_select %p327, %s328, %s329
      %p333 = pneg %p327
      %p334 = scmp.eq.s32.totalorder %s31, 1
      %p335 = por %p333, %p334
      %p336 = scmp.ne.s32.totalorder %s328, %s331
      %p337 = scmp.eq.s32.totalorder %s31, 0
      %p338 = por %p336, %p337
      %p339 = scmp.ne.s32.totalorder %s328, %s331
      %p340 = scmp.eq.s32.totalorder %s36, 1
      %p341 = por %p339, %p340
      %p342 = scmp.ne.s32.totalorder %s331, %s332
      %p343 = scmp.eq.s32.totalorder %s36, 0
      %p344 = por %p342, %p343
      %p345 = scmp.ne.s32.totalorder %s331, %s332
      %p346 = scmp.eq.s32.totalorder %s37, 1
      %p347 = por %p345, %p346
      %p349 = scmp.ne.s32.totalorder %s332, %s348
      %p350 = scmp.eq.s32.totalorder %s37, 0
      %p351 = por %p349, %p350
      %s352 = ssub.s32 %s31, %s38
      %p353 = scmp.eq.s32.totalorder %s352, 0
      %s355 = sadd.s32 %s354, 1
      %s356 = scalar_select %p353, %s354, %s355
      %p359 = pneg %p353
      %p360 = scmp.eq.s32.totalorder %s31, 1
      %p361 = por %p359, %p360
      %p362 = scmp.ne.s32.totalorder %s354, %s357
      %p363 = scmp.eq.s32.totalorder %s31, 0
      %p364 = por %p362, %p363
      %p365 = scmp.ne.s32.totalorder %s354, %s357
      %p366 = scmp.eq.s32.totalorder %s36, 1
      %p367 = por %p365, %p366
      %p368 = scmp.ne.s32.totalorder %s357, %s358
      %p369 = scmp.eq.s32.totalorder %s36, 0
      %p370 = por %p368, %p369
      %p371 = scmp.ne.s32.totalorder %s357, %s358
      %p372 = scmp.eq.s32.totalorder %s37, 1
      %p373 = por %p371, %p372
      %p375 = scmp.ne.s32.totalorder %s358, %s374
      %p376 = scmp.eq.s32.totalorder %s37, 0
      %p377 = por %p375, %p376
      %s378 = ssub.s32 %s31, %s38
      %p379 = scmp.eq.s32.totalorder %s378, 0
      %s381 = sadd.s32 %s380, 1
      %s382 = scalar_select %p379, %s380, %s381
      %p385 = pneg %p379
      %p386 = scmp.eq.s32.totalorder %s31, 1
      %p387 = por %p385, %p386
      %p388 = scmp.ne.s32.totalorder %s380, %s383
      %p389 = scmp.eq.s32.totalorder %s31, 0
      %p390 = por %p388, %p389
      %p391 = scmp.ne.s32.totalorder %s380, %s383
      %p392 = scmp.eq.s32.totalorder %s36, 1
      %p393 = por %p391, %p392
      %p394 = scmp.ne.s32.totalorder %s383, %s384
      %p395 = scmp.eq.s32.totalorder %s36, 0
      %p396 = por %p394, %p395
      %p397 = scmp.ne.s32.totalorder %s383, %s384
      %p398 = scmp.eq.s32.totalorder %s37, 1
      %p399 = por %p397, %p398
      %p401 = scmp.ne.s32.totalorder %s384, %s400
      %p402 = scmp.eq.s32.totalorder %s37, 0
      %p403 = por %p401, %p402
      %s404 = ssub.s32 %s31, %s38
      %p405 = scmp.eq.s32.totalorder %s404, 0
      %s407 = sadd.s32 %s406, 1
      %s408 = scalar_select %p405, %s406, %s407
      %p411 = pneg %p405
      %p412 = scmp.eq.s32.totalorder %s31, 1
      %p413 = por %p411, %p412
      %p414 = scmp.ne.s32.totalorder %s406, %s409
      %p415 = scmp.eq.s32.totalorder %s31, 0
      %p416 = por %p414, %p415
      %p417 = scmp.ne.s32.totalorder %s406, %s409
      %p418 = scmp.eq.s32.totalorder %s36, 1
      %p419 = por %p417, %p418
      %p420 = scmp.ne.s32.totalorder %s409, %s410
      %p421 = scmp.eq.s32.totalorder %s36, 0
      %p422 = por %p420, %p421
      %p423 = scmp.ne.s32.totalorder %s409, %s410
      %p424 = scmp.eq.s32.totalorder %s37, 1
      %p425 = por %p423, %p424
      %p427 = scmp.ne.s32.totalorder %s410, %s426
      %p428 = scmp.eq.s32.totalorder %s37, 0
      %p429 = por %p427, %p428
      %s430 = ssub.s32 %s31, %s38
      %p431 = scmp.eq.s32.totalorder %s430, 0
      %s433 = sadd.s32 %s432, 1
      %s434 = scalar_select %p431, %s432, %s433
      %p437 = pneg %p431
      %p438 = scmp.eq.s32.totalorder %s31, 1
      %p439 = por %p437, %p438
      %p440 = scmp.ne.s32.totalorder %s432, %s435
      %p441 = scmp.eq.s32.totalorder %s31, 0
      %p442 = por %p440, %p441
      %p443 = scmp.ne.s32.totalorder %s432, %s435
      %p444 = scmp.eq.s32.totalorder %s36, 1
      %p445 = por %p443, %p444
      %p446 = scmp.ne.s32.totalorder %s435, %s436
      %p447 = scmp.eq.s32.totalorder %s36, 0
      %p448 = por %p446, %p447
      %p449 = scmp.ne.s32.totalorder %s435, %s436
      %p450 = scmp.eq.s32.totalorder %s37, 1
      %p451 = por %p449, %p450
      %p453 = scmp.ne.s32.totalorder %s436, %s452
      %p454 = scmp.eq.s32.totalorder %s37, 0
      %p455 = por %p453, %p454
      %s456 = ssub.s32 %s31, %s38
      %p457 = scmp.eq.s32.totalorder %s456, 0
      %s459 = sadd.s32 %s458, 1
      %s460 = scalar_select %p457, %s458, %s459
      %p463 = pneg %p457
      %p464 = scmp.eq.s32.totalorder %s31, 1
      %p465 = por %p463, %p464
      %p466 = scmp.ne.s32.totalorder %s458, %s461
      %p467 = scmp.eq.s32.totalorder %s31, 0
      %p468 = por %p466, %p467
      %p469 = scmp.ne.s32.totalorder %s458, %s461
      %p470 = scmp.eq.s32.totalorder %s36, 1
      %p471 = por %p469, %p470
      %p472 = scmp.ne.s32.totalorder %s461, %s462
      %p473 = scmp.eq.s32.totalorder %s36, 0
      %p474 = por %p472, %p473
      %p475 = scmp.ne.s32.totalorder %s461, %s462
      %p476 = scmp.eq.s32.totalorder %s37, 1
      %p477 = por %p475, %p476
      %p479 = scmp.ne.s32.totalorder %s462, %s478
      %p480 = scmp.eq.s32.totalorder %s37, 0
      %p481 = por %p479, %p480
      %s482 = ssub.s32 %s31, %s38
      %p483 = scmp.eq.s32.totalorder %s482, 0
      %s485 = sadd.s32 %s484, 1
      %s486 = scalar_select %p483, %s484, %s485
      %p489 = pneg %p483
      %p490 = scmp.eq.s32.totalorder %s31, 1
      %p491 = por %p489, %p490
      %p492 = scmp.ne.s32.totalorder %s484, %s487
      %p493 = scmp.eq.s32.totalorder %s31, 0
      %p494 = por %p492, %p493
      %p495 = scmp.ne.s32.totalorder %s484, %s487
      %p496 = scmp.eq.s32.totalorder %s36, 1
      %p497 = por %p495, %p496
      %p498 = scmp.ne.s32.totalorder %s487, %s488
      %p499 = scmp.eq.s32.totalorder %s36, 0
      %p500 = por %p498, %p499
      %p501 = scmp.ne.s32.totalorder %s487, %s488
      %p502 = scmp.eq.s32.totalorder %s37, 1
      %p503 = por %p501, %p502
      %p505 = scmp.ne.s32.totalorder %s488, %s504
      %p506 = scmp.eq.s32.totalorder %s37, 0
      %p507 = por %p505, %p506
      %s508 = ssub.s32 %s31, %s38
      %p509 = scmp.eq.s32.totalorder %s508, 0
      %s511 = sadd.s32 %s510, 1
      %s512 = scalar_select %p509, %s510, %s511
      %p515 = pneg %p509
      %p516 = scmp.eq.s32.totalorder %s31, 1
      %p517 = por %p515, %p516
      %p518 = scmp.ne.s32.totalorder %s510, %s513
      %p519 = scmp.eq.s32.totalorder %s31, 0
      %p520 = por %p518, %p519
      %p521 = scmp.ne.s32.totalorder %s510, %s513
      %p522 = scmp.eq.s32.totalorder %s36, 1
      %p523 = por %p521, %p522
      %p524 = scmp.ne.s32.totalorder %s513, %s514
      %p525 = scmp.eq.s32.totalorder %s36, 0
      %p526 = por %p524, %p525
      %p527 = scmp.ne.s32.totalorder %s513, %s514
      %p528 = scmp.eq.s32.totalorder %s37, 1
      %p529 = por %p527, %p528
      %p531 = scmp.ne.s32.totalorder %s514, %s530
      %p532 = scmp.eq.s32.totalorder %s37, 0
      %p533 = por %p531, %p532
      %s534 = ssub.s32 %s31, %s38
      %p535 = scmp.eq.s32.totalorder %s534, 0
      %s537 = sadd.s32 %s536, 1
      %s538 = scalar_select %p535, %s536, %s537
      %p541 = pneg %p535
      %p542 = scmp.eq.s32.totalorder %s31, 1
      %p543 = por %p541, %p542
      %p544 = scmp.ne.s32.totalorder %s536, %s539
      %p545 = scmp.eq.s32.totalorder %s31, 0
      %p546 = por %p544, %p545
      %p547 = scmp.ne.s32.totalorder %s536, %s539
      %p548 = scmp.eq.s32.totalorder %s36, 1
      %p549 = por %p547, %p548
      %p550 = scmp.ne.s32.totalorder %s539, %s540
      %p551 = scmp.eq.s32.totalorder %s36, 0
      %p552 = por %p550, %p551
      %p553 = scmp.ne.s32.totalorder %s539, %s540
      %p554 = scmp.eq.s32.totalorder %s37, 1
      %p555 = por %p553, %p554
      %p557 = scmp.ne.s32.totalorder %s540, %s556
      %p558 = scmp.eq.s32.totalorder %s37, 0
      %p559 = por %p557, %p558
      %s561 = sadd.s32 %s560, 1
      %p564 = scmp.eq.s32.totalorder %s31, 1
      %p565 = scmp.ne.s32.totalorder %s560, %s562
      %p566 = scmp.eq.s32.totalorder %s31, 0
      %p567 = por %p565, %p566
      %p568 = scmp.ne.s32.totalorder %s560, %s562
      %p569 = scmp.eq.s32.totalorder %s36, 1
      %p570 = por %p568, %p569
      %p571 = scmp.ne.s32.totalorder %s562, %s563
      %p572 = scmp.eq.s32.totalorder %s36, 0
      %p573 = por %p571, %p572
      %p574 = scmp.ne.s32.totalorder %s562, %s563
      %p575 = scmp.eq.s32.totalorder %s37, 1
      %p576 = por %p574, %p575
      %p578 = scmp.ne.s32.totalorder %s563, %s577
      %p579 = scmp.eq.s32.totalorder %s37, 0
      %p580 = por %p578, %p579
      %s582 = sadd.s32 %s581, 1
      %p585 = scmp.eq.s32.totalorder %s31, 1
      %p586 = scmp.ne.s32.totalorder %s581, %s583
      %p587 = scmp.eq.s32.totalorder %s31, 0
      %p588 = por %p586, %p587
      %p589 = scmp.ne.s32.totalorder %s581, %s583
      %p590 = scmp.eq.s32.totalorder %s36, 1
      %p591 = por %p589, %p590
      %p592 = scmp.ne.s32.totalorder %s583, %s584
      %p593 = scmp.eq.s32.totalorder %s36, 0
      %p594 = por %p592, %p593
      %p595 = scmp.ne.s32.totalorder %s583, %s584
      %p596 = scmp.eq.s32.totalorder %s37, 1
      %p597 = por %p595, %p596
      %p599 = scmp.ne.s32.totalorder %s584, %s598
      %p600 = scmp.eq.s32.totalorder %s37, 0
      %p601 = por %p599, %p600
      %s603 = sadd.s32 %s602, 1
      %p606 = scmp.eq.s32.totalorder %s31, 1
      %p607 = scmp.ne.s32.totalorder %s602, %s604
      %p608 = scmp.eq.s32.totalorder %s31, 0
      %p609 = por %p607, %p608
      %p610 = scmp.ne.s32.totalorder %s602, %s604
      %p611 = scmp.eq.s32.totalorder %s36, 1
      %p612 = por %p610, %p611
      %p613 = scmp.ne.s32.totalorder %s604, %s605
      %p614 = scmp.eq.s32.totalorder %s36, 0
      %p615 = por %p613, %p614
      %p616 = scmp.ne.s32.totalorder %s604, %s605
      %p617 = scmp.eq.s32.totalorder %s37, 1
      %p618 = por %p616, %p617
      %p620 = scmp.ne.s32.totalorder %s605, %s619
      %p621 = scmp.eq.s32.totalorder %s37, 0
      %p622 = por %p620, %p621
      %s624 = sadd.s32 %s623, 1
      %p627 = scmp.eq.s32.totalorder %s31, 1
      %p628 = scmp.ne.s32.totalorder %s623, %s625
      %p629 = scmp.eq.s32.totalorder %s31, 0
      %p630 = por %p628, %p629
      %p631 = scmp.ne.s32.totalorder %s623, %s625
      %p632 = scmp.eq.s32.totalorder %s36, 1
      %p633 = por %p631, %p632
      %p634 = scmp.ne.s32.totalorder %s625, %s626
      %p635 = scmp.eq.s32.totalorder %s36, 0
      %p636 = por %p634, %p635
      %p637 = scmp.ne.s32.totalorder %s625, %s626
      %p638 = scmp.eq.s32.totalorder %s37, 1
      %p639 = por %p637, %p638
      %p641 = scmp.ne.s32.totalorder %s626, %s640
      %p642 = scmp.eq.s32.totalorder %s37, 0
      %p643 = por %p641, %p642
      %p644 = scmp.le.s32.totalorder 1, %s31
      %p645 = scmp.lt.s32.totalorder %s31, 3
      %p646 = pnand %p644, %p645
      %p647 = pneg %p646
      // Predicated region
      $region9: #{imagebind_vision.1} parent=5 // pred_check
        _
      $region10: #{imagebind_vision.1} parent=5 // pred_check_branch
        %649 = sbr.rel (%p646) target = $region12
      $region11: #{imagebind_vision.1} parent=5 // pred_region
        %s650 = ssub.s32 %s31, 1
        // Predicated region
        $region13: #{imagebind_vision.1} parent=11 // pred_check
          %p651 = pneg %p52
        $region14: #{imagebind_vision.1} parent=11 // pred_check_branch
          %653 = sbr.rel (%p651) target = $region16
        $region15: #{imagebind_vision.1} parent=11 // pred_region
          _
        $region16: #{imagebind_vision.1} parent=11 // pred_fallthru
          _
        // Predicated region
        $region17: #{imagebind_vision.1} parent=11 // pred_check
          %p654 = pneg %p73
        $region18: #{imagebind_vision.1} parent=11 // pred_check_branch
          %656 = sbr.rel (%p654) target = $region20
        $region19: #{imagebind_vision.1} parent=11 // pred_region
          _
        $region20: #{imagebind_vision.1} parent=11 // pred_fallthru
          _
        // Predicated region
        $region21: #{imagebind_vision.1} parent=11 // pred_check
          %p657 = pneg %p94
        $region22: #{imagebind_vision.1} parent=11 // pred_check_branch
          %659 = sbr.rel (%p657) target = $region24
        $region23: #{imagebind_vision.1} parent=11 // pred_region
          _
        $region24: #{imagebind_vision.1} parent=11 // pred_fallthru
          _
        // Predicated region
        $region25: #{imagebind_vision.1} parent=11 // pred_check
          %p660 = pneg %p115
        $region26: #{imagebind_vision.1} parent=11 // pred_check_branch
          %662 = sbr.rel (%p660) target = $region28
        $region27: #{imagebind_vision.1} parent=11 // pred_region
          _
        $region28: #{imagebind_vision.1} parent=11 // pred_fallthru
          _
        // Predicated region
        $region29: #{imagebind_vision.1} parent=11 // pred_check
          %p663 = pneg %p136
        $region30: #{imagebind_vision.1} parent=11 // pred_check_branch
          %665 = sbr.rel (%p663) target = $region32
        $region31: #{imagebind_vision.1} parent=11 // pred_region
          _
        $region32: #{imagebind_vision.1} parent=11 // pred_fallthru
          _
        // Predicated region
        $region33: #{imagebind_vision.1} parent=11 // pred_check
          %p666 = pneg %p573
        $region34: #{imagebind_vision.1} parent=11 // pred_check_branch
          %668 = sbr.rel (%p666) target = $region36
        $region35: #{imagebind_vision.1} parent=11 // pred_region
          _
        $region36: #{imagebind_vision.1} parent=11 // pred_fallthru
          _
        // Predicated region
        $region37: #{imagebind_vision.1} parent=11 // pred_check
          %p669 = pneg %p594
        $region38: #{imagebind_vision.1} parent=11 // pred_check_branch
          %671 = sbr.rel (%p669) target = $region40
        $region39: #{imagebind_vision.1} parent=11 // pred_region
          _
        $region40: #{imagebind_vision.1} parent=11 // pred_fallthru
          _
        // Predicated region
        $region41: #{imagebind_vision.1} parent=11 // pred_check
          %p672 = pneg %p615
        $region42: #{imagebind_vision.1} parent=11 // pred_check_branch
          %674 = sbr.rel (%p672) target = $region44
        $region43: #{imagebind_vision.1} parent=11 // pred_region
          _
        $region44: #{imagebind_vision.1} parent=11 // pred_fallthru
          _
      $region12: #{imagebind_vision.1} parent=5 // pred_fallthru
        _
      %p675 = scmp.lt.s32.totalorder %s31, 2
      // Predicated region
      $region45: #{imagebind_vision.1} parent=5 // pred_check
        %p676 = pneg %p675
      $region46: #{imagebind_vision.1} parent=5 // pred_check_branch
        %678 = sbr.rel (%p676) target = $region48
      $region47: #{imagebind_vision.1} parent=5 // pred_region
        // Predicated region
        $region49: #{imagebind_vision.1} parent=47 // pred_check
          %p679 = pneg %p156
        $region50: #{imagebind_vision.1} parent=47 // pred_check_branch
          %681 = sbr.rel (%p679) target = $region52
        $region51: #{imagebind_vision.1} parent=47 // pred_region
          %p682 = scmp.lt.s32.totalorder %s31, 1
          %s683 = scalar_select %p682, %s31, 1
          %s684 = scalar_lea.vmem %s5, %s683
        $region52: #{imagebind_vision.1} parent=47 // pred_fallthru
          _
        // Predicated region
        $region53: #{imagebind_vision.1} parent=47 // pred_check
          %p685 = pneg %p182
        $region54: #{imagebind_vision.1} parent=47 // pred_check_branch
          %687 = sbr.rel (%p685) target = $region56
        $region55: #{imagebind_vision.1} parent=47 // pred_region
          %p688 = scmp.lt.s32.totalorder %s31, 1
          %s689 = scalar_select %p688, %s31, 1
          %s690 = scalar_lea.vmem %s6, %s689
        $region56: #{imagebind_vision.1} parent=47 // pred_fallthru
          _
        // Predicated region
        $region57: #{imagebind_vision.1} parent=47 // pred_check
          %p691 = pneg %p208
        $region58: #{imagebind_vision.1} parent=47 // pred_check_branch
          %693 = sbr.rel (%p691) target = $region60
        $region59: #{imagebind_vision.1} parent=47 // pred_region
          %p694 = scmp.lt.s32.totalorder %s31, 1
          %s695 = scalar_select %p694, %s31, 1
          %s696 = smul.addr %s695, 4
          %s697 = smul.addr %s696, 4
          %s698 = scalar_lea.vmem %s7, %s697
        $region60: #{imagebind_vision.1} parent=47 // pred_fallthru
          _
        // Predicated region
        $region61: #{imagebind_vision.1} parent=47 // pred_check
          %p699 = pneg %p234
        $region62: #{imagebind_vision.1} parent=47 // pred_check_branch
          %701 = sbr.rel (%p699) target = $region64
        $region63: #{imagebind_vision.1} parent=47 // pred_region
          %p702 = scmp.lt.s32.totalorder %s31, 1
          %s703 = scalar_select %p702, %s31, 1
          %s704 = smul.addr %s703, 4
          %s705 = smul.addr %s704, 4
          %s706 = scalar_lea.vmem %s8, %s705
        $region64: #{imagebind_vision.1} parent=47 // pred_fallthru
          _
        // Predicated region
        $region65: #{imagebind_vision.1} parent=47 // pred_check
          %p707 = pneg %p260
        $region66: #{imagebind_vision.1} parent=47 // pred_check_branch
          %709 = sbr.rel (%p707) target = $region68
        $region67: #{imagebind_vision.1} parent=47 // pred_region
          %p710 = scmp.lt.s32.totalorder %s31, 1
          %s711 = scalar_select %p710, %s31, 1
          %s712 = smul.addr %s711, 4
          %s713 = smul.addr %s712, 4
          %s714 = scalar_lea.vmem %s9, %s713
        $region68: #{imagebind_vision.1} parent=47 // pred_fallthru
          _
        // Predicated region
        $region69: #{imagebind_vision.1} parent=47 // pred_check
          %p715 = pneg %p286
        $region70: #{imagebind_vision.1} parent=47 // pred_check_branch
          %717 = sbr.rel (%p715) target = $region72
        $region71: #{imagebind_vision.1} parent=47 // pred_region
          %p718 = scmp.lt.s32.totalorder %s31, 1
          %s719 = scalar_select %p718, %s31, 1
          %s720 = smul.addr %s719, 4
          %s721 = scalar_lea.vmem %s10, %s720
        $region72: #{imagebind_vision.1} parent=47 // pred_fallthru
          _
        // Predicated region
        $region73: #{imagebind_vision.1} parent=47 // pred_check
          %p722 = pneg %p312
        $region74: #{imagebind_vision.1} parent=47 // pred_check_branch
          %724 = sbr.rel (%p722) target = $region76
        $region75: #{imagebind_vision.1} parent=47 // pred_region
          %p725 = scmp.lt.s32.totalorder %s31, 1
          %s726 = scalar_select %p725, %s31, 1
          %s727 = smul.addr %s726, 4
          %s728 = scalar_lea.vmem %s11, %s727
        $region76: #{imagebind_vision.1} parent=47 // pred_fallthru
          _
        // Predicated region
        $region77: #{imagebind_vision.1} parent=47 // pred_check
          %p729 = pneg %p338
        $region78: #{imagebind_vision.1} parent=47 // pred_check_branch
          %731 = sbr.rel (%p729) target = $region80
        $region79: #{imagebind_vision.1} parent=47 // pred_region
          %p732 = scmp.lt.s32.totalorder %s31, 1
          %s733 = scalar_select %p732, %s31, 1
          %s734 = smul.addr %s733, 4
          %s735 = scalar_lea.vmem %s12, %s734
        $region80: #{imagebind_vision.1} parent=47 // pred_fallthru
          _
        // Predicated region
        $region81: #{imagebind_vision.1} parent=47 // pred_check
          %p736 = pneg %p364
        $region82: #{imagebind_vision.1} parent=47 // pred_check_branch
          %738 = sbr.rel (%p736) target = $region84
        $region83: #{imagebind_vision.1} parent=47 // pred_region
          %p739 = scmp.lt.s32.totalorder %s31, 1
          %s740 = scalar_select %p739, %s31, 1
          %s741 = smul.addr %s740, 4
          %s742 = smul.addr %s741, 4
          %s743 = scalar_lea.vmem %s13, %s742
        $region84: #{imagebind_vision.1} parent=47 // pred_fallthru
          _
        // Predicated region
        $region85: #{imagebind_vision.1} parent=47 // pred_check
          %p744 = pneg %p390
        $region86: #{imagebind_vision.1} parent=47 // pred_check_branch
          %746 = sbr.rel (%p744) target = $region88
        $region87: #{imagebind_vision.1} parent=47 // pred_region
          %p747 = scmp.lt.s32.totalorder %s31, 1
          %s748 = scalar_select %p747, %s31, 1
          %s749 = scalar_lea.vmem %s14, %s748
        $region88: #{imagebind_vision.1} parent=47 // pred_fallthru
          _
        // Predicated region
        $region89: #{imagebind_vision.1} parent=47 // pred_check
          %p750 = pneg %p416
        $region90: #{imagebind_vision.1} parent=47 // pred_check_branch
          %752 = sbr.rel (%p750) target = $region92
        $region91: #{imagebind_vision.1} parent=47 // pred_region
          %p753 = scmp.lt.s32.totalorder %s31, 1
          %s754 = scalar_select %p753, %s31, 1
          %s755 = scalar_lea.vmem %s15, %s754
        $region92: #{imagebind_vision.1} parent=47 // pred_fallthru
          _
        // Predicated region
        $region93: #{imagebind_vision.1} parent=47 // pred_check
          %p756 = pneg %p442
        $region94: #{imagebind_vision.1} parent=47 // pred_check_branch
          %758 = sbr.rel (%p756) target = $region96
        $region95: #{imagebind_vision.1} parent=47 // pred_region
          %p759 = scmp.lt.s32.totalorder %s31, 1
          %s760 = scalar_select %p759, %s31, 1
          %s761 = scalar_lea.vmem %s16, %s760
        $region96: #{imagebind_vision.1} parent=47 // pred_fallthru
          _
        // Predicated region
        $region97: #{imagebind_vision.1} parent=47 // pred_check
          %p762 = pneg %p468
        $region98: #{imagebind_vision.1} parent=47 // pred_check_branch
          %764 = sbr.rel (%p762) target = $region100
        $region99: #{imagebind_vision.1} parent=47 // pred_region
          %p765 = scmp.lt.s32.totalorder %s31, 1
          %s766 = scalar_select %p765, %s31, 1
          %s767 = smul.addr %s766, 4
          %s768 = smul.addr %s767, 4
          %s769 = scalar_lea.vmem %s17, %s768
        $region100: #{imagebind_vision.1} parent=47 // pred_fallthru
          _
        // Predicated region
        $region101: #{imagebind_vision.1} parent=47 // pred_check
          %p770 = pneg %p494
        $region102: #{imagebind_vision.1} parent=47 // pred_check_branch
          %772 = sbr.rel (%p770) target = $region104
        $region103: #{imagebind_vision.1} parent=47 // pred_region
          %p773 = scmp.lt.s32.totalorder %s31, 1
          %s774 = scalar_select %p773, %s31, 1
          %s775 = scalar_lea.vmem %s18, %s774
        $region104: #{imagebind_vision.1} parent=47 // pred_fallthru
          _
        // Predicated region
        $region105: #{imagebind_vision.1} parent=47 // pred_check
          %p776 = pneg %p520
        $region106: #{imagebind_vision.1} parent=47 // pred_check_branch
          %778 = sbr.rel (%p776) target = $region108
        $region107: #{imagebind_vision.1} parent=47 // pred_region
          %p779 = scmp.lt.s32.totalorder %s31, 1
          %s780 = scalar_select %p779, %s31, 1
          %s781 = smul.addr %s780, 16
          %s782 = smul.addr %s781, 4
          %s783 = scalar_lea.vmem %s19, %s782
        $region108: #{imagebind_vision.1} parent=47 // pred_fallthru
          _
        // Predicated region
        $region109: #{imagebind_vision.1} parent=47 // pred_check
          %p784 = pneg %p546
        $region110: #{imagebind_vision.1} parent=47 // pred_check_branch
          %786 = sbr.rel (%p784) target = $region112
        $region111: #{imagebind_vision.1} parent=47 // pred_region
          %p787 = scmp.lt.s32.totalorder %s31, 1
          %s788 = scalar_select %p787, %s31, 1
          %s789 = scalar_lea.vmem %s20, %s788
        $region112: #{imagebind_vision.1} parent=47 // pred_fallthru
          _
      $region48: #{imagebind_vision.1} parent=5 // pred_fallthru
        _
      %p790 = scmp.le.s32.totalorder 1, %s31
      %p791 = scmp.lt.s32.totalorder %s31, 3
      %p792 = pnand %p790, %p791
      %p793 = pneg %p792
      // Predicated region
      $region113: #{imagebind_vision.1} parent=5 // pred_check
        _
      $region114: #{imagebind_vision.1} parent=5 // pred_check_branch
        %795 = sbr.rel (%p792) target = $region116
      $region115: #{imagebind_vision.1} parent=5 // pred_region
        %s796 = ssub.s32 %s31, 1
        %p797 = pneg %p52
        %p798 = pneg %p49
        %p799 = pneg %p73
        %p800 = pneg %p70
        %p801 = pneg %p94
        %p802 = pneg %p91
        %p803 = pneg %p115
        %p804 = pneg %p112
        %p805 = pneg %p136
        %p806 = pneg %p133
        %p807 = scmp.lt.s32.totalorder %s36, 1
        %s808 = scalar_select %p807, %s36, 1
        %s809 = scalar_lea.vmem %s5, %s808
        %p810 = pneg %p162
        %p811 = pneg %p159
        %p812 = scmp.lt.s32.totalorder %s36, 1
        %s813 = scalar_select %p812, %s36, 1
        %s814 = scalar_lea.vmem %s6, %s813
        %p815 = pneg %p188
        %p816 = pneg %p185
        %p817 = scmp.lt.s32.totalorder %s36, 1
        %s818 = scalar_select %p817, %s36, 1
        %s819 = smul.addr %s818, 4
        %s820 = smul.addr %s819, 4
        %s821 = scalar_lea.vmem %s7, %s820
        %p822 = pneg %p214
        %p823 = pneg %p211
        %p824 = scmp.lt.s32.totalorder %s36, 1
        %s825 = scalar_select %p824, %s36, 1
        %s826 = smul.addr %s825, 4
        %s827 = smul.addr %s826, 4
        %s828 = scalar_lea.vmem %s8, %s827
        %p829 = pneg %p240
        %p830 = pneg %p237
        %p831 = scmp.lt.s32.totalorder %s36, 1
        %s832 = scalar_select %p831, %s36, 1
        %s833 = smul.addr %s832, 4
        %s834 = smul.addr %s833, 4
        %s835 = scalar_lea.vmem %s9, %s834
        %p836 = pneg %p266
        %p837 = pneg %p263
        %p838 = scmp.lt.s32.totalorder %s36, 1
        %s839 = scalar_select %p838, %s36, 1
        %s840 = smul.addr %s839, 4
        %s841 = scalar_lea.vmem %s10, %s840
        %p842 = pneg %p292
        %p843 = pneg %p289
        %p844 = scmp.lt.s32.totalorder %s36, 1
        %s845 = scalar_select %p844, %s36, 1
        %s846 = smul.addr %s845, 4
        %s847 = scalar_lea.vmem %s11, %s846
        %p848 = pneg %p318
        %p849 = pneg %p315
        %p850 = scmp.lt.s32.totalorder %s36, 1
        %s851 = scalar_select %p850, %s36, 1
        %s852 = smul.addr %s851, 4
        %s853 = scalar_lea.vmem %s12, %s852
        %p854 = pneg %p344
        %p855 = pneg %p341
        %p856 = scmp.lt.s32.totalorder %s36, 1
        %s857 = scalar_select %p856, %s36, 1
        %s858 = smul.addr %s857, 4
        %s859 = smul.addr %s858, 4
        %s860 = scalar_lea.vmem %s13, %s859
        %p861 = pneg %p370
        %p862 = pneg %p367
        %p863 = scmp.lt.s32.totalorder %s36, 1
        %s864 = scalar_select %p863, %s36, 1
        %s865 = scalar_lea.vmem %s14, %s864
        %p866 = pneg %p396
        %p867 = pneg %p393
        %p868 = scmp.lt.s32.totalorder %s36, 1
        %s869 = scalar_select %p868, %s36, 1
        %s870 = scalar_lea.vmem %s15, %s869
        %p871 = pneg %p422
        %p872 = pneg %p419
        %p873 = scmp.lt.s32.totalorder %s36, 1
        %s874 = scalar_select %p873, %s36, 1
        %s875 = scalar_lea.vmem %s16, %s874
        %p876 = pneg %p448
        %p877 = pneg %p445
        %p878 = scmp.lt.s32.totalorder %s36, 1
        %s879 = scalar_select %p878, %s36, 1
        %s880 = smul.addr %s879, 4
        %s881 = smul.addr %s880, 4
        %s882 = scalar_lea.vmem %s17, %s881
        %p883 = pneg %p474
        %p884 = pneg %p471
        %p885 = scmp.lt.s32.totalorder %s36, 1
        %s886 = scalar_select %p885, %s36, 1
        %s887 = scalar_lea.vmem %s18, %s886
        %p888 = pneg %p500
        %p889 = pneg %p497
        %p890 = scmp.lt.s32.totalorder %s36, 1
        %s891 = scalar_select %p890, %s36, 1
        %s892 = smul.addr %s891, 16
        %s893 = smul.addr %s892, 4
        %s894 = scalar_lea.vmem %s19, %s893
        %p895 = pneg %p526
        %p896 = pneg %p523
        %p897 = scmp.lt.s32.totalorder %s36, 1
        %s898 = scalar_select %p897, %s36, 1
        %s899 = scalar_lea.vmem %s20, %s898
        %p900 = pneg %p552
        %p901 = pneg %p549
        %p902 = pneg %p573
        %p903 = pneg %p570
        %p904 = pneg %p594
        %p905 = pneg %p591
        %p906 = pneg %p615
        %p907 = pneg %p612
        %p908 = pneg %p636
        %p909 = pneg %p633
        %p910 = scmp.lt.s32.totalorder %s36, 1
        %s911 = scalar_select %p910, %s36, 1
        %s912 = scalar_lea.vmem %s5, %s911
        %p913 = scmp.lt.s32.totalorder %s36, 1
        %s914 = scalar_select %p913, %s36, 1
        %s915 = scalar_lea.vmem %s6, %s914
        %p916 = scmp.lt.s32.totalorder %s36, 1
        %s917 = scalar_select %p916, %s36, 1
        %s918 = smul.addr %s917, 4
        %s919 = smul.addr %s918, 4
        %s920 = scalar_lea.vmem %s7, %s919
        %p921 = scmp.lt.s32.totalorder %s36, 1
        %s922 = scalar_select %p921, %s36, 1
        %s923 = smul.addr %s922, 4
        %s924 = smul.addr %s923, 4
        %s925 = scalar_lea.vmem %s8, %s924
        %p926 = scmp.lt.s32.totalorder %s36, 1
        %s927 = scalar_select %p926, %s36, 1
        %s928 = smul.addr %s927, 4
        %s929 = smul.addr %s928, 4
        %s930 = scalar_lea.vmem %s9, %s929
        %p931 = scmp.lt.s32.totalorder %s36, 1
        %s932 = scalar_select %p931, %s36, 1
        %s933 = smul.addr %s932, 4
        %s934 = scalar_lea.vmem %s10, %s933
        %p935 = scmp.lt.s32.totalorder %s36, 1
        %s936 = scalar_select %p935, %s36, 1
        %s937 = smul.addr %s936, 4
        %s938 = scalar_lea.vmem %s11, %s937
        %p939 = scmp.lt.s32.totalorder %s36, 1
        %s940 = scalar_select %p939, %s36, 1
        %s941 = smul.addr %s940, 4
        %s942 = scalar_lea.vmem %s12, %s941
        %p943 = scmp.lt.s32.totalorder %s36, 1
        %s944 = scalar_select %p943, %s36, 1
        %s945 = smul.addr %s944, 4
        %s946 = smul.addr %s945, 4
        %s947 = scalar_lea.vmem %s13, %s946
        %p948 = scmp.lt.s32.totalorder %s36, 1
        %s949 = scalar_select %p948, %s36, 1
        %s950 = scalar_lea.vmem %s14, %s949
        %p951 = scmp.lt.s32.totalorder %s36, 1
        %s952 = scalar_select %p951, %s36, 1
        %s953 = scalar_lea.vmem %s15, %s952
        %p954 = scmp.lt.s32.totalorder %s36, 1
        %s955 = scalar_select %p954, %s36, 1
        %s956 = scalar_lea.vmem %s16, %s955
        %p957 = scmp.lt.s32.totalorder %s36, 1
        %s958 = scalar_select %p957, %s36, 1
        %s959 = smul.addr %s958, 4
        %s960 = smul.addr %s959, 4
        %s961 = scalar_lea.vmem %s17, %s960
        %p962 = scmp.lt.s32.totalorder %s36, 1
        %s963 = scalar_select %p962, %s36, 1
        %s964 = scalar_lea.vmem %s18, %s963
        %p965 = scmp.lt.s32.totalorder %s36, 1
        %s966 = scalar_select %p965, %s36, 1
        %s967 = smul.addr %s966, 16
        %s968 = smul.addr %s967, 4
        %s969 = scalar_lea.vmem %s19, %s968
        %p970 = scmp.lt.s32.totalorder %s36, 1
        %s971 = scalar_select %p970, %s36, 1
        %s972 = scalar_lea.vmem %s20, %s971
        %p974 = scmp.eq.s32.totalorder %s36, 0
        // Predicated region
        $region117: #{imagebind_vision.1} parent=115 // pred_check
          %p975 = pneg %p974
        $region118: #{imagebind_vision.1} parent=115 // pred_check_branch
          %977 = sbr.rel (%p975) target = $region120
        $region119: #{imagebind_vision.1} parent=115 // pred_region
          %v978 = vld [vmem:[%s0] sm:$0xff]
          %v979 = vld [vmem:[%s0 + $0x8] sm:$0xff]
          %v980 = vpack.c.bf16 %v978, %v978
          %v981 = vpack.c.bf16 %v979, %v979
          %v982 = vld [vmem:[%s1] sm:$0xf]
          %v983 = vld [vmem:[%s1 + $0x4] sm:$0xf]
          %v984 = vld [vmem:[%s1 + $0x8] sm:$0xf]
          %v985 = vld [vmem:[%s1 + $0xc] sm:$0xf]
          %v986 = vld [vmem:[%s1 + $0x10] sm:$0xf]
          %v987 = vld [vmem:[%s1 + $0x14] sm:$0xf]
          %v988 = vld [vmem:[%s1 + $0x18] sm:$0xf]
          %v989 = vld [vmem:[%s1 + $0x1c] sm:$0xf]
          %v990 = vld [vmem:[%s1 + $0x20] sm:$0xf]
          %v991 = vld [vmem:[%s1 + $0x24] sm:$0xf]
          %v992 = vld [vmem:[%s1 + $0x28] sm:$0xf]
          %v993 = vld [vmem:[%s1 + $0x2c] sm:$0xf]
          %v994 = vld [vmem:[%s1 + $0x30] sm:$0xf]
          %v995 = vld [vmem:[%s1 + $0x34] sm:$0xf]
          %v996 = vld [vmem:[%s1 + $0x38] sm:$0xf]
          %v997 = vld [vmem:[%s1 + $0x3c] sm:$0xf]
          %v998 = vld [vmem:[%s1 + $0x40] sm:$0xf]
          %v999 = vld [vmem:[%s1 + $0x44] sm:$0xf]
          %v1000 = vld [vmem:[%s1 + $0x48] sm:$0xf]
          %v1001 = vld [vmem:[%s1 + $0x4c] sm:$0xf]
          %v1002 = vld [vmem:[%s1 + $0x50] sm:$0xf]
          %v1003 = vld [vmem:[%s1 + $0x54] sm:$0xf]
          %v1004 = vld [vmem:[%s1 + $0x58] sm:$0xf]
          %v1005 = vld [vmem:[%s1 + $0x5c] sm:$0xf]
          %v1006 = vld [vmem:[%s2] sm:$0x1]
          %v1008 = vlaneseq
          %v1009 = vshrl.u32 %v1008, 7
          %v1010 = vsub.s32 0, %v1009
          %v1011 = vrot.slane %v1006, %v1010
          %v1037 = vunpack.c.l.b16 %v982
          %v1038 = vunpack.c.l.b16 %v983
          %v1039 = vunpack.c.l.b16 %v984
          %v1040 = vunpack.c.l.b16 %v985
          %v1041 = vunpack.c.l.b16 %v986
          %v1042 = vunpack.c.l.b16 %v987
          %v1043 = vunpack.c.l.b16 %v988
          %v1044 = vunpack.c.l.b16 %v989
          %v1045 = vunpack.c.l.b16 %v990
          %v1046 = vunpack.c.l.b16 %v991
          %v1047 = vunpack.c.l.b16 %v992
          %v1048 = vunpack.c.l.b16 %v993
          %v1049 = vunpack.c.l.b16 %v994
          %v1050 = vunpack.c.l.b16 %v995
          %v1051 = vunpack.c.l.b16 %v996
          %v1052 = vunpack.c.l.b16 %v997
          %v1053 = vunpack.c.l.b16 %v998
          %v1054 = vunpack.c.l.b16 %v999
          %v1055 = vunpack.c.l.b16 %v1000
          %v1056 = vunpack.c.l.b16 %v1001
          %v1057 = vunpack.c.l.b16 %v1002
          %v1058 = vunpack.c.l.b16 %v1003
          %v1059 = vunpack.c.l.b16 %v1004
          %v1060 = vunpack.c.l.b16 %v1005
          %v1061 = vpack.c.b16 %v1038, %v1037
          %v1062 = vpack.c.b16 %v1040, %v1039
          %v1063 = vpack.c.b16 %v1042, %v1041
          %v1064 = vpack.c.b16 %v1044, %v1043
          %v1065 = vpack.c.b16 %v1046, %v1045
          %v1066 = vpack.c.b16 %v1048, %v1047
          %v1067 = vpack.c.b16 %v1050, %v1049
          %v1068 = vpack.c.b16 %v1052, %v1051
          %v1069 = vpack.c.b16 %v1054, %v1053
          %v1070 = vpack.c.b16 %v1056, %v1055
          %v1071 = vpack.c.b16 %v1058, %v1057
          %v1072 = vpack.c.b16 %v1060, %v1059
          %vm1085 = vcmask 523264
          %v1087 = vsel %vm1085, %v981, 0
          %1089 = vmatprep.subr.bf16.mxu0 0
          %1090 = vmatpush1.bf16.msra.mxu0 %v1061
          %1091 = vmatprep.subr.bf16.mxu0 0
          %1092 = vmatpush1.bf16.msra.mxu0 %v1062
          %1093 = vmatprep.subr.bf16.mxu0 0
          %1094 = vmatpush1.bf16.msra.mxu0 %v1063
          %1095 = vmatprep.subr.bf16.mxu0 0
          %1096 = vmatpush1.bf16.msra.mxu0 %v1064
          %1097 = vmatprep.subr.bf16.mxu0 0
          %1098 = vmatpush1.bf16.msra.mxu0 %v1065
          %1099 = vmatprep.subr.bf16.mxu0 0
          %1100 = vmatpush1.bf16.msra.mxu0 %v1066
          %1101 = vmatprep.subr.bf16.mxu0 0
          %1102 = vmatpush1.bf16.msra.mxu0 %v1067
          %1103 = vmatprep.subr.bf16.mxu0 0
          %1104 = vmatpush1.bf16.msra.mxu0 %v1068
          %1105 = vmatprep.subr.bf16.mxu0 0
          %1106 = vmatpush1.bf16.msra.mxu0 %v1069
          %1107 = vmatprep.subr.bf16.mxu0 0
          %1108 = vmatpush1.bf16.msra.mxu0 %v1070
          %1109 = vmatprep.subr.bf16.mxu0 0
          %1110 = vmatpush1.bf16.msra.mxu0 %v1071
          %1111 = vmatprep.subr.bf16.mxu0 0
          %1112 = vmatpush1.bf16.msra.mxu0 %v1072
          %1113 = vmatprep.subr.bf16.mxu0 0
          %1114 = vmatpush1.bf16.msra.mxu0 0
          %1115 = vmatprep.subr.bf16.mxu0 0
          %1116 = vmatpush1.bf16.msra.mxu0 0
          %1117 = vmatprep.subr.bf16.mxu0 0
          %1118 = vmatpush1.bf16.msra.mxu0 0
          %1119 = vmatprep.subr.bf16.mxu0 0
          %1120 = vmatpush1.bf16.msra.mxu0 0
          %1121 = vmatprep.mubr.bf16.mxu0 %v1087
          %1122 = vmatmul.mubr.bf16.gmra.mrb[0].mxu0 %v980
          %v1123 = vpop.f32.mrb[0].mxu0
          %v1124 = vadd.f32 %v1011, %v1123
          %v1125 = vpop.f32.mrb[0].mxu0
          %v1126 = vpop.f32.mrb[0].mxu0
          %v1127 = vpop.f32.mrb[0].mxu0
          %1128 = vdwg.mxu0
          %v1129 = vld [vmem:[%s3] sm:$0x1]
          %v1130 = vld [vmem:[%s4] sm:$0x1]
          %v1131 = vadd.f32 %v1129, %v1130
          %vm1132 = vcmask 253952
          %1133 = vst.msk [vmem:[#allocation2] sm:$0x1] %vm1132, %v1131
          %v1134 = vld [vmem:[%s4 + $0x1] sm:$0xf]
          %v1135 = vadd.f32 %v1124, %v1134
          %vm1136 = vcmask 257024
          %1137 = vst.msk [vmem:[#allocation2 + $0x1] sm:$0xf] %vm1136, %v1135
          %v1138 = vld [vmem:[%s3] sm:$0x1]
          %v1139 = vld [vmem:[%s4] sm:$0x1]
          %v1140 = vadd.f32 %v1138, %v1139
          %1141 = vst.msk [vmem:[#allocation2 + $0x5] sm:$0x1] %vm1132, %v1140
          %v1142 = vld [vmem:[%s4 + $0x1] sm:$0xf]
          %v1144 = vrot.slane %v1142, 4
          %v1146 = vadd.f32 %v1124, %v1144
          %vm1147 = vcmask 261124
          %1148 = vst.msk [vmem:[#allocation2 + $0x2] sm:$0xf0] %vm1147, %v1146
        $region120: #{imagebind_vision.1} parent=115 // pred_fallthru
          _
        %v1149 = vld [vmem:[#allocation2] sm:$0xff]
        %v1150 = vld [vmem:[#allocation2 + $0x8] sm:$0x3]
        %v1151 = vld [vmem:[%s912] sm:$0x1]
        %v1152 = vld [vmem:[%s915] sm:$0x1]
        %vm1153 = vcmask 261120
        %v1154 = vsel %vm1153, %v1149, 0.0
        %1155 = vadd.xlane.f32.xlu0 %v1154
        %v1156 = vpop.xlane.xlu0 %1155
        %vm1157 = vcmask 254976
        %v1158 = vsel %vm1157, %v1150, 0.0
        %1159 = vadd.xlane.f32.xlu0 %v1158
        %v1160 = vpop.xlane.xlu0 %1159
        %v1161 = vrcp.pop 32.0
        %v1162 = vmul.f32 %v1156, %v1161
        %v1163 = vmul.f32 %v1160, %v1161
        %v1164 = vsub.f32 %v1149, %v1162
        %v1165 = vsub.f32 %v1150, %v1163
        %v1166 = vmul.f32 %v1164, %v1164
        %v1167 = vmul.f32 %v1165, %v1165
        %v1168 = vsel %vm1153, %v1166, 0.0
        %1169 = vadd.xlane.f32.xlu0 %v1168
        %v1170 = vpop.xlane.xlu0 %1169
        %v1171 = vsel %vm1157, %v1167, 0.0
        %1172 = vadd.xlane.f32.xlu0 %v1171
        %v1173 = vpop.xlane.xlu0 %1172
        %v1174 = vmul.f32 %v1170, %v1161
        %v1175 = vmul.f32 %v1173, %v1161
        %v1176 = vadd.f32 %v1174, 1e-06
        %v1177 = vadd.f32 %v1175, 1e-06
        %v1178 = vrsqrt.pop %v1176
        %v1179 = vrsqrt.pop %v1177
        %v1180 = vmul.f32 %v1164, %v1178
        %v1181 = vmul.f32 %v1165, %v1179
        %v1183 = vlaneseq
        %v1184 = vshrl.u32 %v1183, 7
        %v1185 = vsub.s32 0, %v1184
        %v1186 = vrot.slane %v1151, %v1185
        %v1188 = vmul.f32 %v1180, %v1186
        %v1189 = vmul.f32 %v1181, %v1186
        %v1191 = vlaneseq
        %v1192 = vshrl.u32 %v1191, 7
        %v1193 = vsub.s32 0, %v1192
        %v1194 = vrot.slane %v1152, %v1193
        %v1196 = vadd.f32 %v1188, %v1194
        %v1197 = vadd.f32 %v1189, %v1194
        %v1198 = vpack.c.bf16 %v1197, %v1196
        %v1199 = vld [vmem:[%s920] sm:$0xf]
        %v1200 = vld [vmem:[%s920 + $0x4] sm:$0xf]
        %v1201 = vld [vmem:[%s920 + $0x8] sm:$0xf]
        %v1202 = vld [vmem:[%s920 + $0xc] sm:$0xf]
        %v1203 = vld [vmem:[%s925] sm:$0xf]
        %v1204 = vld [vmem:[%s925 + $0x4] sm:$0xf]
        %v1205 = vld [vmem:[%s925 + $0x8] sm:$0xf]
        %v1206 = vld [vmem:[%s925 + $0xc] sm:$0xf]
        %v1207 = vld [vmem:[%s930] sm:$0xf]
        %v1208 = vld [vmem:[%s930 + $0x4] sm:$0xf]
        %v1209 = vld [vmem:[%s930 + $0x8] sm:$0xf]
        %v1210 = vld [vmem:[%s930 + $0xc] sm:$0xf]
        %v1211 = vld [vmem:[%s947] sm:$0xf]
        %v1212 = vld [vmem:[%s947 + $0x4] sm:$0xf]
        %v1213 = vld [vmem:[%s947 + $0x8] sm:$0xf]
        %v1214 = vld [vmem:[%s947 + $0xc] sm:$0xf]
        %v1215 = vld [vmem:[%s934] sm:$0x1]
        %v1216 = vld [vmem:[%s934 + $0x1] sm:$0x1]
        %v1217 = vld [vmem:[%s934 + $0x2] sm:$0x1]
        %v1218 = vld [vmem:[%s934 + $0x3] sm:$0x1]
        %v1219 = vld [vmem:[%s938] sm:$0x1]
        %v1220 = vld [vmem:[%s938 + $0x1] sm:$0x1]
        %v1221 = vld [vmem:[%s938 + $0x2] sm:$0x1]
        %v1222 = vld [vmem:[%s938 + $0x3] sm:$0x1]
        %v1223 = vld [vmem:[%s942] sm:$0x1]
        %v1224 = vld [vmem:[%s942 + $0x1] sm:$0x1]
        %v1225 = vld [vmem:[%s942 + $0x2] sm:$0x1]
        %v1226 = vld [vmem:[%s942 + $0x3] sm:$0x1]
        %v1231 = vlaneseq
        %v1232 = vshrl.u32 %v1231, 7
        %v1233 = vsub.s32 0, %v1232
        %v1234 = vrot.slane %v1215, %v1233
        %v1235 = vlaneseq
        %v1236 = vshrl.u32 %v1235, 7
        %v1237 = vsub.s32 0, %v1236
        %v1238 = vrot.slane %v1216, %v1237
        %v1239 = vlaneseq
        %v1240 = vshrl.u32 %v1239, 7
        %v1241 = vsub.s32 0, %v1240
        %v1242 = vrot.slane %v1217, %v1241
        %v1243 = vlaneseq
        %v1244 = vshrl.u32 %v1243, 7
        %v1245 = vsub.s32 0, %v1244
        %v1246 = vrot.slane %v1218, %v1245
        %v1252 = vsel %vm1153, %v1198, 0
        %v1255 = vsel %vm1153, %v1199, 0
        %1257 = vmatprep.subr.bf16.mxu0 0
        %1258 = vmatpush1.bf16.xpose.msra.mxu0 %v1255
        %1259 = vmatprep.subr.bf16.mxu0 0
        %1260 = vmatpush1.bf16.xpose.msra.mxu0 0
        %1261 = vmatprep.subr.bf16.mxu0 0
        %1262 = vmatpush1.bf16.xpose.msra.mxu0 0
        %1263 = vmatprep.subr.bf16.mxu0 0
        %1264 = vmatpush1.bf16.xpose.msra.mxu0 0
        %1265 = vmatprep.subr.bf16.mxu0 0
        %1266 = vmatpush1.bf16.xpose.msra.mxu0 0
        %1267 = vmatprep.subr.bf16.mxu0 0
        %1268 = vmatpush1.bf16.xpose.msra.mxu0 0
        %1269 = vmatprep.subr.bf16.mxu0 0
        %1270 = vmatpush1.bf16.xpose.msra.mxu0 0
        %1271 = vmatprep.subr.bf16.mxu0 0
        %1272 = vmatpush1.bf16.xpose.msra.mxu0 0
        %1273 = vmatprep.subr.bf16.mxu0 0
        %1274 = vmatpush1.bf16.xpose.msra.mxu0 0
        %1275 = vmatprep.subr.bf16.mxu0 0
        %1276 = vmatpush1.bf16.xpose.msra.mxu0 0
        %1277 = vmatprep.subr.bf16.mxu0 0
        %1278 = vmatpush1.bf16.xpose.msra.mxu0 0
        %1279 = vmatprep.subr.bf16.mxu0 0
        %1280 = vmatpush1.bf16.xpose.msra.mxu0 0
        %1281 = vmatprep.subr.bf16.mxu0 0
        %1282 = vmatpush1.bf16.xpose.msra.mxu0 0
        %1283 = vmatprep.subr.bf16.mxu0 0
        %1284 = vmatpush1.bf16.xpose.msra.mxu0 0
        %1285 = vmatprep.subr.bf16.mxu0 0
        %1286 = vmatpush1.bf16.xpose.msra.mxu0 0
        %1287 = vmatprep.subr.bf16.mxu0 0
        %1288 = vmatpush1.bf16.xpose.msra.mxu0 0
        %1289 = vmatprep.mubr.bf16.mxu0 0
        %1290 = vmatmul.mubr.bf16.gmra.mrb[0].mxu0 %v1252
        %v1291 = vpop.f32.mrb[0].mxu0
        %v1292 = vadd.f32 %v1234, %v1291
        %v1293 = vpop.f32.mrb[0].mxu0
        %v1294 = vpop.f32.mrb[0].mxu0
        %v1295 = vpop.f32.mrb[0].mxu0
        %1296 = vdwg.mxu0
        %v1298 = vsel %vm1153, %v1200, 0
        %1300 = vmatprep.subr.bf16.mxu0 0
        %1301 = vmatpush1.bf16.xpose.msra.mxu0 %v1298
        %1302 = vmatprep.subr.bf16.mxu0 0
        %1303 = vmatpush1.bf16.xpose.msra.mxu0 0
        %1304 = vmatprep.subr.bf16.mxu0 0
        %1305 = vmatpush1.bf16.xpose.msra.mxu0 0
        %1306 = vmatprep.subr.bf16.mxu0 0
        %1307 = vmatpush1.bf16.xpose.msra.mxu0 0
        %1308 = vmatprep.subr.bf16.mxu0 0
        %1309 = vmatpush1.bf16.xpose.msra.mxu0 0
        %1310 = vmatprep.subr.bf16.mxu0 0
        %1311 = vmatpush1.bf16.xpose.msra.mxu0 0
        %1312 = vmatprep.subr.bf16.mxu0 0
        %1313 = vmatpush1.bf16.xpose.msra.mxu0 0
        %1314 = vmatprep.subr.bf16.mxu0 0
        %1315 = vmatpush1.bf16.xpose.msra.mxu0 0
        %1316 = vmatprep.subr.bf16.mxu0 0
        %1317 = vmatpush1.bf16.xpose.msra.mxu0 0
        %1318 = vmatprep.subr.bf16.mxu0 0
        %1319 = vmatpush1.bf16.xpose.msra.mxu0 0
        %1320 = vmatprep.subr.bf16.mxu0 0
        %1321 = vmatpush1.bf16.xpose.msra.mxu0 0
        %1322 = vmatprep.subr.bf16.mxu0 0
        %1323 = vmatpush1.bf16.xpose.msra.mxu0 0
        %1324 = vmatprep.subr.bf16.mxu0 0
        %1325 = vmatpush1.bf16.xpose.msra.mxu0 0
        %1326 = vmatprep.subr.bf16.mxu0 0
        %1327 = vmatpush1.bf16.xpose.msra.mxu0 0
        %1328 = vmatprep.subr.bf16.mxu0 0
        %1329 = vmatpush1.bf16.xpose.msra.mxu0 0
        %1330 = vmatprep.subr.bf16.mxu0 0
        %1331 = vmatpush1.bf16.xpose.msra.mxu0 0
        %1332 = vmatprep.mubr.bf16.mxu0 0
        %1333 = vmatmul.mubr.bf16.gmra.mrb[0].mxu0 %v1252
        %v1334 = vpop.f32.mrb[0].mxu0
        %v1335 = vadd.f32 %v1238, %v1334
        %v1336 = vpop.f32.mrb[0].mxu0
        %v1337 = vpop.f32.mrb[0].mxu0
        %v1338 = vpop.f32.mrb[0].mxu0
        %1339 = vdwg.mxu0
        %v1341 = vsel %vm1153, %v1201, 0
        %1343 = vmatprep.subr.bf16.mxu0 0
        %1344 = vmatpush1.bf16.xpose.msra.mxu0 %v1341
        %1345 = vmatprep.subr.bf16.mxu0 0
        %1346 = vmatpush1.bf16.xpose.msra.mxu0 0
        %1347 = vmatprep.subr.bf16.mxu0 0
        %1348 = vmatpush1.bf16.xpose.msra.mxu0 0
        %1349 = vmatprep.subr.bf16.mxu0 0
        %1350 = vmatpush1.bf16.xpose.msra.mxu0 0
        %1351 = vmatprep.subr.bf16.mxu0 0
        %1352 = vmatpush1.bf16.xpose.msra.mxu0 0
        %1353 = vmatprep.subr.bf16.mxu0 0
        %1354 = vmatpush1.bf16.xpose.msra.mxu0 0
        %1355 = vmatprep.subr.bf16.mxu0 0
        %1356 = vmatpush1.bf16.xpose.msra.mxu0 0
        %1357 = vmatprep.subr.bf16.mxu0 0
        %1358 = vmatpush1.bf16.xpose.msra.mxu0 0
        %1359 = vmatprep.subr.bf16.mxu0 0
        %1360 = vmatpush1.bf16.xpose.msra.mxu0 0
        %1361 = vmatprep.subr.bf16.mxu0 0
        %1362 = vmatpush1.bf16.xpose.msra.mxu0 0
        %1363 = vmatprep.subr.bf16.mxu0 0
        %1364 = vmatpush1.bf16.xpose.msra.mxu0 0
        %1365 = vmatprep.subr.bf16.mxu0 0
        %1366 = vmatpush1.bf16.xpose.msra.mxu0 0
        %1367 = vmatprep.subr.bf16.mxu0 0
        %1368 = vmatpush1.bf16.xpose.msra.mxu0 0
        %1369 = vmatprep.subr.bf16.mxu0 0
        %1370 = vmatpush1.bf16.xpose.msra.mxu0 0
        %1371 = vmatprep.subr.bf16.mxu0 0
        %1372 = vmatpush1.bf16.xpose.msra.mxu0 0
        %1373 = vmatprep.subr.bf16.mxu0 0
        %1374 = vmatpush1.bf16.xpose.msra.mxu0 0
        %1375 = vmatprep.mubr.bf16.mxu0 0
        %1376 = vmatmul.mubr.bf16.gmra.mrb[0].mxu0 %v1252
        %v1377 = vpop.f32.mrb[0].mxu0
        %v1378 = vadd.f32 %v1242, %v1377
        %v1379 = vpop.f32.mrb[0].mxu0
        %v1380 = vpop.f32.mrb[0].mxu0
        %v1381 = vpop.f32.mrb[0].mxu0
        %1382 = vdwg.mxu0
        %v1384 = vsel %vm1153, %v1202, 0
        %1386 = vmatprep.subr.bf16.mxu0 0
        %1387 = vmatpush1.bf16.xpose.msra.mxu0 %v1384
        %1388 = vmatprep.subr.bf16.mxu0 0
        %1389 = vmatpush1.bf16.xpose.msra.mxu0 0
        %1390 = vmatprep.subr.bf16.mxu0 0
        %1391 = vmatpush1.bf16.xpose.msra.mxu0 0
        %1392 = vmatprep.subr.bf16.mxu0 0
        %1393 = vmatpush1.bf16.xpose.msra.mxu0 0
        %1394 = vmatprep.subr.bf16.mxu0 0
        %1395 = vmatpush1.bf16.xpose.msra.mxu0 0
        %1396 = vmatprep.subr.bf16.mxu0 0
        %1397 = vmatpush1.bf16.xpose.msra.mxu0 0
        %1398 = vmatprep.subr.bf16.mxu0 0
        %1399 = vmatpush1.bf16.xpose.msra.mxu0 0
        %1400 = vmatprep.subr.bf16.mxu0 0
        %1401 = vmatpush1.bf16.xpose.msra.mxu0 0
        %1402 = vmatprep.subr.bf16.mxu0 0
        %1403 = vmatpush1.bf16.xpose.msra.mxu0 0
        %1404 = vmatprep.subr.bf16.mxu0 0
        %1405 = vmatpush1.bf16.xpose.msra.mxu0 0
        %1406 = vmatprep.subr.bf16.mxu0 0
        %1407 = vmatpush1.bf16.xpose.msra.mxu0 0
        %1408 = vmatprep.subr.bf16.mxu0 0
        %1409 = vmatpush1.bf16.xpose.msra.mxu0 0
        %1410 = vmatprep.subr.bf16.mxu0 0
        %1411 = vmatpush1.bf16.xpose.msra.mxu0 0
        %1412 = vmatprep.subr.bf16.mxu0 0
        %1413 = vmatpush1.bf16.xpose.msra.mxu0 0
        %1414 = vmatprep.subr.bf16.mxu0 0
        %1415 = vmatpush1.bf16.xpose.msra.mxu0 0
        %1416 = vmatprep.subr.bf16.mxu0 0
        %1417 = vmatpush1.bf16.xpose.msra.mxu0 0
        %1418 = vmatprep.mubr.bf16.mxu0 0
        %1419 = vmatmul.mubr.bf16.gmra.mrb[0].mxu0 %v1252
        %v1420 = vpop.f32.mrb[0].mxu0
        %v1421 = vadd.f32 %v1246, %v1420
        %v1422 = vpop.f32.mrb[0].mxu0
        %v1423 = vpop.f32.mrb[0].mxu0
        %v1424 = vpop.f32.mrb[0].mxu0
        %1425 = vdwg.mxu0
        %v1430 = vlaneseq
        %v1431 = vshrl.u32 %v1430, 7
        %v1432 = vsub.s32 0, %v1431
        %v1433 = vrot.slane %v1219, %v1432
        %v1434 = vlaneseq
        %v1435 = vshrl.u32 %v1434, 7
        %v1436 = vsub.s32 0, %v1435
        %v1437 = vrot.slane %v1220, %v1436
        %v1438 = vlaneseq
        %v1439 = vshrl.u32 %v1438, 7
        %v1440 = vsub.s32 0, %v1439
        %v1441 = vrot.slane %v1221, %v1440
        %v1442 = vlaneseq
        %v1443 = vshrl.u32 %v1442, 7
        %v1444 = vsub.s32 0, %v1443
        %v1445 = vrot.slane %v1222, %v1444
        %v1451 = vsel %vm1153, %v1203, 0
        %1453 = vmatprep.subr.bf16.mxu0 0
        %1454 = vmatpush1.bf16.xpose.msra.mxu0 %v1451
        %1455 = vmatprep.subr.bf16.mxu0 0
        %1456 = vmatpush1.bf16.xpose.msra.mxu0 0
        %1457 = vmatprep.subr.bf16.mxu0 0
        %1458 = vmatpush1.bf16.xpose.msra.mxu0 0
        %1459 = vmatprep.subr.bf16.mxu0 0
        %1460 = vmatpush1.bf16.xpose.msra.mxu0 0
        %1461 = vmatprep.subr.bf16.mxu0 0
        %1462 = vmatpush1.bf16.xpose.msra.mxu0 0
        %1463 = vmatprep.subr.bf16.mxu0 0
        %1464 = vmatpush1.bf16.xpose.msra.mxu0 0
        %1465 = vmatprep.subr.bf16.mxu0 0
        %1466 = vmatpush1.bf16.xpose.msra.mxu0 0
        %1467 = vmatprep.subr.bf16.mxu0 0
        %1468 = vmatpush1.bf16.xpose.msra.mxu0 0
        %1469 = vmatprep.subr.bf16.mxu0 0
        %1470 = vmatpush1.bf16.xpose.msra.mxu0 0
        %1471 = vmatprep.subr.bf16.mxu0 0
        %1472 = vmatpush1.bf16.xpose.msra.mxu0 0
        %1473 = vmatprep.subr.bf16.mxu0 0
        %1474 = vmatpush1.bf16.xpose.msra.mxu0 0
        %1475 = vmatprep.subr.bf16.mxu0 0
        %1476 = vmatpush1.bf16.xpose.msra.mxu0 0
        %1477 = vmatprep.subr.bf16.mxu0 0
        %1478 = vmatpush1.bf16.xpose.msra.mxu0 0
        %1479 = vmatprep.subr.bf16.mxu0 0
        %1480 = vmatpush1.bf16.xpose.msra.mxu0 0
        %1481 = vmatprep.subr.bf16.mxu0 0
        %1482 = vmatpush1.bf16.xpose.msra.mxu0 0
        %1483 = vmatprep.subr.bf16.mxu0 0
        %1484 = vmatpush1.bf16.xpose.msra.mxu0 0
        %1485 = vmatprep.mubr.bf16.mxu0 0
        %1486 = vmatmul.mubr.bf16.gmra.mrb[0].mxu0 %v1252
        %v1487 = vpop.f32.mrb[0].mxu0
        %v1488 = vadd.f32 %v1433, %v1487
        %v1489 = vpop.f32.mrb[0].mxu0
        %v1490 = vpop.f32.mrb[0].mxu0
        %v1491 = vpop.f32.mrb[0].mxu0
        %1492 = vdwg.mxu0
        %v1494 = vsel %vm1153, %v1204, 0
        %1496 = vmatprep.subr.bf16.mxu0 0
        %1497 = vmatpush1.bf16.xpose.msra.mxu0 %v1494
        %1498 = vmatprep.subr.bf16.mxu0 0
        %1499 = vmatpush1.bf16.xpose.msra.mxu0 0
        %1500 = vmatprep.subr.bf16.mxu0 0
        %1501 = vmatpush1.bf16.xpose.msra.mxu0 0
        %1502 = vmatprep.subr.bf16.mxu0 0
        %1503 = vmatpush1.bf16.xpose.msra.mxu0 0
        %1504 = vmatprep.subr.bf16.mxu0 0
        %1505 = vmatpush1.bf16.xpose.msra.mxu0 0
        %1506 = vmatprep.subr.bf16.mxu0 0
        %1507 = vmatpush1.bf16.xpose.msra.mxu0 0
        %1508 = vmatprep.subr.bf16.mxu0 0
        %1509 = vmatpush1.bf16.xpose.msra.mxu0 0
        %1510 = vmatprep.subr.bf16.mxu0 0
        %1511 = vmatpush1.bf16.xpose.msra.mxu0 0
        %1512 = vmatprep.subr.bf16.mxu0 0
        %1513 = vmatpush1.bf16.xpose.msra.mxu0 0
        %1514 = vmatprep.subr.bf16.mxu0 0
        %1515 = vmatpush1.bf16.xpose.msra.mxu0 0
        %1516 = vmatprep.subr.bf16.mxu0 0
        %1517 = vmatpush1.bf16.xpose.msra.mxu0 0
        %1518 = vmatprep.subr.bf16.mxu0 0
        %1519 = vmatpush1.bf16.xpose.msra.mxu0 0
        %1520 = vmatprep.subr.bf16.mxu0 0
        %1521 = vmatpush1.bf16.xpose.msra.mxu0 0
        %1522 = vmatprep.subr.bf16.mxu0 0
        %1523 = vmatpush1.bf16.xpose.msra.mxu0 0
        %1524 = vmatprep.subr.bf16.mxu0 0
        %1525 = vmatpush1.bf16.xpose.msra.mxu0 0
        %1526 = vmatprep.subr.bf16.mxu0 0
        %1527 = vmatpush1.bf16.xpose.msra.mxu0 0
        %1528 = vmatprep.mubr.bf16.mxu0 0
        %1529 = vmatmul.mubr.bf16.gmra.mrb[0].mxu0 %v1252
        %v1530 = vpop.f32.mrb[0].mxu0
        %v1531 = vadd.f32 %v1437, %v1530
        %v1532 = vpop.f32.mrb[0].mxu0
        %v1533 = vpop.f32.mrb[0].mxu0
        %v1534 = vpop.f32.mrb[0].mxu0
        %1535 = vdwg.mxu0
        %v1537 = vsel %vm1153, %v1205, 0
        %1539 = vmatprep.subr.bf16.mxu0 0
        %1540 = vmatpush1.bf16.xpose.msra.mxu0 %v1537
        %1541 = vmatprep.subr.bf16.mxu0 0
        %1542 = vmatpush1.bf16.xpose.msra.mxu0 0
        %1543 = vmatprep.subr.bf16.mxu0 0
        %1544 = vmatpush1.bf16.xpose.msra.mxu0 0
        %1545 = vmatprep.subr.bf16.mxu0 0
        %1546 = vmatpush1.bf16.xpose.msra.mxu0 0
        %1547 = vmatprep.subr.bf16.mxu0 0
        %1548 = vmatpush1.bf16.xpose.msra.mxu0 0
        %1549 = vmatprep.subr.bf16.mxu0 0
        %1550 = vmatpush1.bf16.xpose.msra.mxu0 0
        %1551 = vmatprep.subr.bf16.mxu0 0
        %1552 = vmatpush1.bf16.xpose.msra.mxu0 0
        %1553 = vmatprep.subr.bf16.mxu0 0
        %1554 = vmatpush1.bf16.xpose.msra.mxu0 0
        %1555 = vmatprep.subr.bf16.mxu0 0
        %1556 = vmatpush1.bf16.xpose.msra.mxu0 0
        %1557 = vmatprep.subr.bf16.mxu0 0
        %1558 = vmatpush1.bf16.xpose.msra.mxu0 0
        %1559 = vmatprep.subr.bf16.mxu0 0
        %1560 = vmatpush1.bf16.xpose.msra.mxu0 0
        %1561 = vmatprep.subr.bf16.mxu0 0
        %1562 = vmatpush1.bf16.xpose.msra.mxu0 0
        %1563 = vmatprep.subr.bf16.mxu0 0
        %1564 = vmatpush1.bf16.xpose.msra.mxu0 0
        %1565 = vmatprep.subr.bf16.mxu0 0
        %1566 = vmatpush1.bf16.xpose.msra.mxu0 0
        %1567 = vmatprep.subr.bf16.mxu0 0
        %1568 = vmatpush1.bf16.xpose.msra.mxu0 0
        %1569 = vmatprep.subr.bf16.mxu0 0
        %1570 = vmatpush1.bf16.xpose.msra.mxu0 0
        %1571 = vmatprep.mubr.bf16.mxu0 0
        %1572 = vmatmul.mubr.bf16.gmra.mrb[0].mxu0 %v1252
        %v1573 = vpop.f32.mrb[0].mxu0
        %v1574 = vadd.f32 %v1441, %v1573
        %v1575 = vpop.f32.mrb[0].mxu0
        %v1576 = vpop.f32.mrb[0].mxu0
        %v1577 = vpop.f32.mrb[0].mxu0
        %1578 = vdwg.mxu0
        %v1580 = vsel %vm1153, %v1206, 0
        %1582 = vmatprep.subr.bf16.mxu0 0
        %1583 = vmatpush1.bf16.xpose.msra.mxu0 %v1580
        %1584 = vmatprep.subr.bf16.mxu0 0
        %1585 = vmatpush1.bf16.xpose.msra.mxu0 0
        %1586 = vmatprep.subr.bf16.mxu0 0
        %1587 = vmatpush1.bf16.xpose.msra.mxu0 0
        %1588 = vmatprep.subr.bf16.mxu0 0
        %1589 = vmatpush1.bf16.xpose.msra.mxu0 0
        %1590 = vmatprep.subr.bf16.mxu0 0
        %1591 = vmatpush1.bf16.xpose.msra.mxu0 0
        %1592 = vmatprep.subr.bf16.mxu0 0
        %1593 = vmatpush1.bf16.xpose.msra.mxu0 0
        %1594 = vmatprep.subr.bf16.mxu0 0
        %1595 = vmatpush1.bf16.xpose.msra.mxu0 0
        %1596 = vmatprep.subr.bf16.mxu0 0
        %1597 = vmatpush1.bf16.xpose.msra.mxu0 0
        %1598 = vmatprep.subr.bf16.mxu0 0
        %1599 = vmatpush1.bf16.xpose.msra.mxu0 0
        %1600 = vmatprep.subr.bf16.mxu0 0
        %1601 = vmatpush1.bf16.xpose.msra.mxu0 0
        %1602 = vmatprep.subr.bf16.mxu0 0
        %1603 = vmatpush1.bf16.xpose.msra.mxu0 0
        %1604 = vmatprep.subr.bf16.mxu0 0
        %1605 = vmatpush1.bf16.xpose.msra.mxu0 0
        %1606 = vmatprep.subr.bf16.mxu0 0
        %1607 = vmatpush1.bf16.xpose.msra.mxu0 0
        %1608 = vmatprep.subr.bf16.mxu0 0
        %1609 = vmatpush1.bf16.xpose.msra.mxu0 0
        %1610 = vmatprep.subr.bf16.mxu0 0
        %1611 = vmatpush1.bf16.xpose.msra.mxu0 0
        %1612 = vmatprep.subr.bf16.mxu0 0
        %1613 = vmatpush1.bf16.xpose.msra.mxu0 0
        %1614 = vmatprep.mubr.bf16.mxu0 0
        %1615 = vmatmul.mubr.bf16.gmra.mrb[0].mxu0 %v1252
        %v1616 = vpop.f32.mrb[0].mxu0
        %v1617 = vadd.f32 %v1445, %v1616
        %v1618 = vpop.f32.mrb[0].mxu0
        %v1619 = vpop.f32.mrb[0].mxu0
        %v1620 = vpop.f32.mrb[0].mxu0
        %1621 = vdwg.mxu0
        %v1626 = vlaneseq
        %v1627 = vshrl.u32 %v1626, 7
        %v1628 = vsub.s32 0, %v1627
        %v1629 = vrot.slane %v1223, %v1628
        %v1630 = vlaneseq
        %v1631 = vshrl.u32 %v1630, 7
        %v1632 = vsub.s32 0, %v1631
        %v1633 = vrot.slane %v1224, %v1632
        %v1634 = vlaneseq
        %v1635 = vshrl.u32 %v1634, 7
        %v1636 = vsub.s32 0, %v1635
        %v1637 = vrot.slane %v1225, %v1636
        %v1638 = vlaneseq
        %v1639 = vshrl.u32 %v1638, 7
        %v1640 = vsub.s32 0, %v1639
        %v1641 = vrot.slane %v1226, %v1640
        %v1647 = vsel %vm1153, %v1207, 0
        %1649 = vmatprep.subr.bf16.mxu0 0
        %1650 = vmatpush1.bf16.xpose.msra.mxu0 %v1647
        %1651 = vmatprep.subr.bf16.mxu0 0
        %1652 = vmatpush1.bf16.xpose.msra.mxu0 0
        %1653 = vmatprep.subr.bf16.mxu0 0
        %1654 = vmatpush1.bf16.xpose.msra.mxu0 0
        %1655 = vmatprep.subr.bf16.mxu0 0
        %1656 = vmatpush1.bf16.xpose.msra.mxu0 0
        %1657 = vmatprep.subr.bf16.mxu0 0
        %1658 = vmatpush1.bf16.xpose.msra.mxu0 0
        %1659 = vmatprep.subr.bf16.mxu0 0
        %1660 = vmatpush1.bf16.xpose.msra.mxu0 0
        %1661 = vmatprep.subr.bf16.mxu0 0
        %1662 = vmatpush1.bf16.xpose.msra.mxu0 0
        %1663 = vmatprep.subr.bf16.mxu0 0
        %1664 = vmatpush1.bf16.xpose.msra.mxu0 0
        %1665 = vmatprep.subr.bf16.mxu0 0
        %1666 = vmatpush1.bf16.xpose.msra.mxu0 0
        %1667 = vmatprep.subr.bf16.mxu0 0
        %1668 = vmatpush1.bf16.xpose.msra.mxu0 0
        %1669 = vmatprep.subr.bf16.mxu0 0
        %1670 = vmatpush1.bf16.xpose.msra.mxu0 0
        %1671 = vmatprep.subr.bf16.mxu0 0
        %1672 = vmatpush1.bf16.xpose.msra.mxu0 0
        %1673 = vmatprep.subr.bf16.mxu0 0
        %1674 = vmatpush1.bf16.xpose.msra.mxu0 0
        %1675 = vmatprep.subr.bf16.mxu0 0
        %1676 = vmatpush1.bf16.xpose.msra.mxu0 0
        %1677 = vmatprep.subr.bf16.mxu0 0
        %1678 = vmatpush1.bf16.xpose.msra.mxu0 0
        %1679 = vmatprep.subr.bf16.mxu0 0
        %1680 = vmatpush1.bf16.xpose.msra.mxu0 0
        %1681 = vmatprep.mubr.bf16.mxu0 0
        %1682 = vmatmul.mubr.bf16.gmra.mrb[0].mxu0 %v1252
        %v1683 = vpop.f32.mrb[0].mxu0
        %v1684 = vadd.f32 %v1629, %v1683
        %v1685 = vpop.f32.mrb[0].mxu0
        %v1686 = vpop.f32.mrb[0].mxu0
        %v1687 = vpop.f32.mrb[0].mxu0
        %1688 = vdwg.mxu0
        %v1690 = vsel %vm1153, %v1208, 0
        %1692 = vmatprep.subr.bf16.mxu0 0
        %1693 = vmatpush1.bf16.xpose.msra.mxu0 %v1690
        %1694 = vmatprep.subr.bf16.mxu0 0
        %1695 = vmatpush1.bf16.xpose.msra.mxu0 0
        %1696 = vmatprep.subr.bf16.mxu0 0
        %1697 = vmatpush1.bf16.xpose.msra.mxu0 0
        %1698 = vmatprep.subr.bf16.mxu0 0
        %1699 = vmatpush1.bf16.xpose.msra.mxu0 0
        %1700 = vmatprep.subr.bf16.mxu0 0
        %1701 = vmatpush1.bf16.xpose.msra.mxu0 0
        %1702 = vmatprep.subr.bf16.mxu0 0
        %1703 = vmatpush1.bf16.xpose.msra.mxu0 0
        %1704 = vmatprep.subr.bf16.mxu0 0
        %1705 = vmatpush1.bf16.xpose.msra.mxu0 0
        %1706 = vmatprep.subr.bf16.mxu0 0
        %1707 = vmatpush1.bf16.xpose.msra.mxu0 0
        %1708 = vmatprep.subr.bf16.mxu0 0
        %1709 = vmatpush1.bf16.xpose.msra.mxu0 0
        %1710 = vmatprep.subr.bf16.mxu0 0
        %1711 = vmatpush1.bf16.xpose.msra.mxu0 0
        %1712 = vmatprep.subr.bf16.mxu0 0
        %1713 = vmatpush1.bf16.xpose.msra.mxu0 0
        %1714 = vmatprep.subr.bf16.mxu0 0
        %1715 = vmatpush1.bf16.xpose.msra.mxu0 0
        %1716 = vmatprep.subr.bf16.mxu0 0
        %1717 = vmatpush1.bf16.xpose.msra.mxu0 0
        %1718 = vmatprep.subr.bf16.mxu0 0
        %1719 = vmatpush1.bf16.xpose.msra.mxu0 0
        %1720 = vmatprep.subr.bf16.mxu0 0
        %1721 = vmatpush1.bf16.xpose.msra.mxu0 0
        %1722 = vmatprep.subr.bf16.mxu0 0
        %1723 = vmatpush1.bf16.xpose.msra.mxu0 0
        %1724 = vmatprep.mubr.bf16.mxu0 0
        %1725 = vmatmul.mubr.bf16.gmra.mrb[0].mxu0 %v1252
        %v1726 = vpop.f32.mrb[0].mxu0
        %v1727 = vadd.f32 %v1633, %v1726
        %v1728 = vpop.f32.mrb[0].mxu0
        %v1729 = vpop.f32.mrb[0].mxu0
        %v1730 = vpop.f32.mrb[0].mxu0
        %1731 = vdwg.mxu0
        %v1733 = vsel %vm1153, %v1209, 0
        %1735 = vmatprep.subr.bf16.mxu0 0
        %1736 = vmatpush1.bf16.xpose.msra.mxu0 %v1733
        %1737 = vmatprep.subr.bf16.mxu0 0
        %1738 = vmatpush1.bf16.xpose.msra.mxu0 0
        %1739 = vmatprep.subr.bf16.mxu0 0
        %1740 = vmatpush1.bf16.xpose.msra.mxu0 0
        %1741 = vmatprep.subr.bf16.mxu0 0
        %1742 = vmatpush1.bf16.xpose.msra.mxu0 0
        %1743 = vmatprep.subr.bf16.mxu0 0
        %1744 = vmatpush1.bf16.xpose.msra.mxu0 0
        %1745 = vmatprep.subr.bf16.mxu0 0
        %1746 = vmatpush1.bf16.xpose.msra.mxu0 0
        %1747 = vmatprep.subr.bf16.mxu0 0
        %1748 = vmatpush1.bf16.xpose.msra.mxu0 0
        %1749 = vmatprep.subr.bf16.mxu0 0
        %1750 = vmatpush1.bf16.xpose.msra.mxu0 0
        %1751 = vmatprep.subr.bf16.mxu0 0
        %1752 = vmatpush1.bf16.xpose.msra.mxu0 0
        %1753 = vmatprep.subr.bf16.mxu0 0
        %1754 = vmatpush1.bf16.xpose.msra.mxu0 0
        %1755 = vmatprep.subr.bf16.mxu0 0
        %1756 = vmatpush1.bf16.xpose.msra.mxu0 0
        %1757 = vmatprep.subr.bf16.mxu0 0
        %1758 = vmatpush1.bf16.xpose.msra.mxu0 0
        %1759 = vmatprep.subr.bf16.mxu0 0
        %1760 = vmatpush1.bf16.xpose.msra.mxu0 0
        %1761 = vmatprep.subr.bf16.mxu0 0
        %1762 = vmatpush1.bf16.xpose.msra.mxu0 0
        %1763 = vmatprep.subr.bf16.mxu0 0
        %1764 = vmatpush1.bf16.xpose.msra.mxu0 0
        %1765 = vmatprep.subr.bf16.mxu0 0
        %1766 = vmatpush1.bf16.xpose.msra.mxu0 0
        %1767 = vmatprep.mubr.bf16.mxu0 0
        %1768 = vmatmul.mubr.bf16.gmra.mrb[0].mxu0 %v1252
        %v1769 = vpop.f32.mrb[0].mxu0
        %v1770 = vadd.f32 %v1637, %v1769
        %v1771 = vpop.f32.mrb[0].mxu0
        %v1772 = vpop.f32.mrb[0].mxu0
        %v1773 = vpop.f32.mrb[0].mxu0
        %1774 = vdwg.mxu0
        %v1776 = vsel %vm1153, %v1210, 0
        %1778 = vmatprep.subr.bf16.mxu0 0
        %1779 = vmatpush1.bf16.xpose.msra.mxu0 %v1776
        %1780 = vmatprep.subr.bf16.mxu0 0
        %1781 = vmatpush1.bf16.xpose.msra.mxu0 0
        %1782 = vmatprep.subr.bf16.mxu0 0
        %1783 = vmatpush1.bf16.xpose.msra.mxu0 0
        %1784 = vmatprep.subr.bf16.mxu0 0
        %1785 = vmatpush1.bf16.xpose.msra.mxu0 0
        %1786 = vmatprep.subr.bf16.mxu0 0
        %1787 = vmatpush1.bf16.xpose.msra.mxu0 0
        %1788 = vmatprep.subr.bf16.mxu0 0
        %1789 = vmatpush1.bf16.xpose.msra.mxu0 0
        %1790 = vmatprep.subr.bf16.mxu0 0
        %1791 = vmatpush1.bf16.xpose.msra.mxu0 0
        %1792 = vmatprep.subr.bf16.mxu0 0
        %1793 = vmatpush1.bf16.xpose.msra.mxu0 0
        %1794 = vmatprep.subr.bf16.mxu0 0
        %1795 = vmatpush1.bf16.xpose.msra.mxu0 0
        %1796 = vmatprep.subr.bf16.mxu0 0
        %1797 = vmatpush1.bf16.xpose.msra.mxu0 0
        %1798 = vmatprep.subr.bf16.mxu0 0
        %1799 = vmatpush1.bf16.xpose.msra.mxu0 0
        %1800 = vmatprep.subr.bf16.mxu0 0
        %1801 = vmatpush1.bf16.xpose.msra.mxu0 0
        %1802 = vmatprep.subr.bf16.mxu0 0
        %1803 = vmatpush1.bf16.xpose.msra.mxu0 0
        %1804 = vmatprep.subr.bf16.mxu0 0
        %1805 = vmatpush1.bf16.xpose.msra.mxu0 0
        %1806 = vmatprep.subr.bf16.mxu0 0
        %1807 = vmatpush1.bf16.xpose.msra.mxu0 0
        %1808 = vmatprep.subr.bf16.mxu0 0
        %1809 = vmatpush1.bf16.xpose.msra.mxu0 0
        %1810 = vmatprep.mubr.bf16.mxu0 0
        %1811 = vmatmul.mubr.bf16.gmra.mrb[0].mxu0 %v1252
        %v1812 = vpop.f32.mrb[0].mxu0
        %v1813 = vadd.f32 %v1641, %v1812
        %v1814 = vpop.f32.mrb[0].mxu0
        %v1815 = vpop.f32.mrb[0].mxu0
        %v1816 = vpop.f32.mrb[0].mxu0
        %1817 = vdwg.mxu0
        %v1818 = vpack.c.bf16 %v1292, %v1292
        %v1819 = vpack.c.bf16 %v1335, %v1335
        %v1820 = vpack.c.bf16 %v1378, %v1378
        %v1821 = vpack.c.bf16 %v1421, %v1421
        %v1822 = vpack.c.bf16 %v1488, %v1488
        %v1823 = vpack.c.bf16 %v1531, %v1531
        %v1824 = vpack.c.bf16 %v1574, %v1574
        %v1825 = vpack.c.bf16 %v1617, %v1617
        %vm1826 = vcmask 64512
        %v1828 = vsel %vm1826, %v1818, 0
        %v1831 = vsel %vm1826, %v1822, 0
        %1833 = vmatprep.subr.bf16.mxu0 0
        %1834 = vmatpush1.bf16.xpose.msra.mxu0 %v1831
        %1835 = vmatprep.subr.bf16.mxu0 0
        %1836 = vmatpush1.bf16.xpose.msra.mxu0 0
        %1837 = vmatprep.subr.bf16.mxu0 0
        %1838 = vmatpush1.bf16.xpose.msra.mxu0 0
        %1839 = vmatprep.subr.bf16.mxu0 0
        %1840 = vmatpush1.bf16.xpose.msra.mxu0 0
        %1841 = vmatprep.subr.bf16.mxu0 0
        %1842 = vmatpush1.bf16.xpose.msra.mxu0 0
        %1843 = vmatprep.subr.bf16.mxu0 0
        %1844 = vmatpush1.bf16.xpose.msra.mxu0 0
        %1845 = vmatprep.subr.bf16.mxu0 0
        %1846 = vmatpush1.bf16.xpose.msra.mxu0 0
        %1847 = vmatprep.subr.bf16.mxu0 0
        %1848 = vmatpush1.bf16.xpose.msra.mxu0 0
        %1849 = vmatprep.subr.bf16.mxu0 0
        %1850 = vmatpush1.bf16.xpose.msra.mxu0 0
        %1851 = vmatprep.subr.bf16.mxu0 0
        %1852 = vmatpush1.bf16.xpose.msra.mxu0 0
        %1853 = vmatprep.subr.bf16.mxu0 0
        %1854 = vmatpush1.bf16.xpose.msra.mxu0 0
        %1855 = vmatprep.subr.bf16.mxu0 0
        %1856 = vmatpush1.bf16.xpose.msra.mxu0 0
        %1857 = vmatprep.subr.bf16.mxu0 0
        %1858 = vmatpush1.bf16.xpose.msra.mxu0 0
        %1859 = vmatprep.subr.bf16.mxu0 0
        %1860 = vmatpush1.bf16.xpose.msra.mxu0 0
        %1861 = vmatprep.subr.bf16.mxu0 0
        %1862 = vmatpush1.bf16.xpose.msra.mxu0 0
        %1863 = vmatprep.subr.bf16.mxu0 0
        %1864 = vmatpush1.bf16.xpose.msra.mxu0 0
        %1865 = vmatprep.mubr.bf16.mxu0 0
        %1866 = vmatmul.mubr.bf16.gmra.mrb[0].mxu0 %v1828
        %v1867 = vpop.f32.mrb[0].mxu0
        %v1868 = vadd.f32 0.0, %v1867
        %v1869 = vpop.f32.mrb[0].mxu0
        %v1870 = vpop.f32.mrb[0].mxu0
        %v1871 = vpop.f32.mrb[0].mxu0
        %1872 = vdwg.mxu0
        %v1874 = vsel %vm1826, %v1819, 0
        %v1877 = vsel %vm1826, %v1823, 0
        %1879 = vmatprep.subr.bf16.mxu0 0
        %1880 = vmatpush1.bf16.xpose.msra.mxu0 %v1877
        %1881 = vmatprep.subr.bf16.mxu0 0
        %1882 = vmatpush1.bf16.xpose.msra.mxu0 0
        %1883 = vmatprep.subr.bf16.mxu0 0
        %1884 = vmatpush1.bf16.xpose.msra.mxu0 0
        %1885 = vmatprep.subr.bf16.mxu0 0
        %1886 = vmatpush1.bf16.xpose.msra.mxu0 0
        %1887 = vmatprep.subr.bf16.mxu0 0
        %1888 = vmatpush1.bf16.xpose.msra.mxu0 0
        %1889 = vmatprep.subr.bf16.mxu0 0
        %1890 = vmatpush1.bf16.xpose.msra.mxu0 0
        %1891 = vmatprep.subr.bf16.mxu0 0
        %1892 = vmatpush1.bf16.xpose.msra.mxu0 0
        %1893 = vmatprep.subr.bf16.mxu0 0
        %1894 = vmatpush1.bf16.xpose.msra.mxu0 0
        %1895 = vmatprep.subr.bf16.mxu0 0
        %1896 = vmatpush1.bf16.xpose.msra.mxu0 0
        %1897 = vmatprep.subr.bf16.mxu0 0
        %1898 = vmatpush1.bf16.xpose.msra.mxu0 0
        %1899 = vmatprep.subr.bf16.mxu0 0
        %1900 = vmatpush1.bf16.xpose.msra.mxu0 0
        %1901 = vmatprep.subr.bf16.mxu0 0
        %1902 = vmatpush1.bf16.xpose.msra.mxu0 0
        %1903 = vmatprep.subr.bf16.mxu0 0
        %1904 = vmatpush1.bf16.xpose.msra.mxu0 0
        %1905 = vmatprep.subr.bf16.mxu0 0
        %1906 = vmatpush1.bf16.xpose.msra.mxu0 0
        %1907 = vmatprep.subr.bf16.mxu0 0
        %1908 = vmatpush1.bf16.xpose.msra.mxu0 0
        %1909 = vmatprep.subr.bf16.mxu0 0
        %1910 = vmatpush1.bf16.xpose.msra.mxu0 0
        %1911 = vmatprep.mubr.bf16.mxu0 0
        %1912 = vmatmul.mubr.bf16.gmra.mrb[0].mxu0 %v1874
        %v1913 = vpop.f32.mrb[0].mxu0
        %v1914 = vadd.f32 0.0, %v1913
        %v1915 = vpop.f32.mrb[0].mxu0
        %v1916 = vpop.f32.mrb[0].mxu0
        %v1917 = vpop.f32.mrb[0].mxu0
        %1918 = vdwg.mxu0
        %v1920 = vsel %vm1826, %v1820, 0
        %v1923 = vsel %vm1826, %v1824, 0
        %1925 = vmatprep.subr.bf16.mxu0 0
        %1926 = vmatpush1.bf16.xpose.msra.mxu0 %v1923
        %1927 = vmatprep.subr.bf16.mxu0 0
        %1928 = vmatpush1.bf16.xpose.msra.mxu0 0
        %1929 = vmatprep.subr.bf16.mxu0 0
        %1930 = vmatpush1.bf16.xpose.msra.mxu0 0
        %1931 = vmatprep.subr.bf16.mxu0 0
        %1932 = vmatpush1.bf16.xpose.msra.mxu0 0
        %1933 = vmatprep.subr.bf16.mxu0 0
        %1934 = vmatpush1.bf16.xpose.msra.mxu0 0
        %1935 = vmatprep.subr.bf16.mxu0 0
        %1936 = vmatpush1.bf16.xpose.msra.mxu0 0
        %1937 = vmatprep.subr.bf16.mxu0 0
        %1938 = vmatpush1.bf16.xpose.msra.mxu0 0
        %1939 = vmatprep.subr.bf16.mxu0 0
        %1940 = vmatpush1.bf16.xpose.msra.mxu0 0
        %1941 = vmatprep.subr.bf16.mxu0 0
        %1942 = vmatpush1.bf16.xpose.msra.mxu0 0
        %1943 = vmatprep.subr.bf16.mxu0 0
        %1944 = vmatpush1.bf16.xpose.msra.mxu0 0
        %1945 = vmatprep.subr.bf16.mxu0 0
        %1946 = vmatpush1.bf16.xpose.msra.mxu0 0
        %1947 = vmatprep.subr.bf16.mxu0 0
        %1948 = vmatpush1.bf16.xpose.msra.mxu0 0
        %1949 = vmatprep.subr.bf16.mxu0 0
        %1950 = vmatpush1.bf16.xpose.msra.mxu0 0
        %1951 = vmatprep.subr.bf16.mxu0 0
        %1952 = vmatpush1.bf16.xpose.msra.mxu0 0
        %1953 = vmatprep.subr.bf16.mxu0 0
        %1954 = vmatpush1.bf16.xpose.msra.mxu0 0
        %1955 = vmatprep.subr.bf16.mxu0 0
        %1956 = vmatpush1.bf16.xpose.msra.mxu0 0
        %1957 = vmatprep.mubr.bf16.mxu0 0
        %1958 = vmatmul.mubr.bf16.gmra.mrb[0].mxu0 %v1920
        %v1959 = vpop.f32.mrb[0].mxu0
        %v1960 = vadd.f32 0.0, %v1959
        %v1961 = vpop.f32.mrb[0].mxu0
        %v1962 = vpop.f32.mrb[0].mxu0
        %v1963 = vpop.f32.mrb[0].mxu0
        %1964 = vdwg.mxu0
        %v1966 = vsel %vm1826, %v1821, 0
        %v1969 = vsel %vm1826, %v1825, 0
        %1971 = vmatprep.subr.bf16.mxu0 0
        %1972 = vmatpush1.bf16.xpose.msra.mxu0 %v1969
        %1973 = vmatprep.subr.bf16.mxu0 0
        %1974 = vmatpush1.bf16.xpose.msra.mxu0 0
        %1975 = vmatprep.subr.bf16.mxu0 0
        %1976 = vmatpush1.bf16.xpose.msra.mxu0 0
        %1977 = vmatprep.subr.bf16.mxu0 0
        %1978 = vmatpush1.bf16.xpose.msra.mxu0 0
        %1979 = vmatprep.subr.bf16.mxu0 0
        %1980 = vmatpush1.bf16.xpose.msra.mxu0 0
        %1981 = vmatprep.subr.bf16.mxu0 0
        %1982 = vmatpush1.bf16.xpose.msra.mxu0 0
        %1983 = vmatprep.subr.bf16.mxu0 0
        %1984 = vmatpush1.bf16.xpose.msra.mxu0 0
        %1985 = vmatprep.subr.bf16.mxu0 0
        %1986 = vmatpush1.bf16.xpose.msra.mxu0 0
        %1987 = vmatprep.subr.bf16.mxu0 0
        %1988 = vmatpush1.bf16.xpose.msra.mxu0 0
        %1989 = vmatprep.subr.bf16.mxu0 0
        %1990 = vmatpush1.bf16.xpose.msra.mxu0 0
        %1991 = vmatprep.subr.bf16.mxu0 0
        %1992 = vmatpush1.bf16.xpose.msra.mxu0 0
        %1993 = vmatprep.subr.bf16.mxu0 0
        %1994 = vmatpush1.bf16.xpose.msra.mxu0 0
        %1995 = vmatprep.subr.bf16.mxu0 0
        %1996 = vmatpush1.bf16.xpose.msra.mxu0 0
        %1997 = vmatprep.subr.bf16.mxu0 0
        %1998 = vmatpush1.bf16.xpose.msra.mxu0 0
        %1999 = vmatprep.subr.bf16.mxu0 0
        %2000 = vmatpush1.bf16.xpose.msra.mxu0 0
        %2001 = vmatprep.subr.bf16.mxu0 0
        %2002 = vmatpush1.bf16.xpose.msra.mxu0 0
        %2003 = vmatprep.mubr.bf16.mxu0 0
        %2004 = vmatmul.mubr.bf16.gmra.mrb[0].mxu0 %v1966
        %v2005 = vpop.f32.mrb[0].mxu0
        %v2006 = vadd.f32 0.0, %v2005
        %v2007 = vpop.f32.mrb[0].mxu0
        %v2008 = vpop.f32.mrb[0].mxu0
        %v2009 = vpop.f32.mrb[0].mxu0
        %2010 = vdwg.mxu0
        %vm2011 = vcmask 36864
        %v2012 = vsel %vm2011, %v1868, -inf
        %2013 = vmax.xlane.f32.xlu0 %v2012
        %v2014 = vpop.xlane.xlu0 %2013
        %v2015 = vsel %vm2011, %v1914, -inf
        %2016 = vmax.xlane.f32.xlu0 %v2015
        %v2017 = vpop.xlane.xlu0 %2016
        %v2018 = vsel %vm2011, %v1960, -inf
        %2019 = vmax.xlane.f32.xlu0 %v2018
        %v2020 = vpop.xlane.xlu0 %2019
        %v2021 = vsel %vm2011, %v2006, -inf
        %2022 = vmax.xlane.f32.xlu0 %v2021
        %v2023 = vpop.xlane.xlu0 %2022
        %v2024 = vsub.f32 %v1868, %v2014
        %v2025 = vsub.f32 %v1914, %v2017
        %v2026 = vsub.f32 %v1960, %v2020
        %v2027 = vsub.f32 %v2006, %v2023
        %v2028 = vmul.f32 %v2024, 1.442695
        %v2029 = vpow.pop %v2028
        %v2030 = vmul.f32 %v2025, 1.442695
        %v2031 = vpow.pop %v2030
        %v2032 = vmul.f32 %v2026, 1.442695
        %v2033 = vpow.pop %v2032
        %v2034 = vmul.f32 %v2027, 1.442695
        %v2035 = vpow.pop %v2034
        %v2036 = vsel %vm2011, %v2029, 0.0
        %2037 = vadd.xlane.f32.xlu0 %v2036
        %v2038 = vpop.xlane.xlu0 %2037
        %v2039 = vsel %vm2011, %v2031, 0.0
        %2040 = vadd.xlane.f32.xlu0 %v2039
        %v2041 = vpop.xlane.xlu0 %2040
        %v2042 = vsel %vm2011, %v2033, 0.0
        %2043 = vadd.xlane.f32.xlu0 %v2042
        %v2044 = vpop.xlane.xlu0 %2043
        %v2045 = vsel %vm2011, %v2035, 0.0
        %2046 = vadd.xlane.f32.xlu0 %v2045
        %v2047 = vpop.xlane.xlu0 %2046
        %v2048 = vrcp.pop %v2038
        %v2049 = vrcp.pop %v2041
        %v2050 = vrcp.pop %v2044
        %v2051 = vrcp.pop %v2047
        %v2052 = vmul.f32 %v2029, %v2048
        %v2053 = vmul.f32 %v2031, %v2049
        %v2054 = vmul.f32 %v2033, %v2050
        %v2055 = vmul.f32 %v2035, %v2051
        %v2056 = vpack.c.bf16 %v2052, %v2052
        %v2057 = vpack.c.bf16 %v2053, %v2053
        %v2058 = vpack.c.bf16 %v2054, %v2054
        %v2059 = vpack.c.bf16 %v2055, %v2055
        %v2060 = vpack.c.bf16 %v1684, %v1684
        %v2061 = vpack.c.bf16 %v1727, %v1727
        %v2062 = vpack.c.bf16 %v1770, %v1770
        %v2063 = vpack.c.bf16 %v1813, %v1813
        %vm2064 = vcmask 39936
        %v2066 = vsel %vm2064, %v2056, 0
        %vm2068 = vcmask 1041408
        %vm2069 = vcmask 1042432
        %v2070 = vsel %vm2068, 4294967295, 65535
        %v2071 = vsel %vm2069, %v2070, 0
        %v2073 = vand.u32 %v2060, %v2071
        %2075 = vmatprep.subr.bf16.mxu0 0
        %2076 = vmatpush1.bf16.msra.mxu0 %v2073
        %2077 = vmatprep.subr.bf16.mxu0 0
        %2078 = vmatpush1.bf16.msra.mxu0 0
        %2079 = vmatprep.subr.bf16.mxu0 0
        %2080 = vmatpush1.bf16.msra.mxu0 0
        %2081 = vmatprep.subr.bf16.mxu0 0
        %2082 = vmatpush1.bf16.msra.mxu0 0
        %2083 = vmatprep.subr.bf16.mxu0 0
        %2084 = vmatpush1.bf16.msra.mxu0 0
        %2085 = vmatprep.subr.bf16.mxu0 0
        %2086 = vmatpush1.bf16.msra.mxu0 0
        %2087 = vmatprep.subr.bf16.mxu0 0
        %2088 = vmatpush1.bf16.msra.mxu0 0
        %2089 = vmatprep.subr.bf16.mxu0 0
        %2090 = vmatpush1.bf16.msra.mxu0 0
        %2091 = vmatprep.subr.bf16.mxu0 0
        %2092 = vmatpush1.bf16.msra.mxu0 0
        %2093 = vmatprep.subr.bf16.mxu0 0
        %2094 = vmatpush1.bf16.msra.mxu0 0
        %2095 = vmatprep.subr.bf16.mxu0 0
        %2096 = vmatpush1.bf16.msra.mxu0 0
        %2097 = vmatprep.subr.bf16.mxu0 0
        %2098 = vmatpush1.bf16.msra.mxu0 0
        %2099 = vmatprep.subr.bf16.mxu0 0
        %2100 = vmatpush1.bf16.msra.mxu0 0
        %2101 = vmatprep.subr.bf16.mxu0 0
        %2102 = vmatpush1.bf16.msra.mxu0 0
        %2103 = vmatprep.subr.bf16.mxu0 0
        %2104 = vmatpush1.bf16.msra.mxu0 0
        %2105 = vmatprep.subr.bf16.mxu0 0
        %2106 = vmatpush1.bf16.msra.mxu0 0
        %2107 = vmatprep.mubr.bf16.mxu0 0
        %2108 = vmatmul.mubr.bf16.gmra.mrb[0].mxu0 %v2066
        %v2109 = vpop.f32.mrb[0].mxu0
        %v2110 = vadd.f32 0.0, %v2109
        %v2111 = vpop.f32.mrb[0].mxu0
        %v2112 = vpop.f32.mrb[0].mxu0
        %v2113 = vpop.f32.mrb[0].mxu0
        %2114 = vdwg.mxu0
        %v2116 = vsel %vm2064, %v2057, 0
        %v2119 = vand.u32 %v2061, %v2071
        %2121 = vmatprep.subr.bf16.mxu0 0
        %2122 = vmatpush1.bf16.msra.mxu0 %v2119
        %2123 = vmatprep.subr.bf16.mxu0 0
        %2124 = vmatpush1.bf16.msra.mxu0 0
        %2125 = vmatprep.subr.bf16.mxu0 0
        %2126 = vmatpush1.bf16.msra.mxu0 0
        %2127 = vmatprep.subr.bf16.mxu0 0
        %2128 = vmatpush1.bf16.msra.mxu0 0
        %2129 = vmatprep.subr.bf16.mxu0 0
        %2130 = vmatpush1.bf16.msra.mxu0 0
        %2131 = vmatprep.subr.bf16.mxu0 0
        %2132 = vmatpush1.bf16.msra.mxu0 0
        %2133 = vmatprep.subr.bf16.mxu0 0
        %2134 = vmatpush1.bf16.msra.mxu0 0
        %2135 = vmatprep.subr.bf16.mxu0 0
        %2136 = vmatpush1.bf16.msra.mxu0 0
        %2137 = vmatprep.subr.bf16.mxu0 0
        %2138 = vmatpush1.bf16.msra.mxu0 0
        %2139 = vmatprep.subr.bf16.mxu0 0
        %2140 = vmatpush1.bf16.msra.mxu0 0
        %2141 = vmatprep.subr.bf16.mxu0 0
        %2142 = vmatpush1.bf16.msra.mxu0 0
        %2143 = vmatprep.subr.bf16.mxu0 0
        %2144 = vmatpush1.bf16.msra.mxu0 0
        %2145 = vmatprep.subr.bf16.mxu0 0
        %2146 = vmatpush1.bf16.msra.mxu0 0
        %2147 = vmatprep.subr.bf16.mxu0 0
        %2148 = vmatpush1.bf16.msra.mxu0 0
        %2149 = vmatprep.subr.bf16.mxu0 0
        %2150 = vmatpush1.bf16.msra.mxu0 0
        %2151 = vmatprep.subr.bf16.mxu0 0
        %2152 = vmatpush1.bf16.msra.mxu0 0
        %2153 = vmatprep.mubr.bf16.mxu0 0
        %2154 = vmatmul.mubr.bf16.gmra.mrb[0].mxu0 %v2116
        %v2155 = vpop.f32.mrb[0].mxu0
        %v2156 = vadd.f32 0.0, %v2155
        %v2157 = vpop.f32.mrb[0].mxu0
        %v2158 = vpop.f32.mrb[0].mxu0
        %v2159 = vpop.f32.mrb[0].mxu0
        %2160 = vdwg.mxu0
        %v2162 = vsel %vm2064, %v2058, 0
        %v2165 = vand.u32 %v2062, %v2071
        %2167 = vmatprep.subr.bf16.mxu0 0
        %2168 = vmatpush1.bf16.msra.mxu0 %v2165
        %2169 = vmatprep.subr.bf16.mxu0 0
        %2170 = vmatpush1.bf16.msra.mxu0 0
        %2171 = vmatprep.subr.bf16.mxu0 0
        %2172 = vmatpush1.bf16.msra.mxu0 0
        %2173 = vmatprep.subr.bf16.mxu0 0
        %2174 = vmatpush1.bf16.msra.mxu0 0
        %2175 = vmatprep.subr.bf16.mxu0 0
        %2176 = vmatpush1.bf16.msra.mxu0 0
        %2177 = vmatprep.subr.bf16.mxu0 0
        %2178 = vmatpush1.bf16.msra.mxu0 0
        %2179 = vmatprep.subr.bf16.mxu0 0
        %2180 = vmatpush1.bf16.msra.mxu0 0
        %2181 = vmatprep.subr.bf16.mxu0 0
        %2182 = vmatpush1.bf16.msra.mxu0 0
        %2183 = vmatprep.subr.bf16.mxu0 0
        %2184 = vmatpush1.bf16.msra.mxu0 0
        %2185 = vmatprep.subr.bf16.mxu0 0
        %2186 = vmatpush1.bf16.msra.mxu0 0
        %2187 = vmatprep.subr.bf16.mxu0 0
        %2188 = vmatpush1.bf16.msra.mxu0 0
        %2189 = vmatprep.subr.bf16.mxu0 0
        %2190 = vmatpush1.bf16.msra.mxu0 0
        %2191 = vmatprep.subr.bf16.mxu0 0
        %2192 = vmatpush1.bf16.msra.mxu0 0
        %2193 = vmatprep.subr.bf16.mxu0 0
        %2194 = vmatpush1.bf16.msra.mxu0 0
        %2195 = vmatprep.subr.bf16.mxu0 0
        %2196 = vmatpush1.bf16.msra.mxu0 0
        %2197 = vmatprep.subr.bf16.mxu0 0
        %2198 = vmatpush1.bf16.msra.mxu0 0
        %2199 = vmatprep.mubr.bf16.mxu0 0
        %2200 = vmatmul.mubr.bf16.gmra.mrb[0].mxu0 %v2162
        %v2201 = vpop.f32.mrb[0].mxu0
        %v2202 = vadd.f32 0.0, %v2201
        %v2203 = vpop.f32.mrb[0].mxu0
        %v2204 = vpop.f32.mrb[0].mxu0
        %v2205 = vpop.f32.mrb[0].mxu0
        %2206 = vdwg.mxu0
        %v2208 = vsel %vm2064, %v2059, 0
        %v2211 = vand.u32 %v2063, %v2071
        %2213 = vmatprep.subr.bf16.mxu0 0
        %2214 = vmatpush1.bf16.msra.mxu0 %v2211
        %2215 = vmatprep.subr.bf16.mxu0 0
        %2216 = vmatpush1.bf16.msra.mxu0 0
        %2217 = vmatprep.subr.bf16.mxu0 0
        %2218 = vmatpush1.bf16.msra.mxu0 0
        %2219 = vmatprep.subr.bf16.mxu0 0
        %2220 = vmatpush1.bf16.msra.mxu0 0
        %2221 = vmatprep.subr.bf16.mxu0 0
        %2222 = vmatpush1.bf16.msra.mxu0 0
        %2223 = vmatprep.subr.bf16.mxu0 0
        %2224 = vmatpush1.bf16.msra.mxu0 0
        %2225 = vmatprep.subr.bf16.mxu0 0
        %2226 = vmatpush1.bf16.msra.mxu0 0
        %2227 = vmatprep.subr.bf16.mxu0 0
        %2228 = vmatpush1.bf16.msra.mxu0 0
        %2229 = vmatprep.subr.bf16.mxu0 0
        %2230 = vmatpush1.bf16.msra.mxu0 0
        %2231 = vmatprep.subr.bf16.mxu0 0
        %2232 = vmatpush1.bf16.msra.mxu0 0
        %2233 = vmatprep.subr.bf16.mxu0 0
        %2234 = vmatpush1.bf16.msra.mxu0 0
        %2235 = vmatprep.subr.bf16.mxu0 0
        %2236 = vmatpush1.bf16.msra.mxu0 0
        %2237 = vmatprep.subr.bf16.mxu0 0
        %2238 = vmatpush1.bf16.msra.mxu0 0
        %2239 = vmatprep.subr.bf16.mxu0 0
        %2240 = vmatpush1.bf16.msra.mxu0 0
        %2241 = vmatprep.subr.bf16.mxu0 0
        %2242 = vmatpush1.bf16.msra.mxu0 0
        %2243 = vmatprep.subr.bf16.mxu0 0
        %2244 = vmatpush1.bf16.msra.mxu0 0
        %2245 = vmatprep.mubr.bf16.mxu0 0
        %2246 = vmatmul.mubr.bf16.gmra.mrb[0].mxu0 %v2208
        %v2247 = vpop.f32.mrb[0].mxu0
        %v2248 = vadd.f32 0.0, %v2247
        %v2249 = vpop.f32.mrb[0].mxu0
        %v2250 = vpop.f32.mrb[0].mxu0
        %v2251 = vpop.f32.mrb[0].mxu0
        %2252 = vdwg.mxu0
        %v2253 = vpack.c.bf16 %v2110, %v2110
        %v2254 = vpack.c.bf16 %v2156, %v2156
        %v2255 = vpack.c.bf16 %v2202, %v2202
        %v2256 = vpack.c.bf16 %v2248, %v2248
        %v2258 = vsel %vm1826, %v2253, 0
        %vm2260 = vcmask 1043456
        %v2262 = vsel %vm2260, %v1211, 0
        %2264 = vmatprep.subr.bf16.mxu0 0
        %2265 = vmatpush1.bf16.msra.mxu0 %v2262
        %2266 = vmatprep.subr.bf16.mxu0 0
        %2267 = vmatpush1.bf16.msra.mxu0 0
        %2268 = vmatprep.subr.bf16.mxu0 0
        %2269 = vmatpush1.bf16.msra.mxu0 0
        %2270 = vmatprep.subr.bf16.mxu0 0
        %2271 = vmatpush1.bf16.msra.mxu0 0
        %2272 = vmatprep.subr.bf16.mxu0 0
        %2273 = vmatpush1.bf16.msra.mxu0 0
        %2274 = vmatprep.subr.bf16.mxu0 0
        %2275 = vmatpush1.bf16.msra.mxu0 0
        %2276 = vmatprep.subr.bf16.mxu0 0
        %2277 = vmatpush1.bf16.msra.mxu0 0
        %2278 = vmatprep.subr.bf16.mxu0 0
        %2279 = vmatpush1.bf16.msra.mxu0 0
        %2280 = vmatprep.subr.bf16.mxu0 0
        %2281 = vmatpush1.bf16.msra.mxu0 0
        %2282 = vmatprep.subr.bf16.mxu0 0
        %2283 = vmatpush1.bf16.msra.mxu0 0
        %2284 = vmatprep.subr.bf16.mxu0 0
        %2285 = vmatpush1.bf16.msra.mxu0 0
        %2286 = vmatprep.subr.bf16.mxu0 0
        %2287 = vmatpush1.bf16.msra.mxu0 0
        %2288 = vmatprep.subr.bf16.mxu0 0
        %2289 = vmatpush1.bf16.msra.mxu0 0
        %2290 = vmatprep.subr.bf16.mxu0 0
        %2291 = vmatpush1.bf16.msra.mxu0 0
        %2292 = vmatprep.subr.bf16.mxu0 0
        %2293 = vmatpush1.bf16.msra.mxu0 0
        %2294 = vmatprep.subr.bf16.mxu0 0
        %2295 = vmatpush1.bf16.msra.mxu0 0
        %2296 = vmatprep.mubr.bf16.mxu0 0
        %2297 = vmatmul.mubr.bf16.gmra.mrb[0].mxu0 %v2258
        %v2298 = vpop.f32.mrb[0].mxu0
        %v2299 = vadd.f32 0.0, %v2298
        %v2300 = vpop.f32.mrb[0].mxu0
        %v2301 = vpop.f32.mrb[0].mxu0
        %v2302 = vpop.f32.mrb[0].mxu0
        %2303 = vdwg.mxu0
        %v2305 = vsel %vm1826, %v2254, 0
        %v2308 = vsel %vm2260, %v1212, 0
        %2310 = vmatprep.subr.bf16.mxu0 0
        %2311 = vmatpush1.bf16.msra.mxu0 %v2308
        %2312 = vmatprep.subr.bf16.mxu0 0
        %2313 = vmatpush1.bf16.msra.mxu0 0
        %2314 = vmatprep.subr.bf16.mxu0 0
        %2315 = vmatpush1.bf16.msra.mxu0 0
        %2316 = vmatprep.subr.bf16.mxu0 0
        %2317 = vmatpush1.bf16.msra.mxu0 0
        %2318 = vmatprep.subr.bf16.mxu0 0
        %2319 = vmatpush1.bf16.msra.mxu0 0
        %2320 = vmatprep.subr.bf16.mxu0 0
        %2321 = vmatpush1.bf16.msra.mxu0 0
        %2322 = vmatprep.subr.bf16.mxu0 0
        %2323 = vmatpush1.bf16.msra.mxu0 0
        %2324 = vmatprep.subr.bf16.mxu0 0
        %2325 = vmatpush1.bf16.msra.mxu0 0
        %2326 = vmatprep.subr.bf16.mxu0 0
        %2327 = vmatpush1.bf16.msra.mxu0 0
        %2328 = vmatprep.subr.bf16.mxu0 0
        %2329 = vmatpush1.bf16.msra.mxu0 0
        %2330 = vmatprep.subr.bf16.mxu0 0
        %2331 = vmatpush1.bf16.msra.mxu0 0
        %2332 = vmatprep.subr.bf16.mxu0 0
        %2333 = vmatpush1.bf16.msra.mxu0 0
        %2334 = vmatprep.subr.bf16.mxu0 0
        %2335 = vmatpush1.bf16.msra.mxu0 0
        %2336 = vmatprep.subr.bf16.mxu0 0
        %2337 = vmatpush1.bf16.msra.mxu0 0
        %2338 = vmatprep.subr.bf16.mxu0 0
        %2339 = vmatpush1.bf16.msra.mxu0 0
        %2340 = vmatprep.subr.bf16.mxu0 0
        %2341 = vmatpush1.bf16.msra.mxu0 0
        %2342 = vmatprep.mubr.bf16.mxu0 0
        %2343 = vmatmul.mubr.bf16.gmra.mrb[0].mxu0 %v2305
        %v2344 = vpop.f32.mrb[0].mxu0
        %v2345 = vadd.f32 0.0, %v2344
        %v2346 = vpop.f32.mrb[0].mxu0
        %v2347 = vpop.f32.mrb[0].mxu0
        %v2348 = vpop.f32.mrb[0].mxu0
        %2349 = vdwg.mxu0
        %v2351 = vsel %vm1826, %v2255, 0
        %v2354 = vsel %vm2260, %v1213, 0
        %2356 = vmatprep.subr.bf16.mxu0 0
        %2357 = vmatpush1.bf16.msra.mxu0 %v2354
        %2358 = vmatprep.subr.bf16.mxu0 0
        %2359 = vmatpush1.bf16.msra.mxu0 0
        %2360 = vmatprep.subr.bf16.mxu0 0
        %2361 = vmatpush1.bf16.msra.mxu0 0
        %2362 = vmatprep.subr.bf16.mxu0 0
        %2363 = vmatpush1.bf16.msra.mxu0 0
        %2364 = vmatprep.subr.bf16.mxu0 0
        %2365 = vmatpush1.bf16.msra.mxu0 0
        %2366 = vmatprep.subr.bf16.mxu0 0
        %2367 = vmatpush1.bf16.msra.mxu0 0
        %2368 = vmatprep.subr.bf16.mxu0 0
        %2369 = vmatpush1.bf16.msra.mxu0 0
        %2370 = vmatprep.subr.bf16.mxu0 0
        %2371 = vmatpush1.bf16.msra.mxu0 0
        %2372 = vmatprep.subr.bf16.mxu0 0
        %2373 = vmatpush1.bf16.msra.mxu0 0
        %2374 = vmatprep.subr.bf16.mxu0 0
        %2375 = vmatpush1.bf16.msra.mxu0 0
        %2376 = vmatprep.subr.bf16.mxu0 0
        %2377 = vmatpush1.bf16.msra.mxu0 0
        %2378 = vmatprep.subr.bf16.mxu0 0
        %2379 = vmatpush1.bf16.msra.mxu0 0
        %2380 = vmatprep.subr.bf16.mxu0 0
        %2381 = vmatpush1.bf16.msra.mxu0 0
        %2382 = vmatprep.subr.bf16.mxu0 0
        %2383 = vmatpush1.bf16.msra.mxu0 0
        %2384 = vmatprep.subr.bf16.mxu0 0
        %2385 = vmatpush1.bf16.msra.mxu0 0
        %2386 = vmatprep.subr.bf16.mxu0 0
        %2387 = vmatpush1.bf16.msra.mxu0 0
        %2388 = vmatprep.mubr.bf16.mxu0 0
        %2389 = vmatmul.mubr.bf16.gmra.mrb[0].mxu0 %v2351
        %v2390 = vpop.f32.mrb[0].mxu0
        %v2391 = vadd.f32 0.0, %v2390
        %v2392 = vpop.f32.mrb[0].mxu0
        %v2393 = vpop.f32.mrb[0].mxu0
        %v2394 = vpop.f32.mrb[0].mxu0
        %2395 = vdwg.mxu0
        %v2397 = vsel %vm1826, %v2256, 0
        %v2400 = vsel %vm2260, %v1214, 0
        %2402 = vmatprep.subr.bf16.mxu0 0
        %2403 = vmatpush1.bf16.msra.mxu0 %v2400
        %2404 = vmatprep.subr.bf16.mxu0 0
        %2405 = vmatpush1.bf16.msra.mxu0 0
        %2406 = vmatprep.subr.bf16.mxu0 0
        %2407 = vmatpush1.bf16.msra.mxu0 0
        %2408 = vmatprep.subr.bf16.mxu0 0
        %2409 = vmatpush1.bf16.msra.mxu0 0
        %2410 = vmatprep.subr.bf16.mxu0 0
        %2411 = vmatpush1.bf16.msra.mxu0 0
        %2412 = vmatprep.subr.bf16.mxu0 0
        %2413 = vmatpush1.bf16.msra.mxu0 0
        %2414 = vmatprep.subr.bf16.mxu0 0
        %2415 = vmatpush1.bf16.msra.mxu0 0
        %2416 = vmatprep.subr.bf16.mxu0 0
        %2417 = vmatpush1.bf16.msra.mxu0 0
        %2418 = vmatprep.subr.bf16.mxu0 0
        %2419 = vmatpush1.bf16.msra.mxu0 0
        %2420 = vmatprep.subr.bf16.mxu0 0
        %2421 = vmatpush1.bf16.msra.mxu0 0
        %2422 = vmatprep.subr.bf16.mxu0 0
        %2423 = vmatpush1.bf16.msra.mxu0 0
        %2424 = vmatprep.subr.bf16.mxu0 0
        %2425 = vmatpush1.bf16.msra.mxu0 0
        %2426 = vmatprep.subr.bf16.mxu0 0
        %2427 = vmatpush1.bf16.msra.mxu0 0
        %2428 = vmatprep.subr.bf16.mxu0 0
        %2429 = vmatpush1.bf16.msra.mxu0 0
        %2430 = vmatprep.subr.bf16.mxu0 0
        %2431 = vmatpush1.bf16.msra.mxu0 0
        %2432 = vmatprep.subr.bf16.mxu0 0
        %2433 = vmatpush1.bf16.msra.mxu0 0
        %2434 = vmatprep.mubr.bf16.mxu0 0
        %2435 = vmatmul.mubr.bf16.gmra.mrb[0].mxu0 %v2397
        %v2436 = vpop.f32.mrb[0].mxu0
        %v2437 = vadd.f32 0.0, %v2436
        %v2438 = vpop.f32.mrb[0].mxu0
        %v2439 = vpop.f32.mrb[0].mxu0
        %v2440 = vpop.f32.mrb[0].mxu0
        %2441 = vdwg.mxu0
        %vm2442 = vcmask 258048
        %v2443 = vsel %vm2442, %v2299, 0.0
        %v2444 = vsel %vm2442, %v2345, 0.0
        %v2445 = vadd.f32 %v2443, %v2444
        %v2446 = vsel %vm2442, %v2391, 0.0
        %v2447 = vadd.f32 %v2445, %v2446
        %v2448 = vsel %vm2442, %v2437, 0.0
        %v2449 = vadd.f32 %v2447, %v2448
        %v2450 = vshrl.u32 %v1198, 16
        %v2452 = vrot.slane %v2450, 2
        %v2453 = vshll.u32 %v1198, 16
        %v2455 = vrot.slane %v2453, 3
        %v2456 = vor.u32 %v2452, %v2455
        %v2458 = vsel %vm1153, %v2456, 0
        %2460 = vmatprep.subr.bf16.mxu0 0
        %2461 = vmatpush1.bf16.xpose.msra.mxu0 %v1255
        %2462 = vmatprep.subr.bf16.mxu0 0
        %2463 = vmatpush1.bf16.xpose.msra.mxu0 0
        %2464 = vmatprep.subr.bf16.mxu0 0
        %2465 = vmatpush1.bf16.xpose.msra.mxu0 0
        %2466 = vmatprep.subr.bf16.mxu0 0
        %2467 = vmatpush1.bf16.xpose.msra.mxu0 0
        %2468 = vmatprep.subr.bf16.mxu0 0
        %2469 = vmatpush1.bf16.xpose.msra.mxu0 0
        %2470 = vmatprep.subr.bf16.mxu0 0
        %2471 = vmatpush1.bf16.xpose.msra.mxu0 0
        %2472 = vmatprep.subr.bf16.mxu0 0
        %2473 = vmatpush1.bf16.xpose.msra.mxu0 0
        %2474 = vmatprep.subr.bf16.mxu0 0
        %2475 = vmatpush1.bf16.xpose.msra.mxu0 0
        %2476 = vmatprep.subr.bf16.mxu0 0
        %2477 = vmatpush1.bf16.xpose.msra.mxu0 0
        %2478 = vmatprep.subr.bf16.mxu0 0
        %2479 = vmatpush1.bf16.xpose.msra.mxu0 0
        %2480 = vmatprep.subr.bf16.mxu0 0
        %2481 = vmatpush1.bf16.xpose.msra.mxu0 0
        %2482 = vmatprep.subr.bf16.mxu0 0
        %2483 = vmatpush1.bf16.xpose.msra.mxu0 0
        %2484 = vmatprep.subr.bf16.mxu0 0
        %2485 = vmatpush1.bf16.xpose.msra.mxu0 0
        %2486 = vmatprep.subr.bf16.mxu0 0
        %2487 = vmatpush1.bf16.xpose.msra.mxu0 0
        %2488 = vmatprep.subr.bf16.mxu0 0
        %2489 = vmatpush1.bf16.xpose.msra.mxu0 0
        %2490 = vmatprep.subr.bf16.mxu0 0
        %2491 = vmatpush1.bf16.xpose.msra.mxu0 0
        %2492 = vmatprep.mubr.bf16.mxu0 0
        %2493 = vmatmul.mubr.bf16.gmra.mrb[0].mxu0 %v2458
        %v2494 = vpop.f32.mrb[0].mxu0
        %v2495 = vadd.f32 %v1234, %v2494
        %v2496 = vpop.f32.mrb[0].mxu0
        %v2497 = vpop.f32.mrb[0].mxu0
        %v2498 = vpop.f32.mrb[0].mxu0
        %2499 = vdwg.mxu0
        %2500 = vmatprep.subr.bf16.mxu0 0
        %2501 = vmatpush1.bf16.xpose.msra.mxu0 %v1298
        %2502 = vmatprep.subr.bf16.mxu0 0
        %2503 = vmatpush1.bf16.xpose.msra.mxu0 0
        %2504 = vmatprep.subr.bf16.mxu0 0
        %2505 = vmatpush1.bf16.xpose.msra.mxu0 0
        %2506 = vmatprep.subr.bf16.mxu0 0
        %2507 = vmatpush1.bf16.xpose.msra.mxu0 0
        %2508 = vmatprep.subr.bf16.mxu0 0
        %2509 = vmatpush1.bf16.xpose.msra.mxu0 0
        %2510 = vmatprep.subr.bf16.mxu0 0
        %2511 = vmatpush1.bf16.xpose.msra.mxu0 0
        %2512 = vmatprep.subr.bf16.mxu0 0
        %2513 = vmatpush1.bf16.xpose.msra.mxu0 0
        %2514 = vmatprep.subr.bf16.mxu0 0
        %2515 = vmatpush1.bf16.xpose.msra.mxu0 0
        %2516 = vmatprep.subr.bf16.mxu0 0
        %2517 = vmatpush1.bf16.xpose.msra.mxu0 0
        %2518 = vmatprep.subr.bf16.mxu0 0
        %2519 = vmatpush1.bf16.xpose.msra.mxu0 0
        %2520 = vmatprep.subr.bf16.mxu0 0
        %2521 = vmatpush1.bf16.xpose.msra.mxu0 0
        %2522 = vmatprep.subr.bf16.mxu0 0
        %2523 = vmatpush1.bf16.xpose.msra.mxu0 0
        %2524 = vmatprep.subr.bf16.mxu0 0
        %2525 = vmatpush1.bf16.xpose.msra.mxu0 0
        %2526 = vmatprep.subr.bf16.mxu0 0
        %2527 = vmatpush1.bf16.xpose.msra.mxu0 0
        %2528 = vmatprep.subr.bf16.mxu0 0
        %2529 = vmatpush1.bf16.xpose.msra.mxu0 0
        %2530 = vmatprep.subr.bf16.mxu0 0
        %2531 = vmatpush1.bf16.xpose.msra.mxu0 0
        %2532 = vmatprep.mubr.bf16.mxu0 0
        %2533 = vmatmul.mubr.bf16.gmra.mrb[0].mxu0 %v2458
        %v2534 = vpop.f32.mrb[0].mxu0
        %v2535 = vadd.f32 %v1238, %v2534
        %v2536 = vpop.f32.mrb[0].mxu0
        %v2537 = vpop.f32.mrb[0].mxu0
        %v2538 = vpop.f32.mrb[0].mxu0
        %2539 = vdwg.mxu0
        %2540 = vmatprep.subr.bf16.mxu0 0
        %2541 = vmatpush1.bf16.xpose.msra.mxu0 %v1341
        %2542 = vmatprep.subr.bf16.mxu0 0
        %2543 = vmatpush1.bf16.xpose.msra.mxu0 0
        %2544 = vmatprep.subr.bf16.mxu0 0
        %2545 = vmatpush1.bf16.xpose.msra.mxu0 0
        %2546 = vmatprep.subr.bf16.mxu0 0
        %2547 = vmatpush1.bf16.xpose.msra.mxu0 0
        %2548 = vmatprep.subr.bf16.mxu0 0
        %2549 = vmatpush1.bf16.xpose.msra.mxu0 0
        %2550 = vmatprep.subr.bf16.mxu0 0
        %2551 = vmatpush1.bf16.xpose.msra.mxu0 0
        %2552 = vmatprep.subr.bf16.mxu0 0
        %2553 = vmatpush1.bf16.xpose.msra.mxu0 0
        %2554 = vmatprep.subr.bf16.mxu0 0
        %2555 = vmatpush1.bf16.xpose.msra.mxu0 0
        %2556 = vmatprep.subr.bf16.mxu0 0
        %2557 = vmatpush1.bf16.xpose.msra.mxu0 0
        %2558 = vmatprep.subr.bf16.mxu0 0
        %2559 = vmatpush1.bf16.xpose.msra.mxu0 0
        %2560 = vmatprep.subr.bf16.mxu0 0
        %2561 = vmatpush1.bf16.xpose.msra.mxu0 0
        %2562 = vmatprep.subr.bf16.mxu0 0
        %2563 = vmatpush1.bf16.xpose.msra.mxu0 0
        %2564 = vmatprep.subr.bf16.mxu0 0
        %2565 = vmatpush1.bf16.xpose.msra.mxu0 0
        %2566 = vmatprep.subr.bf16.mxu0 0
        %2567 = vmatpush1.bf16.xpose.msra.mxu0 0
        %2568 = vmatprep.subr.bf16.mxu0 0
        %2569 = vmatpush1.bf16.xpose.msra.mxu0 0
        %2570 = vmatprep.subr.bf16.mxu0 0
        %2571 = vmatpush1.bf16.xpose.msra.mxu0 0
        %2572 = vmatprep.mubr.bf16.mxu0 0
        %2573 = vmatmul.mubr.bf16.gmra.mrb[0].mxu0 %v2458
        %v2574 = vpop.f32.mrb[0].mxu0
        %v2575 = vadd.f32 %v1242, %v2574
        %v2576 = vpop.f32.mrb[0].mxu0
        %v2577 = vpop.f32.mrb[0].mxu0
        %v2578 = vpop.f32.mrb[0].mxu0
        %2579 = vdwg.mxu0
        %2580 = vmatprep.subr.bf16.mxu0 0
        %2581 = vmatpush1.bf16.xpose.msra.mxu0 %v1384
        %2582 = vmatprep.subr.bf16.mxu0 0
        %2583 = vmatpush1.bf16.xpose.msra.mxu0 0
        %2584 = vmatprep.subr.bf16.mxu0 0
        %2585 = vmatpush1.bf16.xpose.msra.mxu0 0
        %2586 = vmatprep.subr.bf16.mxu0 0
        %2587 = vmatpush1.bf16.xpose.msra.mxu0 0
        %2588 = vmatprep.subr.bf16.mxu0 0
        %2589 = vmatpush1.bf16.xpose.msra.mxu0 0
        %2590 = vmatprep.subr.bf16.mxu0 0
        %2591 = vmatpush1.bf16.xpose.msra.mxu0 0
        %2592 = vmatprep.subr.bf16.mxu0 0
        %2593 = vmatpush1.bf16.xpose.msra.mxu0 0
        %2594 = vmatprep.subr.bf16.mxu0 0
        %2595 = vmatpush1.bf16.xpose.msra.mxu0 0
        %2596 = vmatprep.subr.bf16.mxu0 0
        %2597 = vmatpush1.bf16.xpose.msra.mxu0 0
        %2598 = vmatprep.subr.bf16.mxu0 0
        %2599 = vmatpush1.bf16.xpose.msra.mxu0 0
        %2600 = vmatprep.subr.bf16.mxu0 0
        %2601 = vmatpush1.bf16.xpose.msra.mxu0 0
        %2602 = vmatprep.subr.bf16.mxu0 0
        %2603 = vmatpush1.bf16.xpose.msra.mxu0 0
        %2604 = vmatprep.subr.bf16.mxu0 0
        %2605 = vmatpush1.bf16.xpose.msra.mxu0 0
        %2606 = vmatprep.subr.bf16.mxu0 0
        %2607 = vmatpush1.bf16.xpose.msra.mxu0 0
        %2608 = vmatprep.subr.bf16.mxu0 0
        %2609 = vmatpush1.bf16.xpose.msra.mxu0 0
        %2610 = vmatprep.subr.bf16.mxu0 0
        %2611 = vmatpush1.bf16.xpose.msra.mxu0 0
        %2612 = vmatprep.mubr.bf16.mxu0 0
        %2613 = vmatmul.mubr.bf16.gmra.mrb[0].mxu0 %v2458
        %v2614 = vpop.f32.mrb[0].mxu0
        %v2615 = vadd.f32 %v1246, %v2614
        %v2616 = vpop.f32.mrb[0].mxu0
        %v2617 = vpop.f32.mrb[0].mxu0
        %v2618 = vpop.f32.mrb[0].mxu0
        %2619 = vdwg.mxu0
        %2620 = vmatprep.subr.bf16.mxu0 0
        %2621 = vmatpush1.bf16.xpose.msra.mxu0 %v1451
        %2622 = vmatprep.subr.bf16.mxu0 0
        %2623 = vmatpush1.bf16.xpose.msra.mxu0 0
        %2624 = vmatprep.subr.bf16.mxu0 0
        %2625 = vmatpush1.bf16.xpose.msra.mxu0 0
        %2626 = vmatprep.subr.bf16.mxu0 0
        %2627 = vmatpush1.bf16.xpose.msra.mxu0 0
        %2628 = vmatprep.subr.bf16.mxu0 0
        %2629 = vmatpush1.bf16.xpose.msra.mxu0 0
        %2630 = vmatprep.subr.bf16.mxu0 0
        %2631 = vmatpush1.bf16.xpose.msra.mxu0 0
        %2632 = vmatprep.subr.bf16.mxu0 0
        %2633 = vmatpush1.bf16.xpose.msra.mxu0 0
        %2634 = vmatprep.subr.bf16.mxu0 0
        %2635 = vmatpush1.bf16.xpose.msra.mxu0 0
        %2636 = vmatprep.subr.bf16.mxu0 0
        %2637 = vmatpush1.bf16.xpose.msra.mxu0 0
        %2638 = vmatprep.subr.bf16.mxu0 0
        %2639 = vmatpush1.bf16.xpose.msra.mxu0 0
        %2640 = vmatprep.subr.bf16.mxu0 0
        %2641 = vmatpush1.bf16.xpose.msra.mxu0 0
        %2642 = vmatprep.subr.bf16.mxu0 0
        %2643 = vmatpush1.bf16.xpose.msra.mxu0 0
        %2644 = vmatprep.subr.bf16.mxu0 0
        %2645 = vmatpush1.bf16.xpose.msra.mxu0 0
        %2646 = vmatprep.subr.bf16.mxu0 0
        %2647 = vmatpush1.bf16.xpose.msra.mxu0 0
        %2648 = vmatprep.subr.bf16.mxu0 0
        %2649 = vmatpush1.bf16.xpose.msra.mxu0 0
        %2650 = vmatprep.subr.bf16.mxu0 0
        %2651 = vmatpush1.bf16.xpose.msra.mxu0 0
        %2652 = vmatprep.mubr.bf16.mxu0 0
        %2653 = vmatmul.mubr.bf16.gmra.mrb[0].mxu0 %v2458
        %v2654 = vpop.f32.mrb[0].mxu0
        %v2655 = vadd.f32 %v1433, %v2654
        %v2656 = vpop.f32.mrb[0].mxu0
        %v2657 = vpop.f32.mrb[0].mxu0
        %v2658 = vpop.f32.mrb[0].mxu0
        %2659 = vdwg.mxu0
        %2660 = vmatprep.subr.bf16.mxu0 0
        %2661 = vmatpush1.bf16.xpose.msra.mxu0 %v1494
        %2662 = vmatprep.subr.bf16.mxu0 0
        %2663 = vmatpush1.bf16.xpose.msra.mxu0 0
        %2664 = vmatprep.subr.bf16.mxu0 0
        %2665 = vmatpush1.bf16.xpose.msra.mxu0 0
        %2666 = vmatprep.subr.bf16.mxu0 0
        %2667 = vmatpush1.bf16.xpose.msra.mxu0 0
        %2668 = vmatprep.subr.bf16.mxu0 0
        %2669 = vmatpush1.bf16.xpose.msra.mxu0 0
        %2670 = vmatprep.subr.bf16.mxu0 0
        %2671 = vmatpush1.bf16.xpose.msra.mxu0 0
        %2672 = vmatprep.subr.bf16.mxu0 0
        %2673 = vmatpush1.bf16.xpose.msra.mxu0 0
        %2674 = vmatprep.subr.bf16.mxu0 0
        %2675 = vmatpush1.bf16.xpose.msra.mxu0 0
        %2676 = vmatprep.subr.bf16.mxu0 0
        %2677 = vmatpush1.bf16.xpose.msra.mxu0 0
        %2678 = vmatprep.subr.bf16.mxu0 0
        %2679 = vmatpush1.bf16.xpose.msra.mxu0 0
        %2680 = vmatprep.subr.bf16.mxu0 0
        %2681 = vmatpush1.bf16.xpose.msra.mxu0 0
        %2682 = vmatprep.subr.bf16.mxu0 0
        %2683 = vmatpush1.bf16.xpose.msra.mxu0 0
        %2684 = vmatprep.subr.bf16.mxu0 0
        %2685 = vmatpush1.bf16.xpose.msra.mxu0 0
        %2686 = vmatprep.subr.bf16.mxu0 0
        %2687 = vmatpush1.bf16.xpose.msra.mxu0 0
        %2688 = vmatprep.subr.bf16.mxu0 0
        %2689 = vmatpush1.bf16.xpose.msra.mxu0 0
        %2690 = vmatprep.subr.bf16.mxu0 0
        %2691 = vmatpush1.bf16.xpose.msra.mxu0 0
        %2692 = vmatprep.mubr.bf16.mxu0 0
        %2693 = vmatmul.mubr.bf16.gmra.mrb[0].mxu0 %v2458
        %v2694 = vpop.f32.mrb[0].mxu0
        %v2695 = vadd.f32 %v1437, %v2694
        %v2696 = vpop.f32.mrb[0].mxu0
        %v2697 = vpop.f32.mrb[0].mxu0
        %v2698 = vpop.f32.mrb[0].mxu0
        %2699 = vdwg.mxu0
        %2700 = vmatprep.subr.bf16.mxu0 0
        %2701 = vmatpush1.bf16.xpose.msra.mxu0 %v1537
        %2702 = vmatprep.subr.bf16.mxu0 0
        %2703 = vmatpush1.bf16.xpose.msra.mxu0 0
        %2704 = vmatprep.subr.bf16.mxu0 0
        %2705 = vmatpush1.bf16.xpose.msra.mxu0 0
        %2706 = vmatprep.subr.bf16.mxu0 0
        %2707 = vmatpush1.bf16.xpose.msra.mxu0 0
        %2708 = vmatprep.subr.bf16.mxu0 0
        %2709 = vmatpush1.bf16.xpose.msra.mxu0 0
        %2710 = vmatprep.subr.bf16.mxu0 0
        %2711 = vmatpush1.bf16.xpose.msra.mxu0 0
        %2712 = vmatprep.subr.bf16.mxu0 0
        %2713 = vmatpush1.bf16.xpose.msra.mxu0 0
        %2714 = vmatprep.subr.bf16.mxu0 0
        %2715 = vmatpush1.bf16.xpose.msra.mxu0 0
        %2716 = vmatprep.subr.bf16.mxu0 0
        %2717 = vmatpush1.bf16.xpose.msra.mxu0 0
        %2718 = vmatprep.subr.bf16.mxu0 0
        %2719 = vmatpush1.bf16.xpose.msra.mxu0 0
        %2720 = vmatprep.subr.bf16.mxu0 0
        %2721 = vmatpush1.bf16.xpose.msra.mxu0 0
        %2722 = vmatprep.subr.bf16.mxu0 0
        %2723 = vmatpush1.bf16.xpose.msra.mxu0 0
        %2724 = vmatprep.subr.bf16.mxu0 0
        %2725 = vmatpush1.bf16.xpose.msra.mxu0 0
        %2726 = vmatprep.subr.bf16.mxu0 0
        %2727 = vmatpush1.bf16.xpose.msra.mxu0 0
        %2728 = vmatprep.subr.bf16.mxu0 0
        %2729 = vmatpush1.bf16.xpose.msra.mxu0 0
        %2730 = vmatprep.subr.bf16.mxu0 0
        %2731 = vmatpush1.bf16.xpose.msra.mxu0 0
        %2732 = vmatprep.mubr.bf16.mxu0 0
        %2733 = vmatmul.mubr.bf16.gmra.mrb[0].mxu0 %v2458
        %v2734 = vpop.f32.mrb[0].mxu0
        %v2735 = vadd.f32 %v1441, %v2734
        %v2736 = vpop.f32.mrb[0].mxu0
        %v2737 = vpop.f32.mrb[0].mxu0
        %v2738 = vpop.f32.mrb[0].mxu0
        %2739 = vdwg.mxu0
        %2740 = vmatprep.subr.bf16.mxu0 0
        %2741 = vmatpush1.bf16.xpose.msra.mxu0 %v1580
        %2742 = vmatprep.subr.bf16.mxu0 0
        %2743 = vmatpush1.bf16.xpose.msra.mxu0 0
        %2744 = vmatprep.subr.bf16.mxu0 0
        %2745 = vmatpush1.bf16.xpose.msra.mxu0 0
        %2746 = vmatprep.subr.bf16.mxu0 0
        %2747 = vmatpush1.bf16.xpose.msra.mxu0 0
        %2748 = vmatprep.subr.bf16.mxu0 0
        %2749 = vmatpush1.bf16.xpose.msra.mxu0 0
        %2750 = vmatprep.subr.bf16.mxu0 0
        %2751 = vmatpush1.bf16.xpose.msra.mxu0 0
        %2752 = vmatprep.subr.bf16.mxu0 0
        %2753 = vmatpush1.bf16.xpose.msra.mxu0 0
        %2754 = vmatprep.subr.bf16.mxu0 0
        %2755 = vmatpush1.bf16.xpose.msra.mxu0 0
        %2756 = vmatprep.subr.bf16.mxu0 0
        %2757 = vmatpush1.bf16.xpose.msra.mxu0 0
        %2758 = vmatprep.subr.bf16.mxu0 0
        %2759 = vmatpush1.bf16.xpose.msra.mxu0 0
        %2760 = vmatprep.subr.bf16.mxu0 0
        %2761 = vmatpush1.bf16.xpose.msra.mxu0 0
        %2762 = vmatprep.subr.bf16.mxu0 0
        %2763 = vmatpush1.bf16.xpose.msra.mxu0 0
        %2764 = vmatprep.subr.bf16.mxu0 0
        %2765 = vmatpush1.bf16.xpose.msra.mxu0 0
        %2766 = vmatprep.subr.bf16.mxu0 0
        %2767 = vmatpush1.bf16.xpose.msra.mxu0 0
        %2768 = vmatprep.subr.bf16.mxu0 0
        %2769 = vmatpush1.bf16.xpose.msra.mxu0 0
        %2770 = vmatprep.subr.bf16.mxu0 0
        %2771 = vmatpush1.bf16.xpose.msra.mxu0 0
        %2772 = vmatprep.mubr.bf16.mxu0 0
        %2773 = vmatmul.mubr.bf16.gmra.mrb[0].mxu0 %v2458
        %v2774 = vpop.f32.mrb[0].mxu0
        %v2775 = vadd.f32 %v1445, %v2774
        %v2776 = vpop.f32.mrb[0].mxu0
        %v2777 = vpop.f32.mrb[0].mxu0
        %v2778 = vpop.f32.mrb[0].mxu0
        %2779 = vdwg.mxu0
        %2780 = vmatprep.subr.bf16.mxu0 0
        %2781 = vmatpush1.bf16.xpose.msra.mxu0 %v1647
        %2782 = vmatprep.subr.bf16.mxu0 0
        %2783 = vmatpush1.bf16.xpose.msra.mxu0 0
        %2784 = vmatprep.subr.bf16.mxu0 0
        %2785 = vmatpush1.bf16.xpose.msra.mxu0 0
        %2786 = vmatprep.subr.bf16.mxu0 0
        %2787 = vmatpush1.bf16.xpose.msra.mxu0 0
        %2788 = vmatprep.subr.bf16.mxu0 0
        %2789 = vmatpush1.bf16.xpose.msra.mxu0 0
        %2790 = vmatprep.subr.bf16.mxu0 0
        %2791 = vmatpush1.bf16.xpose.msra.mxu0 0
        %2792 = vmatprep.subr.bf16.mxu0 0
        %2793 = vmatpush1.bf16.xpose.msra.mxu0 0
        %2794 = vmatprep.subr.bf16.mxu0 0
        %2795 = vmatpush1.bf16.xpose.msra.mxu0 0
        %2796 = vmatprep.subr.bf16.mxu0 0
        %2797 = vmatpush1.bf16.xpose.msra.mxu0 0
        %2798 = vmatprep.subr.bf16.mxu0 0
        %2799 = vmatpush1.bf16.xpose.msra.mxu0 0
        %2800 = vmatprep.subr.bf16.mxu0 0
        %2801 = vmatpush1.bf16.xpose.msra.mxu0 0
        %2802 = vmatprep.subr.bf16.mxu0 0
        %2803 = vmatpush1.bf16.xpose.msra.mxu0 0
        %2804 = vmatprep.subr.bf16.mxu0 0
        %2805 = vmatpush1.bf16.xpose.msra.mxu0 0
        %2806 = vmatprep.subr.bf16.mxu0 0
        %2807 = vmatpush1.bf16.xpose.msra.mxu0 0
        %2808 = vmatprep.subr.bf16.mxu0 0
        %2809 = vmatpush1.bf16.xpose.msra.mxu0 0
        %2810 = vmatprep.subr.bf16.mxu0 0
        %2811 = vmatpush1.bf16.xpose.msra.mxu0 0
        %2812 = vmatprep.mubr.bf16.mxu0 0
        %2813 = vmatmul.mubr.bf16.gmra.mrb[0].mxu0 %v2458
        %v2814 = vpop.f32.mrb[0].mxu0
        %v2815 = vadd.f32 %v1629, %v2814
        %v2816 = vpop.f32.mrb[0].mxu0
        %v2817 = vpop.f32.mrb[0].mxu0
        %v2818 = vpop.f32.mrb[0].mxu0
        %2819 = vdwg.mxu0
        %2820 = vmatprep.subr.bf16.mxu0 0
        %2821 = vmatpush1.bf16.xpose.msra.mxu0 %v1690
        %2822 = vmatprep.subr.bf16.mxu0 0
        %2823 = vmatpush1.bf16.xpose.msra.mxu0 0
        %2824 = vmatprep.subr.bf16.mxu0 0
        %2825 = vmatpush1.bf16.xpose.msra.mxu0 0
        %2826 = vmatprep.subr.bf16.mxu0 0
        %2827 = vmatpush1.bf16.xpose.msra.mxu0 0
        %2828 = vmatprep.subr.bf16.mxu0 0
        %2829 = vmatpush1.bf16.xpose.msra.mxu0 0
        %2830 = vmatprep.subr.bf16.mxu0 0
        %2831 = vmatpush1.bf16.xpose.msra.mxu0 0
        %2832 = vmatprep.subr.bf16.mxu0 0
        %2833 = vmatpush1.bf16.xpose.msra.mxu0 0
        %2834 = vmatprep.subr.bf16.mxu0 0
        %2835 = vmatpush1.bf16.xpose.msra.mxu0 0
        %2836 = vmatprep.subr.bf16.mxu0 0
        %2837 = vmatpush1.bf16.xpose.msra.mxu0 0
        %2838 = vmatprep.subr.bf16.mxu0 0
        %2839 = vmatpush1.bf16.xpose.msra.mxu0 0
        %2840 = vmatprep.subr.bf16.mxu0 0
        %2841 = vmatpush1.bf16.xpose.msra.mxu0 0
        %2842 = vmatprep.subr.bf16.mxu0 0
        %2843 = vmatpush1.bf16.xpose.msra.mxu0 0
        %2844 = vmatprep.subr.bf16.mxu0 0
        %2845 = vmatpush1.bf16.xpose.msra.mxu0 0
        %2846 = vmatprep.subr.bf16.mxu0 0
        %2847 = vmatpush1.bf16.xpose.msra.mxu0 0
        %2848 = vmatprep.subr.bf16.mxu0 0
        %2849 = vmatpush1.bf16.xpose.msra.mxu0 0
        %2850 = vmatprep.subr.bf16.mxu0 0
        %2851 = vmatpush1.bf16.xpose.msra.mxu0 0
        %2852 = vmatprep.mubr.bf16.mxu0 0
        %2853 = vmatmul.mubr.bf16.gmra.mrb[0].mxu0 %v2458
        %v2854 = vpop.f32.mrb[0].mxu0
        %v2855 = vadd.f32 %v1633, %v2854
        %v2856 = vpop.f32.mrb[0].mxu0
        %v2857 = vpop.f32.mrb[0].mxu0
        %v2858 = vpop.f32.mrb[0].mxu0
        %2859 = vdwg.mxu0
        %2860 = vmatprep.subr.bf16.mxu0 0
        %2861 = vmatpush1.bf16.xpose.msra.mxu0 %v1733
        %2862 = vmatprep.subr.bf16.mxu0 0
        %2863 = vmatpush1.bf16.xpose.msra.mxu0 0
        %2864 = vmatprep.subr.bf16.mxu0 0
        %2865 = vmatpush1.bf16.xpose.msra.mxu0 0
        %2866 = vmatprep.subr.bf16.mxu0 0
        %2867 = vmatpush1.bf16.xpose.msra.mxu0 0
        %2868 = vmatprep.subr.bf16.mxu0 0
        %2869 = vmatpush1.bf16.xpose.msra.mxu0 0
        %2870 = vmatprep.subr.bf16.mxu0 0
        %2871 = vmatpush1.bf16.xpose.msra.mxu0 0
        %2872 = vmatprep.subr.bf16.mxu0 0
        %2873 = vmatpush1.bf16.xpose.msra.mxu0 0
        %2874 = vmatprep.subr.bf16.mxu0 0
        %2875 = vmatpush1.bf16.xpose.msra.mxu0 0
        %2876 = vmatprep.subr.bf16.mxu0 0
        %2877 = vmatpush1.bf16.xpose.msra.mxu0 0
        %2878 = vmatprep.subr.bf16.mxu0 0
        %2879 = vmatpush1.bf16.xpose.msra.mxu0 0
        %2880 = vmatprep.subr.bf16.mxu0 0
        %2881 = vmatpush1.bf16.xpose.msra.mxu0 0
        %2882 = vmatprep.subr.bf16.mxu0 0
        %2883 = vmatpush1.bf16.xpose.msra.mxu0 0
        %2884 = vmatprep.subr.bf16.mxu0 0
        %2885 = vmatpush1.bf16.xpose.msra.mxu0 0
        %2886 = vmatprep.subr.bf16.mxu0 0
        %2887 = vmatpush1.bf16.xpose.msra.mxu0 0
        %2888 = vmatprep.subr.bf16.mxu0 0
        %2889 = vmatpush1.bf16.xpose.msra.mxu0 0
        %2890 = vmatprep.subr.bf16.mxu0 0
        %2891 = vmatpush1.bf16.xpose.msra.mxu0 0
        %2892 = vmatprep.mubr.bf16.mxu0 0
        %2893 = vmatmul.mubr.bf16.gmra.mrb[0].mxu0 %v2458
        %v2894 = vpop.f32.mrb[0].mxu0
        %v2895 = vadd.f32 %v1637, %v2894
        %v2896 = vpop.f32.mrb[0].mxu0
        %v2897 = vpop.f32.mrb[0].mxu0
        %v2898 = vpop.f32.mrb[0].mxu0
        %2899 = vdwg.mxu0
        %2900 = vmatprep.subr.bf16.mxu0 0
        %2901 = vmatpush1.bf16.xpose.msra.mxu0 %v1776
        %2902 = vmatprep.subr.bf16.mxu0 0
        %2903 = vmatpush1.bf16.xpose.msra.mxu0 0
        %2904 = vmatprep.subr.bf16.mxu0 0
        %2905 = vmatpush1.bf16.xpose.msra.mxu0 0
        %2906 = vmatprep.subr.bf16.mxu0 0
        %2907 = vmatpush1.bf16.xpose.msra.mxu0 0
        %2908 = vmatprep.subr.bf16.mxu0 0
        %2909 = vmatpush1.bf16.xpose.msra.mxu0 0
        %2910 = vmatprep.subr.bf16.mxu0 0
        %2911 = vmatpush1.bf16.xpose.msra.mxu0 0
        %2912 = vmatprep.subr.bf16.mxu0 0
        %2913 = vmatpush1.bf16.xpose.msra.mxu0 0
        %2914 = vmatprep.subr.bf16.mxu0 0
        %2915 = vmatpush1.bf16.xpose.msra.mxu0 0
        %2916 = vmatprep.subr.bf16.mxu0 0
        %2917 = vmatpush1.bf16.xpose.msra.mxu0 0
        %2918 = vmatprep.subr.bf16.mxu0 0
        %2919 = vmatpush1.bf16.xpose.msra.mxu0 0
        %2920 = vmatprep.subr.bf16.mxu0 0
        %2921 = vmatpush1.bf16.xpose.msra.mxu0 0
        %2922 = vmatprep.subr.bf16.mxu0 0
        %2923 = vmatpush1.bf16.xpose.msra.mxu0 0
        %2924 = vmatprep.subr.bf16.mxu0 0
        %2925 = vmatpush1.bf16.xpose.msra.mxu0 0
        %2926 = vmatprep.subr.bf16.mxu0 0
        %2927 = vmatpush1.bf16.xpose.msra.mxu0 0
        %2928 = vmatprep.subr.bf16.mxu0 0
        %2929 = vmatpush1.bf16.xpose.msra.mxu0 0
        %2930 = vmatprep.subr.bf16.mxu0 0
        %2931 = vmatpush1.bf16.xpose.msra.mxu0 0
        %2932 = vmatprep.mubr.bf16.mxu0 0
        %2933 = vmatmul.mubr.bf16.gmra.mrb[0].mxu0 %v2458
        %v2934 = vpop.f32.mrb[0].mxu0
        %v2935 = vadd.f32 %v1641, %v2934
        %v2936 = vpop.f32.mrb[0].mxu0
        %v2937 = vpop.f32.mrb[0].mxu0
        %v2938 = vpop.f32.mrb[0].mxu0
        %2939 = vdwg.mxu0
        %v2940 = vpack.c.bf16 %v2495, %v2495
        %v2941 = vpack.c.bf16 %v2535, %v2535
        %v2942 = vpack.c.bf16 %v2575, %v2575
        %v2943 = vpack.c.bf16 %v2615, %v2615
        %v2944 = vpack.c.bf16 %v2655, %v2655
        %v2945 = vpack.c.bf16 %v2695, %v2695
        %v2946 = vpack.c.bf16 %v2735, %v2735
        %v2947 = vpack.c.bf16 %v2775, %v2775
        %v2949 = vsel %vm1826, %v2940, 0
        %v2952 = vsel %vm1826, %v2944, 0
        %2954 = vmatprep.subr.bf16.mxu0 0
        %2955 = vmatpush1.bf16.xpose.msra.mxu0 %v2952
        %2956 = vmatprep.subr.bf16.mxu0 0
        %2957 = vmatpush1.bf16.xpose.msra.mxu0 0
        %2958 = vmatprep.subr.bf16.mxu0 0
        %2959 = vmatpush1.bf16.xpose.msra.mxu0 0
        %2960 = vmatprep.subr.bf16.mxu0 0
        %2961 = vmatpush1.bf16.xpose.msra.mxu0 0
        %2962 = vmatprep.subr.bf16.mxu0 0
        %2963 = vmatpush1.bf16.xpose.msra.mxu0 0
        %2964 = vmatprep.subr.bf16.mxu0 0
        %2965 = vmatpush1.bf16.xpose.msra.mxu0 0
        %2966 = vmatprep.subr.bf16.mxu0 0
        %2967 = vmatpush1.bf16.xpose.msra.mxu0 0
        %2968 = vmatprep.subr.bf16.mxu0 0
        %2969 = vmatpush1.bf16.xpose.msra.mxu0 0
        %2970 = vmatprep.subr.bf16.mxu0 0
        %2971 = vmatpush1.bf16.xpose.msra.mxu0 0
        %2972 = vmatprep.subr.bf16.mxu0 0
        %2973 = vmatpush1.bf16.xpose.msra.mxu0 0
        %2974 = vmatprep.subr.bf16.mxu0 0
        %2975 = vmatpush1.bf16.xpose.msra.mxu0 0
        %2976 = vmatprep.subr.bf16.mxu0 0
        %2977 = vmatpush1.bf16.xpose.msra.mxu0 0
        %2978 = vmatprep.subr.bf16.mxu0 0
        %2979 = vmatpush1.bf16.xpose.msra.mxu0 0
        %2980 = vmatprep.subr.bf16.mxu0 0
        %2981 = vmatpush1.bf16.xpose.msra.mxu0 0
        %2982 = vmatprep.subr.bf16.mxu0 0
        %2983 = vmatpush1.bf16.xpose.msra.mxu0 0
        %2984 = vmatprep.subr.bf16.mxu0 0
        %2985 = vmatpush1.bf16.xpose.msra.mxu0 0
        %2986 = vmatprep.mubr.bf16.mxu0 0
        %2987 = vmatmul.mubr.bf16.gmra.mrb[0].mxu0 %v2949
        %v2988 = vpop.f32.mrb[0].mxu0
        %v2989 = vadd.f32 0.0, %v2988
        %v2990 = vpop.f32.mrb[0].mxu0
        %v2991 = vpop.f32.mrb[0].mxu0
        %v2992 = vpop.f32.mrb[0].mxu0
        %2993 = vdwg.mxu0
        %v2995 = vsel %vm1826, %v2941, 0
        %v2998 = vsel %vm1826, %v2945, 0
        %3000 = vmatprep.subr.bf16.mxu0 0
        %3001 = vmatpush1.bf16.xpose.msra.mxu0 %v2998
        %3002 = vmatprep.subr.bf16.mxu0 0
        %3003 = vmatpush1.bf16.xpose.msra.mxu0 0
        %3004 = vmatprep.subr.bf16.mxu0 0
        %3005 = vmatpush1.bf16.xpose.msra.mxu0 0
        %3006 = vmatprep.subr.bf16.mxu0 0
        %3007 = vmatpush1.bf16.xpose.msra.mxu0 0
        %3008 = vmatprep.subr.bf16.mxu0 0
        %3009 = vmatpush1.bf16.xpose.msra.mxu0 0
        %3010 = vmatprep.subr.bf16.mxu0 0
        %3011 = vmatpush1.bf16.xpose.msra.mxu0 0
        %3012 = vmatprep.subr.bf16.mxu0 0
        %3013 = vmatpush1.bf16.xpose.msra.mxu0 0
        %3014 = vmatprep.subr.bf16.mxu0 0
        %3015 = vmatpush1.bf16.xpose.msra.mxu0 0
        %3016 = vmatprep.subr.bf16.mxu0 0
        %3017 = vmatpush1.bf16.xpose.msra.mxu0 0
        %3018 = vmatprep.subr.bf16.mxu0 0
        %3019 = vmatpush1.bf16.xpose.msra.mxu0 0
        %3020 = vmatprep.subr.bf16.mxu0 0
        %3021 = vmatpush1.bf16.xpose.msra.mxu0 0
        %3022 = vmatprep.subr.bf16.mxu0 0
        %3023 = vmatpush1.bf16.xpose.msra.mxu0 0
        %3024 = vmatprep.subr.bf16.mxu0 0
        %3025 = vmatpush1.bf16.xpose.msra.mxu0 0
        %3026 = vmatprep.subr.bf16.mxu0 0
        %3027 = vmatpush1.bf16.xpose.msra.mxu0 0
        %3028 = vmatprep.subr.bf16.mxu0 0
        %3029 = vmatpush1.bf16.xpose.msra.mxu0 0
        %3030 = vmatprep.subr.bf16.mxu0 0
        %3031 = vmatpush1.bf16.xpose.msra.mxu0 0
        %3032 = vmatprep.mubr.bf16.mxu0 0
        %3033 = vmatmul.mubr.bf16.gmra.mrb[0].mxu0 %v2995
        %v3034 = vpop.f32.mrb[0].mxu0
        %v3035 = vadd.f32 0.0, %v3034
        %v3036 = vpop.f32.mrb[0].mxu0
        %v3037 = vpop.f32.mrb[0].mxu0
        %v3038 = vpop.f32.mrb[0].mxu0
        %3039 = vdwg.mxu0
        %v3041 = vsel %vm1826, %v2942, 0
        %v3044 = vsel %vm1826, %v2946, 0
        %3046 = vmatprep.subr.bf16.mxu0 0
        %3047 = vmatpush1.bf16.xpose.msra.mxu0 %v3044
        %3048 = vmatprep.subr.bf16.mxu0 0
        %3049 = vmatpush1.bf16.xpose.msra.mxu0 0
        %3050 = vmatprep.subr.bf16.mxu0 0
        %3051 = vmatpush1.bf16.xpose.msra.mxu0 0
        %3052 = vmatprep.subr.bf16.mxu0 0
        %3053 = vmatpush1.bf16.xpose.msra.mxu0 0
        %3054 = vmatprep.subr.bf16.mxu0 0
        %3055 = vmatpush1.bf16.xpose.msra.mxu0 0
        %3056 = vmatprep.subr.bf16.mxu0 0
        %3057 = vmatpush1.bf16.xpose.msra.mxu0 0
        %3058 = vmatprep.subr.bf16.mxu0 0
        %3059 = vmatpush1.bf16.xpose.msra.mxu0 0
        %3060 = vmatprep.subr.bf16.mxu0 0
        %3061 = vmatpush1.bf16.xpose.msra.mxu0 0
        %3062 = vmatprep.subr.bf16.mxu0 0
        %3063 = vmatpush1.bf16.xpose.msra.mxu0 0
        %3064 = vmatprep.subr.bf16.mxu0 0
        %3065 = vmatpush1.bf16.xpose.msra.mxu0 0
        %3066 = vmatprep.subr.bf16.mxu0 0
        %3067 = vmatpush1.bf16.xpose.msra.mxu0 0
        %3068 = vmatprep.subr.bf16.mxu0 0
        %3069 = vmatpush1.bf16.xpose.msra.mxu0 0
        %3070 = vmatprep.subr.bf16.mxu0 0
        %3071 = vmatpush1.bf16.xpose.msra.mxu0 0
        %3072 = vmatprep.subr.bf16.mxu0 0
        %3073 = vmatpush1.bf16.xpose.msra.mxu0 0
        %3074 = vmatprep.subr.bf16.mxu0 0
        %3075 = vmatpush1.bf16.xpose.msra.mxu0 0
        %3076 = vmatprep.subr.bf16.mxu0 0
        %3077 = vmatpush1.bf16.xpose.msra.mxu0 0
        %3078 = vmatprep.mubr.bf16.mxu0 0
        %3079 = vmatmul.mubr.bf16.gmra.mrb[0].mxu0 %v3041
        %v3080 = vpop.f32.mrb[0].mxu0
        %v3081 = vadd.f32 0.0, %v3080
        %v3082 = vpop.f32.mrb[0].mxu0
        %v3083 = vpop.f32.mrb[0].mxu0
        %v3084 = vpop.f32.mrb[0].mxu0
        %3085 = vdwg.mxu0
        %v3087 = vsel %vm1826, %v2943, 0
        %v3090 = vsel %vm1826, %v2947, 0
        %3092 = vmatprep.subr.bf16.mxu0 0
        %3093 = vmatpush1.bf16.xpose.msra.mxu0 %v3090
        %3094 = vmatprep.subr.bf16.mxu0 0
        %3095 = vmatpush1.bf16.xpose.msra.mxu0 0
        %3096 = vmatprep.subr.bf16.mxu0 0
        %3097 = vmatpush1.bf16.xpose.msra.mxu0 0
        %3098 = vmatprep.subr.bf16.mxu0 0
        %3099 = vmatpush1.bf16.xpose.msra.mxu0 0
        %3100 = vmatprep.subr.bf16.mxu0 0
        %3101 = vmatpush1.bf16.xpose.msra.mxu0 0
        %3102 = vmatprep.subr.bf16.mxu0 0
        %3103 = vmatpush1.bf16.xpose.msra.mxu0 0
        %3104 = vmatprep.subr.bf16.mxu0 0
        %3105 = vmatpush1.bf16.xpose.msra.mxu0 0
        %3106 = vmatprep.subr.bf16.mxu0 0
        %3107 = vmatpush1.bf16.xpose.msra.mxu0 0
        %3108 = vmatprep.subr.bf16.mxu0 0
        %3109 = vmatpush1.bf16.xpose.msra.mxu0 0
        %3110 = vmatprep.subr.bf16.mxu0 0
        %3111 = vmatpush1.bf16.xpose.msra.mxu0 0
        %3112 = vmatprep.subr.bf16.mxu0 0
        %3113 = vmatpush1.bf16.xpose.msra.mxu0 0
        %3114 = vmatprep.subr.bf16.mxu0 0
        %3115 = vmatpush1.bf16.xpose.msra.mxu0 0
        %3116 = vmatprep.subr.bf16.mxu0 0
        %3117 = vmatpush1.bf16.xpose.msra.mxu0 0
        %3118 = vmatprep.subr.bf16.mxu0 0
        %3119 = vmatpush1.bf16.xpose.msra.mxu0 0
        %3120 = vmatprep.subr.bf16.mxu0 0
        %3121 = vmatpush1.bf16.xpose.msra.mxu0 0
        %3122 = vmatprep.subr.bf16.mxu0 0
        %3123 = vmatpush1.bf16.xpose.msra.mxu0 0
        %3124 = vmatprep.mubr.bf16.mxu0 0
        %3125 = vmatmul.mubr.bf16.gmra.mrb[0].mxu0 %v3087
        %v3126 = vpop.f32.mrb[0].mxu0
        %v3127 = vadd.f32 0.0, %v3126
        %v3128 = vpop.f32.mrb[0].mxu0
        %v3129 = vpop.f32.mrb[0].mxu0
        %v3130 = vpop.f32.mrb[0].mxu0
        %3131 = vdwg.mxu0
        %v3132 = vsel %vm2011, %v2989, -inf
        %3133 = vmax.xlane.f32.xlu0 %v3132
        %v3134 = vpop.xlane.xlu0 %3133
        %v3135 = vsel %vm2011, %v3035, -inf
        %3136 = vmax.xlane.f32.xlu0 %v3135
        %v3137 = vpop.xlane.xlu0 %3136
        %v3138 = vsel %vm2011, %v3081, -inf
        %3139 = vmax.xlane.f32.xlu0 %v3138
        %v3140 = vpop.xlane.xlu0 %3139
        %v3141 = vsel %vm2011, %v3127, -inf
        %3142 = vmax.xlane.f32.xlu0 %v3141
        %v3143 = vpop.xlane.xlu0 %3142
        %v3144 = vsub.f32 %v2989, %v3134
        %v3145 = vsub.f32 %v3035, %v3137
        %v3146 = vsub.f32 %v3081, %v3140
        %v3147 = vsub.f32 %v3127, %v3143
        %v3148 = vmul.f32 %v3144, 1.442695
        %v3149 = vpow.pop %v3148
        %v3150 = vmul.f32 %v3145, 1.442695
        %v3151 = vpow.pop %v3150
        %v3152 = vmul.f32 %v3146, 1.442695
        %v3153 = vpow.pop %v3152
        %v3154 = vmul.f32 %v3147, 1.442695
        %v3155 = vpow.pop %v3154
        %v3156 = vsel %vm2011, %v3149, 0.0
        %3157 = vadd.xlane.f32.xlu0 %v3156
        %v3158 = vpop.xlane.xlu0 %3157
        %v3159 = vsel %vm2011, %v3151, 0.0
        %3160 = vadd.xlane.f32.xlu0 %v3159
        %v3161 = vpop.xlane.xlu0 %3160
        %v3162 = vsel %vm2011, %v3153, 0.0
        %3163 = vadd.xlane.f32.xlu0 %v3162
        %v3164 = vpop.xlane.xlu0 %3163
        %v3165 = vsel %vm2011, %v3155, 0.0
        %3166 = vadd.xlane.f32.xlu0 %v3165
        %v3167 = vpop.xlane.xlu0 %3166
        %v3168 = vrcp.pop %v3158
        %v3169 = vrcp.pop %v3161
        %v3170 = vrcp.pop %v3164
        %v3171 = vrcp.pop %v3167
        %v3172 = vmul.f32 %v3149, %v3168
        %v3173 = vmul.f32 %v3151, %v3169
        %v3174 = vmul.f32 %v3153, %v3170
        %v3175 = vmul.f32 %v3155, %v3171
        %v3176 = vpack.c.bf16 %v3172, %v3172
        %v3177 = vpack.c.bf16 %v3173, %v3173
        %v3178 = vpack.c.bf16 %v3174, %v3174
        %v3179 = vpack.c.bf16 %v3175, %v3175
        %v3180 = vpack.c.bf16 %v2815, %v2815
        %v3181 = vpack.c.bf16 %v2855, %v2855
        %v3182 = vpack.c.bf16 %v2895, %v2895
        %v3183 = vpack.c.bf16 %v2935, %v2935
        %v3185 = vsel %vm2064, %v3176, 0
        %v3188 = vand.u32 %v3180, %v2071
        %3190 = vmatprep.subr.bf16.mxu0 0
        %3191 = vmatpush1.bf16.msra.mxu0 %v3188
        %3192 = vmatprep.subr.bf16.mxu0 0
        %3193 = vmatpush1.bf16.msra.mxu0 0
        %3194 = vmatprep.subr.bf16.mxu0 0
        %3195 = vmatpush1.bf16.msra.mxu0 0
        %3196 = vmatprep.subr.bf16.mxu0 0
        %3197 = vmatpush1.bf16.msra.mxu0 0
        %3198 = vmatprep.subr.bf16.mxu0 0
        %3199 = vmatpush1.bf16.msra.mxu0 0
        %3200 = vmatprep.subr.bf16.mxu0 0
        %3201 = vmatpush1.bf16.msra.mxu0 0
        %3202 = vmatprep.subr.bf16.mxu0 0
        %3203 = vmatpush1.bf16.msra.mxu0 0
        %3204 = vmatprep.subr.bf16.mxu0 0
        %3205 = vmatpush1.bf16.msra.mxu0 0
        %3206 = vmatprep.subr.bf16.mxu0 0
        %3207 = vmatpush1.bf16.msra.mxu0 0
        %3208 = vmatprep.subr.bf16.mxu0 0
        %3209 = vmatpush1.bf16.msra.mxu0 0
        %3210 = vmatprep.subr.bf16.mxu0 0
        %3211 = vmatpush1.bf16.msra.mxu0 0
        %3212 = vmatprep.subr.bf16.mxu0 0
        %3213 = vmatpush1.bf16.msra.mxu0 0
        %3214 = vmatprep.subr.bf16.mxu0 0
        %3215 = vmatpush1.bf16.msra.mxu0 0
        %3216 = vmatprep.subr.bf16.mxu0 0
        %3217 = vmatpush1.bf16.msra.mxu0 0
        %3218 = vmatprep.subr.bf16.mxu0 0
        %3219 = vmatpush1.bf16.msra.mxu0 0
        %3220 = vmatprep.subr.bf16.mxu0 0
        %3221 = vmatpush1.bf16.msra.mxu0 0
        %3222 = vmatprep.mubr.bf16.mxu0 0
        %3223 = vmatmul.mubr.bf16.gmra.mrb[0].mxu0 %v3185
        %v3224 = vpop.f32.mrb[0].mxu0
        %v3225 = vadd.f32 0.0, %v3224
        %v3226 = vpop.f32.mrb[0].mxu0
        %v3227 = vpop.f32.mrb[0].mxu0
        %v3228 = vpop.f32.mrb[0].mxu0
        %3229 = vdwg.mxu0
        %v3231 = vsel %vm2064, %v3177, 0
        %v3234 = vand.u32 %v3181, %v2071
        %3236 = vmatprep.subr.bf16.mxu0 0
        %3237 = vmatpush1.bf16.msra.mxu0 %v3234
        %3238 = vmatprep.subr.bf16.mxu0 0
        %3239 = vmatpush1.bf16.msra.mxu0 0
        %3240 = vmatprep.subr.bf16.mxu0 0
        %3241 = vmatpush1.bf16.msra.mxu0 0
        %3242 = vmatprep.subr.bf16.mxu0 0
        %3243 = vmatpush1.bf16.msra.mxu0 0
        %3244 = vmatprep.subr.bf16.mxu0 0
        %3245 = vmatpush1.bf16.msra.mxu0 0
        %3246 = vmatprep.subr.bf16.mxu0 0
        %3247 = vmatpush1.bf16.msra.mxu0 0
        %3248 = vmatprep.subr.bf16.mxu0 0
        %3249 = vmatpush1.bf16.msra.mxu0 0
        %3250 = vmatprep.subr.bf16.mxu0 0
        %3251 = vmatpush1.bf16.msra.mxu0 0
        %3252 = vmatprep.subr.bf16.mxu0 0
        %3253 = vmatpush1.bf16.msra.mxu0 0
        %3254 = vmatprep.subr.bf16.mxu0 0
        %3255 = vmatpush1.bf16.msra.mxu0 0
        %3256 = vmatprep.subr.bf16.mxu0 0
        %3257 = vmatpush1.bf16.msra.mxu0 0
        %3258 = vmatprep.subr.bf16.mxu0 0
        %3259 = vmatpush1.bf16.msra.mxu0 0
        %3260 = vmatprep.subr.bf16.mxu0 0
        %3261 = vmatpush1.bf16.msra.mxu0 0
        %3262 = vmatprep.subr.bf16.mxu0 0
        %3263 = vmatpush1.bf16.msra.mxu0 0
        %3264 = vmatprep.subr.bf16.mxu0 0
        %3265 = vmatpush1.bf16.msra.mxu0 0
        %3266 = vmatprep.subr.bf16.mxu0 0
        %3267 = vmatpush1.bf16.msra.mxu0 0
        %3268 = vmatprep.mubr.bf16.mxu0 0
        %3269 = vmatmul.mubr.bf16.gmra.mrb[0].mxu0 %v3231
        %v3270 = vpop.f32.mrb[0].mxu0
        %v3271 = vadd.f32 0.0, %v3270
        %v3272 = vpop.f32.mrb[0].mxu0
        %v3273 = vpop.f32.mrb[0].mxu0
        %v3274 = vpop.f32.mrb[0].mxu0
        %3275 = vdwg.mxu0
        %v3277 = vsel %vm2064, %v3178, 0
        %v3280 = vand.u32 %v3182, %v2071
        %3282 = vmatprep.subr.bf16.mxu0 0
        %3283 = vmatpush1.bf16.msra.mxu0 %v3280
        %3284 = vmatprep.subr.bf16.mxu0 0
        %3285 = vmatpush1.bf16.msra.mxu0 0
        %3286 = vmatprep.subr.bf16.mxu0 0
        %3287 = vmatpush1.bf16.msra.mxu0 0
        %3288 = vmatprep.subr.bf16.mxu0 0
        %3289 = vmatpush1.bf16.msra.mxu0 0
        %3290 = vmatprep.subr.bf16.mxu0 0
        %3291 = vmatpush1.bf16.msra.mxu0 0
        %3292 = vmatprep.subr.bf16.mxu0 0
        %3293 = vmatpush1.bf16.msra.mxu0 0
        %3294 = vmatprep.subr.bf16.mxu0 0
        %3295 = vmatpush1.bf16.msra.mxu0 0
        %3296 = vmatprep.subr.bf16.mxu0 0
        %3297 = vmatpush1.bf16.msra.mxu0 0
        %3298 = vmatprep.subr.bf16.mxu0 0
        %3299 = vmatpush1.bf16.msra.mxu0 0
        %3300 = vmatprep.subr.bf16.mxu0 0
        %3301 = vmatpush1.bf16.msra.mxu0 0
        %3302 = vmatprep.subr.bf16.mxu0 0
        %3303 = vmatpush1.bf16.msra.mxu0 0
        %3304 = vmatprep.subr.bf16.mxu0 0
        %3305 = vmatpush1.bf16.msra.mxu0 0
        %3306 = vmatprep.subr.bf16.mxu0 0
        %3307 = vmatpush1.bf16.msra.mxu0 0
        %3308 = vmatprep.subr.bf16.mxu0 0
        %3309 = vmatpush1.bf16.msra.mxu0 0
        %3310 = vmatprep.subr.bf16.mxu0 0
        %3311 = vmatpush1.bf16.msra.mxu0 0
        %3312 = vmatprep.subr.bf16.mxu0 0
        %3313 = vmatpush1.bf16.msra.mxu0 0
        %3314 = vmatprep.mubr.bf16.mxu0 0
        %3315 = vmatmul.mubr.bf16.gmra.mrb[0].mxu0 %v3277
        %v3316 = vpop.f32.mrb[0].mxu0
        %v3317 = vadd.f32 0.0, %v3316
        %v3318 = vpop.f32.mrb[0].mxu0
        %v3319 = vpop.f32.mrb[0].mxu0
        %v3320 = vpop.f32.mrb[0].mxu0
        %3321 = vdwg.mxu0
        %v3323 = vsel %vm2064, %v3179, 0
        %v3326 = vand.u32 %v3183, %v2071
        %3328 = vmatprep.subr.bf16.mxu0 0
        %3329 = vmatpush1.bf16.msra.mxu0 %v3326
        %3330 = vmatprep.subr.bf16.mxu0 0
        %3331 = vmatpush1.bf16.msra.mxu0 0
        %3332 = vmatprep.subr.bf16.mxu0 0
        %3333 = vmatpush1.bf16.msra.mxu0 0
        %3334 = vmatprep.subr.bf16.mxu0 0
        %3335 = vmatpush1.bf16.msra.mxu0 0
        %3336 = vmatprep.subr.bf16.mxu0 0
        %3337 = vmatpush1.bf16.msra.mxu0 0
        %3338 = vmatprep.subr.bf16.mxu0 0
        %3339 = vmatpush1.bf16.msra.mxu0 0
        %3340 = vmatprep.subr.bf16.mxu0 0
        %3341 = vmatpush1.bf16.msra.mxu0 0
        %3342 = vmatprep.subr.bf16.mxu0 0
        %3343 = vmatpush1.bf16.msra.mxu0 0
        %3344 = vmatprep.subr.bf16.mxu0 0
        %3345 = vmatpush1.bf16.msra.mxu0 0
        %3346 = vmatprep.subr.bf16.mxu0 0
        %3347 = vmatpush1.bf16.msra.mxu0 0
        %3348 = vmatprep.subr.bf16.mxu0 0
        %3349 = vmatpush1.bf16.msra.mxu0 0
        %3350 = vmatprep.subr.bf16.mxu0 0
        %3351 = vmatpush1.bf16.msra.mxu0 0
        %3352 = vmatprep.subr.bf16.mxu0 0
        %3353 = vmatpush1.bf16.msra.mxu0 0
        %3354 = vmatprep.subr.bf16.mxu0 0
        %3355 = vmatpush1.bf16.msra.mxu0 0
        %3356 = vmatprep.subr.bf16.mxu0 0
        %3357 = vmatpush1.bf16.msra.mxu0 0
        %3358 = vmatprep.subr.bf16.mxu0 0
        %3359 = vmatpush1.bf16.msra.mxu0 0
        %3360 = vmatprep.mubr.bf16.mxu0 0
        %3361 = vmatmul.mubr.bf16.gmra.mrb[0].mxu0 %v3323
        %v3362 = vpop.f32.mrb[0].mxu0
        %v3363 = vadd.f32 0.0, %v3362
        %v3364 = vpop.f32.mrb[0].mxu0
        %v3365 = vpop.f32.mrb[0].mxu0
        %v3366 = vpop.f32.mrb[0].mxu0
        %3367 = vdwg.mxu0
        %v3368 = vpack.c.bf16 %v3225, %v3225
        %v3369 = vpack.c.bf16 %v3271, %v3271
        %v3370 = vpack.c.bf16 %v3317, %v3317
        %v3371 = vpack.c.bf16 %v3363, %v3363
        %v3373 = vsel %vm1826, %v3368, 0
        %3375 = vmatprep.subr.bf16.mxu0 0
        %3376 = vmatpush1.bf16.msra.mxu0 %v2262
        %3377 = vmatprep.subr.bf16.mxu0 0
        %3378 = vmatpush1.bf16.msra.mxu0 0
        %3379 = vmatprep.subr.bf16.mxu0 0
        %3380 = vmatpush1.bf16.msra.mxu0 0
        %3381 = vmatprep.subr.bf16.mxu0 0
        %3382 = vmatpush1.bf16.msra.mxu0 0
        %3383 = vmatprep.subr.bf16.mxu0 0
        %3384 = vmatpush1.bf16.msra.mxu0 0
        %3385 = vmatprep.subr.bf16.mxu0 0
        %3386 = vmatpush1.bf16.msra.mxu0 0
        %3387 = vmatprep.subr.bf16.mxu0 0
        %3388 = vmatpush1.bf16.msra.mxu0 0
        %3389 = vmatprep.subr.bf16.mxu0 0
        %3390 = vmatpush1.bf16.msra.mxu0 0
        %3391 = vmatprep.subr.bf16.mxu0 0
        %3392 = vmatpush1.bf16.msra.mxu0 0
        %3393 = vmatprep.subr.bf16.mxu0 0
        %3394 = vmatpush1.bf16.msra.mxu0 0
        %3395 = vmatprep.subr.bf16.mxu0 0
        %3396 = vmatpush1.bf16.msra.mxu0 0
        %3397 = vmatprep.subr.bf16.mxu0 0
        %3398 = vmatpush1.bf16.msra.mxu0 0
        %3399 = vmatprep.subr.bf16.mxu0 0
        %3400 = vmatpush1.bf16.msra.mxu0 0
        %3401 = vmatprep.subr.bf16.mxu0 0
        %3402 = vmatpush1.bf16.msra.mxu0 0
        %3403 = vmatprep.subr.bf16.mxu0 0
        %3404 = vmatpush1.bf16.msra.mxu0 0
        %3405 = vmatprep.subr.bf16.mxu0 0
        %3406 = vmatpush1.bf16.msra.mxu0 0
        %3407 = vmatprep.mubr.bf16.mxu0 0
        %3408 = vmatmul.mubr.bf16.gmra.mrb[0].mxu0 %v3373
        %v3409 = vpop.f32.mrb[0].mxu0
        %v3410 = vadd.f32 0.0, %v3409
        %v3411 = vpop.f32.mrb[0].mxu0
        %v3412 = vpop.f32.mrb[0].mxu0
        %v3413 = vpop.f32.mrb[0].mxu0
        %3414 = vdwg.mxu0
        %v3416 = vsel %vm1826, %v3369, 0
        %3418 = vmatprep.subr.bf16.mxu0 0
        %3419 = vmatpush1.bf16.msra.mxu0 %v2308
        %3420 = vmatprep.subr.bf16.mxu0 0
        %3421 = vmatpush1.bf16.msra.mxu0 0
        %3422 = vmatprep.subr.bf16.mxu0 0
        %3423 = vmatpush1.bf16.msra.mxu0 0
        %3424 = vmatprep.subr.bf16.mxu0 0
        %3425 = vmatpush1.bf16.msra.mxu0 0
        %3426 = vmatprep.subr.bf16.mxu0 0
        %3427 = vmatpush1.bf16.msra.mxu0 0
        %3428 = vmatprep.subr.bf16.mxu0 0
        %3429 = vmatpush1.bf16.msra.mxu0 0
        %3430 = vmatprep.subr.bf16.mxu0 0
        %3431 = vmatpush1.bf16.msra.mxu0 0
        %3432 = vmatprep.subr.bf16.mxu0 0
        %3433 = vmatpush1.bf16.msra.mxu0 0
        %3434 = vmatprep.subr.bf16.mxu0 0
        %3435 = vmatpush1.bf16.msra.mxu0 0
        %3436 = vmatprep.subr.bf16.mxu0 0
        %3437 = vmatpush1.bf16.msra.mxu0 0
        %3438 = vmatprep.subr.bf16.mxu0 0
        %3439 = vmatpush1.bf16.msra.mxu0 0
        %3440 = vmatprep.subr.bf16.mxu0 0
        %3441 = vmatpush1.bf16.msra.mxu0 0
        %3442 = vmatprep.subr.bf16.mxu0 0
        %3443 = vmatpush1.bf16.msra.mxu0 0
        %3444 = vmatprep.subr.bf16.mxu0 0
        %3445 = vmatpush1.bf16.msra.mxu0 0
        %3446 = vmatprep.subr.bf16.mxu0 0
        %3447 = vmatpush1.bf16.msra.mxu0 0
        %3448 = vmatprep.subr.bf16.mxu0 0
        %3449 = vmatpush1.bf16.msra.mxu0 0
        %3450 = vmatprep.mubr.bf16.mxu0 0
        %3451 = vmatmul.mubr.bf16.gmra.mrb[0].mxu0 %v3416
        %v3452 = vpop.f32.mrb[0].mxu0
        %v3453 = vadd.f32 0.0, %v3452
        %v3454 = vpop.f32.mrb[0].mxu0
        %v3455 = vpop.f32.mrb[0].mxu0
        %v3456 = vpop.f32.mrb[0].mxu0
        %3457 = vdwg.mxu0
        %v3459 = vsel %vm1826, %v3370, 0
        %3461 = vmatprep.subr.bf16.mxu0 0
        %3462 = vmatpush1.bf16.msra.mxu0 %v2354
        %3463 = vmatprep.subr.bf16.mxu0 0
        %3464 = vmatpush1.bf16.msra.mxu0 0
        %3465 = vmatprep.subr.bf16.mxu0 0
        %3466 = vmatpush1.bf16.msra.mxu0 0
        %3467 = vmatprep.subr.bf16.mxu0 0
        %3468 = vmatpush1.bf16.msra.mxu0 0
        %3469 = vmatprep.subr.bf16.mxu0 0
        %3470 = vmatpush1.bf16.msra.mxu0 0
        %3471 = vmatprep.subr.bf16.mxu0 0
        %3472 = vmatpush1.bf16.msra.mxu0 0
        %3473 = vmatprep.subr.bf16.mxu0 0
        %3474 = vmatpush1.bf16.msra.mxu0 0
        %3475 = vmatprep.subr.bf16.mxu0 0
        %3476 = vmatpush1.bf16.msra.mxu0 0
        %3477 = vmatprep.subr.bf16.mxu0 0
        %3478 = vmatpush1.bf16.msra.mxu0 0
        %3479 = vmatprep.subr.bf16.mxu0 0
        %3480 = vmatpush1.bf16.msra.mxu0 0
        %3481 = vmatprep.subr.bf16.mxu0 0
        %3482 = vmatpush1.bf16.msra.mxu0 0
        %3483 = vmatprep.subr.bf16.mxu0 0
        %3484 = vmatpush1.bf16.msra.mxu0 0
        %3485 = vmatprep.subr.bf16.mxu0 0
        %3486 = vmatpush1.bf16.msra.mxu0 0
        %3487 = vmatprep.subr.bf16.mxu0 0
        %3488 = vmatpush1.bf16.msra.mxu0 0
        %3489 = vmatprep.subr.bf16.mxu0 0
        %3490 = vmatpush1.bf16.msra.mxu0 0
        %3491 = vmatprep.subr.bf16.mxu0 0
        %3492 = vmatpush1.bf16.msra.mxu0 0
        %3493 = vmatprep.mubr.bf16.mxu0 0
        %3494 = vmatmul.mubr.bf16.gmra.mrb[0].mxu0 %v3459
        %v3495 = vpop.f32.mrb[0].mxu0
        %v3496 = vadd.f32 0.0, %v3495
        %v3497 = vpop.f32.mrb[0].mxu0
        %v3498 = vpop.f32.mrb[0].mxu0
        %v3499 = vpop.f32.mrb[0].mxu0
        %3500 = vdwg.mxu0
        %v3502 = vsel %vm1826, %v3371, 0
        %3504 = vmatprep.subr.bf16.mxu0 0
        %3505 = vmatpush1.bf16.msra.mxu0 %v2400
        %3506 = vmatprep.subr.bf16.mxu0 0
        %3507 = vmatpush1.bf16.msra.mxu0 0
        %3508 = vmatprep.subr.bf16.mxu0 0
        %3509 = vmatpush1.bf16.msra.mxu0 0
        %3510 = vmatprep.subr.bf16.mxu0 0
        %3511 = vmatpush1.bf16.msra.mxu0 0
        %3512 = vmatprep.subr.bf16.mxu0 0
        %3513 = vmatpush1.bf16.msra.mxu0 0
        %3514 = vmatprep.subr.bf16.mxu0 0
        %3515 = vmatpush1.bf16.msra.mxu0 0
        %3516 = vmatprep.subr.bf16.mxu0 0
        %3517 = vmatpush1.bf16.msra.mxu0 0
        %3518 = vmatprep.subr.bf16.mxu0 0
        %3519 = vmatpush1.bf16.msra.mxu0 0
        %3520 = vmatprep.subr.bf16.mxu0 0
        %3521 = vmatpush1.bf16.msra.mxu0 0
        %3522 = vmatprep.subr.bf16.mxu0 0
        %3523 = vmatpush1.bf16.msra.mxu0 0
        %3524 = vmatprep.subr.bf16.mxu0 0
        %3525 = vmatpush1.bf16.msra.mxu0 0
        %3526 = vmatprep.subr.bf16.mxu0 0
        %3527 = vmatpush1.bf16.msra.mxu0 0
        %3528 = vmatprep.subr.bf16.mxu0 0
        %3529 = vmatpush1.bf16.msra.mxu0 0
        %3530 = vmatprep.subr.bf16.mxu0 0
        %3531 = vmatpush1.bf16.msra.mxu0 0
        %3532 = vmatprep.subr.bf16.mxu0 0
        %3533 = vmatpush1.bf16.msra.mxu0 0
        %3534 = vmatprep.subr.bf16.mxu0 0
        %3535 = vmatpush1.bf16.msra.mxu0 0
        %3536 = vmatprep.mubr.bf16.mxu0 0
        %3537 = vmatmul.mubr.bf16.gmra.mrb[0].mxu0 %v3502
        %v3538 = vpop.f32.mrb[0].mxu0
        %v3539 = vadd.f32 0.0, %v3538
        %v3540 = vpop.f32.mrb[0].mxu0
        %v3541 = vpop.f32.mrb[0].mxu0
        %v3542 = vpop.f32.mrb[0].mxu0
        %3543 = vdwg.mxu0
        %v3544 = vsel %vm2442, %v3410, 0.0
        %v3545 = vsel %vm2442, %v3453, 0.0
        %v3546 = vadd.f32 %v3544, %v3545
        %v3547 = vsel %vm2442, %v3496, 0.0
        %v3548 = vadd.f32 %v3546, %v3547
        %v3549 = vsel %vm2442, %v3539, 0.0
        %v3550 = vadd.f32 %v3548, %v3549
        %v3552 = vrot.slane %v3550, 3
        %vm3554 = vcmask 1044480
        %v3555 = vsel %vm3554, %v2449, %v3552
        %v3556 = vld [vmem:[%s950] sm:$0x1]
        %v3558 = vlaneseq
        %v3559 = vshrl.u32 %v3558, 7
        %v3560 = vsub.s32 0, %v3559
        %v3561 = vrot.slane %v3556, %v3560
        %v3563 = vadd.f32 %v3555, %v3561
        %v3564 = vadd.f32 %v3552, %v3561
        %v3565 = vadd.f32 %v1149, %v3563
        %v3566 = vadd.f32 %v1150, %v3564
        %v3567 = vld [vmem:[%s953] sm:$0x1]
        %v3568 = vld [vmem:[%s956] sm:$0x1]
        %v3569 = vsel %vm1153, %v3565, 0.0
        %3570 = vadd.xlane.f32.xlu0 %v3569
        %v3571 = vpop.xlane.xlu0 %3570
        %v3572 = vsel %vm1157, %v3566, 0.0
        %3573 = vadd.xlane.f32.xlu0 %v3572
        %v3574 = vpop.xlane.xlu0 %3573
        %v3575 = vmul.f32 %v3571, %v1161
        %v3576 = vmul.f32 %v3574, %v1161
        %v3577 = vsub.f32 %v3565, %v3575
        %v3578 = vsub.f32 %v3566, %v3576
        %v3579 = vmul.f32 %v3577, %v3577
        %v3580 = vmul.f32 %v3578, %v3578
        %v3581 = vsel %vm1153, %v3579, 0.0
        %3582 = vadd.xlane.f32.xlu0 %v3581
        %v3583 = vpop.xlane.xlu0 %3582
        %v3584 = vsel %vm1157, %v3580, 0.0
        %3585 = vadd.xlane.f32.xlu0 %v3584
        %v3586 = vpop.xlane.xlu0 %3585
        %v3587 = vmul.f32 %v3583, %v1161
        %v3588 = vmul.f32 %v3586, %v1161
        %v3589 = vadd.f32 %v3587, 1e-06
        %v3590 = vadd.f32 %v3588, 1e-06
        %v3591 = vrsqrt.pop %v3589
        %v3592 = vrsqrt.pop %v3590
        %v3593 = vmul.f32 %v3577, %v3591
        %v3594 = vmul.f32 %v3578, %v3592
        %v3596 = vlaneseq
        %v3597 = vshrl.u32 %v3596, 7
        %v3598 = vsub.s32 0, %v3597
        %v3599 = vrot.slane %v3567, %v3598
        %v3601 = vmul.f32 %v3593, %v3599
        %v3602 = vmul.f32 %v3594, %v3599
        %v3604 = vlaneseq
        %v3605 = vshrl.u32 %v3604, 7
        %v3606 = vsub.s32 0, %v3605
        %v3607 = vrot.slane %v3568, %v3606
        %v3609 = vadd.f32 %v3601, %v3607
        %v3610 = vadd.f32 %v3602, %v3607
        %v3611 = vpack.c.bf16 %v3610, %v3609
        %v3612 = vld [vmem:[%s961] sm:$0xf]
        %v3613 = vld [vmem:[%s961 + $0x4] sm:$0xf]
        %v3614 = vld [vmem:[%s961 + $0x8] sm:$0xf]
        %v3615 = vld [vmem:[%s961 + $0xc] sm:$0xf]
        %v3616 = vld [vmem:[%s964] sm:$0x1]
        %v3618 = vlaneseq
        %v3619 = vshrl.u32 %v3618, 7
        %v3620 = vsub.s32 0, %v3619
        %v3621 = vrot.slane %v3616, %v3620
        %v3627 = vunpack.c.l.b16 %v3612
        %v3628 = vunpack.c.l.b16 %v3613
        %v3629 = vunpack.c.l.b16 %v3614
        %v3630 = vunpack.c.l.b16 %v3615
        %v3631 = vpack.c.b16 %v3628, %v3627
        %v3632 = vpack.c.b16 %v3630, %v3629
        %v3636 = vsel %vm1153, %v3611, 0
        %3638 = vmatprep.subr.bf16.mxu0 0
        %3639 = vmatpush1.bf16.msra.mxu0 %v3631
        %3640 = vmatprep.subr.bf16.mxu0 0
        %3641 = vmatpush1.bf16.msra.mxu0 %v3632
        %3642 = vmatprep.subr.bf16.mxu0 0
        %3643 = vmatpush1.bf16.msra.mxu0 0
        %3644 = vmatprep.subr.bf16.mxu0 0
        %3645 = vmatpush1.bf16.msra.mxu0 0
        %3646 = vmatprep.subr.bf16.mxu0 0
        %3647 = vmatpush1.bf16.msra.mxu0 0
        %3648 = vmatprep.subr.bf16.mxu0 0
        %3649 = vmatpush1.bf16.msra.mxu0 0
        %3650 = vmatprep.subr.bf16.mxu0 0
        %3651 = vmatpush1.bf16.msra.mxu0 0
        %3652 = vmatprep.subr.bf16.mxu0 0
        %3653 = vmatpush1.bf16.msra.mxu0 0
        %3654 = vmatprep.subr.bf16.mxu0 0
        %3655 = vmatpush1.bf16.msra.mxu0 0
        %3656 = vmatprep.subr.bf16.mxu0 0
        %3657 = vmatpush1.bf16.msra.mxu0 0
        %3658 = vmatprep.subr.bf16.mxu0 0
        %3659 = vmatpush1.bf16.msra.mxu0 0
        %3660 = vmatprep.subr.bf16.mxu0 0
        %3661 = vmatpush1.bf16.msra.mxu0 0
        %3662 = vmatprep.subr.bf16.mxu0 0
        %3663 = vmatpush1.bf16.msra.mxu0 0
        %3664 = vmatprep.subr.bf16.mxu0 0
        %3665 = vmatpush1.bf16.msra.mxu0 0
        %3666 = vmatprep.subr.bf16.mxu0 0
        %3667 = vmatpush1.bf16.msra.mxu0 0
        %3668 = vmatprep.subr.bf16.mxu0 0
        %3669 = vmatpush1.bf16.msra.mxu0 0
        %3670 = vmatprep.mubr.bf16.mxu0 0
        %3671 = vmatmul.mubr.bf16.gmra.mrb[0].mxu0 %v3636
        %v3672 = vpop.f32.mrb[0].mxu0
        %v3673 = vadd.f32 %v3621, %v3672
        %v3674 = vpop.f32.mrb[0].mxu0
        %v3675 = vpop.f32.mrb[0].mxu0
        %v3676 = vadd.f32 %v3621, %v3675
        %v3677 = vpop.f32.mrb[0].mxu0
        %3678 = vdwg.mxu0
        %v3679 = vmul.f32 %v3673, 0.5
        %v3680 = vmul.f32 %v3676, 0.5
        %v3681 = vmul.f32 %v3673, 0.70710677
        %v3682 = vmul.f32 %v3676, 0.70710677
        %vm3683 = vcmp.lt.f32.partialorder %v3681, 0.0
        %vm3684 = vcmp.lt.f32.partialorder %v3682, 0.0
        %v3685 = vsel %vm3683, -1.0, 1.0
        %v3686 = vsel %vm3684, -1.0, 1.0
        %v3687 = vand.u32 2147483647, %v3681
        %v3688 = vand.u32 2147483647, %v3682
        %v3689 = vmul.f32 %v3687, 0.3275911
        %v3690 = vmul.f32 %v3688, 0.3275911
        %v3691 = vadd.f32 %v3689, 1.0
        %v3692 = vadd.f32 %v3690, 1.0
        %v3693 = vrcp.pop %v3691
        %v3694 = vmul.f32 1.0, %v3693
        %v3695 = vrcp.pop %v3692
        %v3696 = vmul.f32 1.0, %v3695
        %v3697 = vmul.f32 %v3694, 1.0614054
        %v3698 = vmul.f32 %v3696, 1.0614054
        %v3699 = vadd.f32 %v3697, -1.4531521
        %v3700 = vadd.f32 %v3698, -1.4531521
        %v3701 = vmul.f32 %v3699, %v3694
        %v3702 = vmul.f32 %v3700, %v3696
        %v3703 = vadd.f32 %v3701, 1.4214138
        %v3704 = vadd.f32 %v3702, 1.4214138
        %v3705 = vmul.f32 %v3703, %v3694
        %v3706 = vmul.f32 %v3704, %v3696
        %v3707 = vadd.f32 %v3705, -0.28449672
        %v3708 = vadd.f32 %v3706, -0.28449672
        %v3709 = vmul.f32 %v3707, %v3694
        %v3710 = vmul.f32 %v3708, %v3696
        %v3711 = vadd.f32 %v3709, 0.2548296
        %v3712 = vadd.f32 %v3710, 0.2548296
        %v3713 = vmul.f32 %v3711, %v3694
        %v3714 = vmul.f32 %v3712, %v3696
        %v3715 = vsub.f32 0.0, %v3687
        %v3716 = vsub.f32 0.0, %v3688
        %v3717 = vmul.f32 %v3715, %v3687
        %v3718 = vmul.f32 %v3716, %v3688
        %v3719 = vmul.f32 %v3717, 1.442695
        %v3720 = vpow.pop %v3719
        %v3721 = vmul.f32 %v3718, 1.442695
        %v3722 = vpow.pop %v3721
        %v3723 = vmul.f32 %v3713, %v3720
        %v3724 = vmul.f32 %v3714, %v3722
        %v3725 = vsub.f32 1.0, %v3723
        %v3726 = vsub.f32 1.0, %v3724
        %v3727 = vmul.f32 %v3685, %v3725
        %v3728 = vmul.f32 %v3686, %v3726
        %v3729 = vadd.f32 %v3727, 1.0
        %v3730 = vadd.f32 %v3728, 1.0
        %v3731 = vmul.f32 %v3679, %v3729
        %v3732 = vmul.f32 %v3680, %v3730
        %v3733 = vpack.c.bf16 %v3732, %v3731
        %v3734 = vld [vmem:[%s969] sm:$0xf]
        %v3735 = vld [vmem:[%s969 + $0x4] sm:$0xf]
        %v3736 = vld [vmem:[%s969 + $0x8] sm:$0xf]
        %v3737 = vld [vmem:[%s969 + $0xc] sm:$0xf]
        %v3738 = vld [vmem:[%s969 + $0x10] sm:$0xf]
        %v3739 = vld [vmem:[%s969 + $0x14] sm:$0xf]
        %v3740 = vld [vmem:[%s969 + $0x18] sm:$0xf]
        %v3741 = vld [vmem:[%s969 + $0x1c] sm:$0xf]
        %v3742 = vld [vmem:[%s969 + $0x20] sm:$0xf]
        %v3743 = vld [vmem:[%s969 + $0x24] sm:$0xf]
        %v3744 = vld [vmem:[%s969 + $0x28] sm:$0xf]
        %v3745 = vld [vmem:[%s969 + $0x2c] sm:$0xf]
        %v3746 = vld [vmem:[%s969 + $0x30] sm:$0xf]
        %v3747 = vld [vmem:[%s969 + $0x34] sm:$0xf]
        %v3748 = vld [vmem:[%s969 + $0x38] sm:$0xf]
        %v3749 = vld [vmem:[%s969 + $0x3c] sm:$0xf]
        %v3750 = vld [vmem:[%s972] sm:$0x1]
        %v3752 = vlaneseq
        %v3753 = vshrl.u32 %v3752, 7
        %v3754 = vsub.s32 0, %v3753
        %v3755 = vrot.slane %v3750, %v3754
        %v3773 = vunpack.c.l.b16 %v3734
        %v3774 = vunpack.c.l.b16 %v3735
        %v3775 = vunpack.c.l.b16 %v3736
        %v3776 = vunpack.c.l.b16 %v3737
        %v3777 = vunpack.c.l.b16 %v3738
        %v3778 = vunpack.c.l.b16 %v3739
        %v3779 = vunpack.c.l.b16 %v3740
        %v3780 = vunpack.c.l.b16 %v3741
        %v3781 = vunpack.c.l.b16 %v3742
        %v3782 = vunpack.c.l.b16 %v3743
        %v3783 = vunpack.c.l.b16 %v3744
        %v3784 = vunpack.c.l.b16 %v3745
        %v3785 = vunpack.c.l.b16 %v3746
        %v3786 = vunpack.c.l.b16 %v3747
        %v3787 = vunpack.c.l.b16 %v3748
        %v3788 = vunpack.c.l.b16 %v3749
        %v3789 = vpack.c.b16 %v3774, %v3773
        %v3790 = vpack.c.b16 %v3776, %v3775
        %v3791 = vpack.c.b16 %v3778, %v3777
        %v3792 = vpack.c.b16 %v3780, %v3779
        %v3793 = vpack.c.b16 %v3782, %v3781
        %v3794 = vpack.c.b16 %v3784, %v3783
        %v3795 = vpack.c.b16 %v3786, %v3785
        %v3796 = vpack.c.b16 %v3788, %v3787
        %3805 = vmatprep.subr.bf16.mxu0 0
        %3806 = vmatpush1.bf16.msra.mxu0 %v3789
        %3807 = vmatprep.subr.bf16.mxu0 0
        %3808 = vmatpush1.bf16.msra.mxu0 %v3790
        %3809 = vmatprep.subr.bf16.mxu0 0
        %3810 = vmatpush1.bf16.msra.mxu0 %v3791
        %3811 = vmatprep.subr.bf16.mxu0 0
        %3812 = vmatpush1.bf16.msra.mxu0 %v3792
        %3813 = vmatprep.subr.bf16.mxu0 0
        %3814 = vmatpush1.bf16.msra.mxu0 %v3793
        %3815 = vmatprep.subr.bf16.mxu0 0
        %3816 = vmatpush1.bf16.msra.mxu0 %v3794
        %3817 = vmatprep.subr.bf16.mxu0 0
        %3818 = vmatpush1.bf16.msra.mxu0 %v3795
        %3819 = vmatprep.subr.bf16.mxu0 0
        %3820 = vmatpush1.bf16.msra.mxu0 %v3796
        %3821 = vmatprep.subr.bf16.mxu0 0
        %3822 = vmatpush1.bf16.msra.mxu0 0
        %3823 = vmatprep.subr.bf16.mxu0 0
        %3824 = vmatpush1.bf16.msra.mxu0 0
        %3825 = vmatprep.subr.bf16.mxu0 0
        %3826 = vmatpush1.bf16.msra.mxu0 0
        %3827 = vmatprep.subr.bf16.mxu0 0
        %3828 = vmatpush1.bf16.msra.mxu0 0
        %3829 = vmatprep.subr.bf16.mxu0 0
        %3830 = vmatpush1.bf16.msra.mxu0 0
        %3831 = vmatprep.subr.bf16.mxu0 0
        %3832 = vmatpush1.bf16.msra.mxu0 0
        %3833 = vmatprep.subr.bf16.mxu0 0
        %3834 = vmatpush1.bf16.msra.mxu0 0
        %3835 = vmatprep.subr.bf16.mxu0 0
        %3836 = vmatpush1.bf16.msra.mxu0 0
        %3837 = vmatprep.mubr.bf16.mxu0 0
        %3838 = vmatmul.mubr.bf16.gmra.mrb[0].mxu0 %v3733
        %v3839 = vpop.f32.mrb[0].mxu0
        %v3840 = vadd.f32 %v3755, %v3839
        %v3841 = vpop.f32.mrb[0].mxu0
        %v3842 = vpop.f32.mrb[0].mxu0
        %v3843 = vadd.f32 %v3755, %v3842
        %v3844 = vpop.f32.mrb[0].mxu0
        %3845 = vdwg.mxu0
        %v3846 = vadd.f32 %v3565, %v3840
        %v3847 = vadd.f32 %v3566, %v3843
        %3848 = vst.msk [vmem:[#allocation2] sm:$0xff] %vm1153, %v3846
        %3849 = vst.msk [vmem:[#allocation2 + $0x8] sm:$0x3] %vm1157, %v3847
        %p3850 = scmp.eq.s32.totalorder %s36, 1
        // Predicated region
        $region121: #{imagebind_vision.1} parent=115 // pred_check
          %p3851 = pneg %p3850
        $region122: #{imagebind_vision.1} parent=115 // pred_check_branch
          %3853 = sbr.rel (%p3851) target = $region124
        $region123: #{imagebind_vision.1} parent=115 // pred_region
          %v3855 = vrot.slane %v3846, 4
          %vm3857 = vcmask 1040384
          %v3858 = vsel %vm3857, %v3846, %v3855
          %v3859 = vld [vmem:[%s21] sm:$0x1]
          %v3860 = vld [vmem:[%s22] sm:$0x1]
          %v3861 = vsel %vm1157, %v3858, 0.0
          %3862 = vadd.xlane.f32.xlu0 %v3861
          %v3863 = vpop.xlane.xlu0 %3862
          %v3864 = vmul.f32 %v3863, %v1161
          %v3865 = vsub.f32 %v3858, %v3864
          %v3866 = vmul.f32 %v3865, %v3865
          %v3867 = vsel %vm1157, %v3866, 0.0
          %3868 = vadd.xlane.f32.xlu0 %v3867
          %v3869 = vpop.xlane.xlu0 %3868
          %v3870 = vmul.f32 %v3869, %v1161
          %v3871 = vadd.f32 %v3870, 1e-06
          %v3872 = vrsqrt.pop %v3871
          %v3873 = vmul.f32 %v3865, %v3872
          %v3875 = vlaneseq
          %v3876 = vshrl.u32 %v3875, 7
          %v3877 = vsub.s32 0, %v3876
          %v3878 = vrot.slane %v3859, %v3877
          %v3880 = vmul.f32 %v3873, %v3878
          %v3882 = vlaneseq
          %v3883 = vshrl.u32 %v3882, 7
          %v3884 = vsub.s32 0, %v3883
          %v3885 = vrot.slane %v3860, %v3884
          %v3887 = vadd.f32 %v3880, %v3885
          %v3888 = vpack.c.bf16 %v3887, %v3887
          %v3889 = vld [vmem:[%s23] sm:$0xf]
          %v3890 = vld [vmem:[%s23 + $0x4] sm:$0xf]
          %v3891 = vld [vmem:[%s23 + $0x8] sm:$0xf]
          %v3892 = vld [vmem:[%s23 + $0xc] sm:$0xf]
          %v3897 = vunpack.c.l.b16 %v3889
          %v3898 = vunpack.c.l.b16 %v3890
          %v3899 = vunpack.c.l.b16 %v3891
          %v3900 = vunpack.c.l.b16 %v3892
          %v3901 = vpack.c.b16 %v3898, %v3897
          %v3902 = vpack.c.b16 %v3900, %v3899
          %v3906 = vsel %vm1153, %v3888, 0
          %3908 = vmatprep.subr.bf16.mxu0 0
          %3909 = vmatpush1.bf16.msra.mxu0 %v3901
          %3910 = vmatprep.subr.bf16.mxu0 0
          %3911 = vmatpush1.bf16.msra.mxu0 %v3902
          %3912 = vmatprep.subr.bf16.mxu0 0
          %3913 = vmatpush1.bf16.msra.mxu0 0
          %3914 = vmatprep.subr.bf16.mxu0 0
          %3915 = vmatpush1.bf16.msra.mxu0 0
          %3916 = vmatprep.subr.bf16.mxu0 0
          %3917 = vmatpush1.bf16.msra.mxu0 0
          %3918 = vmatprep.subr.bf16.mxu0 0
          %3919 = vmatpush1.bf16.msra.mxu0 0
          %3920 = vmatprep.subr.bf16.mxu0 0
          %3921 = vmatpush1.bf16.msra.mxu0 0
          %3922 = vmatprep.subr.bf16.mxu0 0
          %3923 = vmatpush1.bf16.msra.mxu0 0
          %3924 = vmatprep.subr.bf16.mxu0 0
          %3925 = vmatpush1.bf16.msra.mxu0 0
          %3926 = vmatprep.subr.bf16.mxu0 0
          %3927 = vmatpush1.bf16.msra.mxu0 0
          %3928 = vmatprep.subr.bf16.mxu0 0
          %3929 = vmatpush1.bf16.msra.mxu0 0
          %3930 = vmatprep.subr.bf16.mxu0 0
          %3931 = vmatpush1.bf16.msra.mxu0 0
          %3932 = vmatprep.subr.bf16.mxu0 0
          %3933 = vmatpush1.bf16.msra.mxu0 0
          %3934 = vmatprep.subr.bf16.mxu0 0
          %3935 = vmatpush1.bf16.msra.mxu0 0
          %3936 = vmatprep.subr.bf16.mxu0 0
          %3937 = vmatpush1.bf16.msra.mxu0 0
          %3938 = vmatprep.subr.bf16.mxu0 0
          %3939 = vmatpush1.bf16.msra.mxu0 0
          %3940 = vmatprep.mubr.bf16.mxu0 0
          %3941 = vmatmul.mubr.bf16.gmra.mrb[0].mxu0 %v3906
          %v3942 = vpop.f32.mrb[0].mxu0
          %v3943 = vadd.f32 0.0, %v3942
          %v3944 = vpop.f32.mrb[0].mxu0
          %v3945 = vpop.f32.mrb[0].mxu0
          %v3946 = vpop.f32.mrb[0].mxu0
          %3947 = vdwg.mxu0
          %v3948 = vmul.f32 %v3943, %v3943
          %v3949 = vsel %vm2068, %v3948, 0.0
          %3950 = vadd.xlane.f32.xlu0 %v3949
          %v3951 = vpop.xlane.xlu0 %3950
          %v3952 = vmax.f32 %v3951, 1e-24
          %v3953 = vrsqrt.pop %v3952
          %v3954 = vmul.f32 %v3943, %v3953
          %3955 = vst [vmem:[#allocation3] sm:$0x3] %v3954
        $region124: #{imagebind_vision.1} parent=115 // pred_fallthru
          _
        // Predicated region
        $region125: #{imagebind_vision.1} parent=115 // pred_check
          %p3956 = pneg %p633
        $region126: #{imagebind_vision.1} parent=115 // pred_check_branch
          %3958 = sbr.rel (%p3956) target = $region128
        $region127: #{imagebind_vision.1} parent=115 // pred_region
          %s3960 = ssub.s32 32, 32
          %3961 = vsyncadd [#allocation4], %s3960
          %s3963 = sshll.u32 [#allocation3], 4
          %s3964 = int_to_ptr.vmem [resolvable:$true] %s3963
          %3966 = dma.vmem_to_hbm [thread:$0]  %s3964, 32, %s24, [#allocation4]
        $region128: #{imagebind_vision.1} parent=115 // pred_fallthru
          _
        // Predicated region
        $region129: #{imagebind_vision.1} parent=115 // pred_check
          %p3967 = pneg %p633
        $region130: #{imagebind_vision.1} parent=115 // pred_check_branch
          %3969 = sbr.rel (%p3967) target = $region132
        $region131: #{imagebind_vision.1} parent=115 // pred_region
          %3970 = dma.done [#allocation4], 32
        $region132: #{imagebind_vision.1} parent=115 // pred_fallthru
          _
      $region116: #{imagebind_vision.1} parent=5 // pred_fallthru
        _
      %p3971 = scmp.le.s32.totalorder 2, %s31
      // Predicated region
      $region133: #{imagebind_vision.1} parent=5 // pred_check
        %p3972 = pneg %p3971
      $region134: #{imagebind_vision.1} parent=5 // pred_check_branch
        %3974 = sbr.rel (%p3972) target = $region136
      $region135: #{imagebind_vision.1} parent=5 // pred_region
        %s3975 = ssub.s32 %s31, 2
      $region136: #{imagebind_vision.1} parent=5 // pred_fallthru
        _
    $region6: #{imagebind_vision.1} parent=1 // loop_footer
      %s35 = sadd.s32 1, %s31
    $region7: #{imagebind_vision.1} parent=1 // loop_footer_branch
      %30 = sbr.rel target = $region3
    $region8: #{imagebind_vision.1} parent=1 // loop_exit
      _
    %3976 = vsyncpa [#allocation4], 1
    %s3977 = scalar_lea.sflag [#allocation4], 1
    %3978 = vsyncpa %s3977, 1

</llo_original>
